<compile_context>
chip_gen: v7x
topology: tpu7x:2x2x1
jax: 0.10.0
libtpu: 0.0.40
codegen_flags: <defaults>
</compile_context>

<pallas_src>
import functools

import jax
import jax.numpy as jnp
from jax.experimental import pallas as pl
from jax.experimental.pallas import tpu as pltpu

_C1 = 6        # conv1 output channels (fixed by the ConvNet spec)
_C2 = 16       # conv2 output channels
_HEAD_W = 128  # lane-dense fused-head output width


def _relu6(x):
    return jnp.minimum(jnp.maximum(x, 0.0), 6.0)


def _selu(x):
    alpha = 1.6732632423543772
    scale = 1.0507009873554805
    # clamp exp() argument so the discarded branch cannot overflow.
    return scale * jnp.where(x > 0, x, alpha * (jnp.exp(jnp.minimum(x, 0.0)) - 1.0))


# --------------------------- fused Pallas kernel ----------------------------

def _fused_kernel(xb_ref, b1w_ref, b1b_ref, b2w_ref, b2b_ref, sel_ref,
                  wl_ref, bl_ref, whd_ref, bhd_ref, par_ref, o_ref,
                  *, bsz, p1h, c1l, c2l, p2h, k, inv_temp):
    f32 = jnp.float32
    dot = functools.partial(jnp.dot, preferred_element_type=f32)

    # ---- conv1 + bias + ReLU6 + 2x2 max-pool (all lane/row dense) ----------
    # xb_ref[0, o] holds input rows (2p + o), stacked over (sample, pooled row
    # p) along the MXU M dim, so pool1's row pairing is a plain elementwise
    # max of the even-row / odd-row convolutions, and its column pairing is a
    # max of two contiguous lane slabs (band weights order output lanes as
    # (col parity, pooled col, channel)).
    ye = (dot(xb_ref[0, 0], b1w_ref[0]) + dot(xb_ref[0, 1], b1w_ref[1])
          + dot(xb_ref[0, 2], b1w_ref[2]))
    yo = (dot(xb_ref[0, 1], b1w_ref[0]) + dot(xb_ref[0, 2], b1w_ref[1])
          + dot(xb_ref[0, 3], b1w_ref[2]))
    b1b = b1b_ref[...]
    t1 = jnp.maximum(_relu6(ye + b1b), _relu6(yo + b1b))    # (bsz*p1h, 2*c1l)
    p1 = jnp.maximum(t1[:, :c1l], t1[:, c1l:2 * c1l])       # (bsz*p1h, c1l)

    # ---- conv2 + bias + ReLU6 over the stacked pool1 rows -------------------
    # Rows whose 3-row window crosses a sample boundary are junk but are never
    # read below (the selection matmuls only pick within-sample rows).
    nrow = bsz * p1h
    y2 = _relu6(dot(p1[0:nrow - 2], b2w_ref[0])
                + dot(p1[1:nrow - 1], b2w_ref[1])
                + dot(p1[2:nrow], b2w_ref[2])
                + b2b_ref[...])                              # (nrow-2, 2*c2l)

    # ---- 2x2 max-pool #2: adjacent-row max + contiguous lane-slab max -------
    t2 = jnp.maximum(y2[0:nrow - 3], y2[1:nrow - 2])         # (nrow-3, 2*c2l)
    c2 = jnp.maximum(t2[:, :c2l], t2[:, c2l:2 * c2l])        # (nrow-3, c2l)

    # ---- flatten + ReLU6 + Linear + ReLU6 -----------------------------------
    # sel_ref[v] is a constant 0/1 matrix picking row (sample*p1h + 2v) of the
    # pooled stack for every sample, so the flatten is p2h tiny MXU selection
    # matmuls plus a lane concat, and the embedding Linear is ONE
    # (bsz, flat) x (flat, hidden) matmul.
    flat = jnp.concatenate([dot(sel_ref[v], c2) for v in range(p2h)], axis=1)
    xrep = _relu6(dot(_relu6(flat), wl_ref[...]) + bl_ref[...])   # (bsz, hidden)

    # ---- fused heads: [SELU(shapeg)+shape | SELU(scaleg)+scale | gate/temp] -
    hrow = dot(xrep, whd_ref[...]) + bhd_ref[...]                 # (bsz, 128)
    lane = jax.lax.broadcasted_iota(jnp.int32, hrow.shape, 1)
    o_ref[...] = jnp.where(lane < 2 * k, _selu(hrow) + par_ref[...],
                           hrow * inv_temp)


# ------------------------- constant folding (wrapper) -----------------------

def _build_constants(params, h, w, hidden, k):
    f32 = jnp.float32
    hp = jax.lax.Precision.HIGHEST
    h1, w1 = h - 2, w - 2
    p1h, p1w = h1 // 2, w1 // 2
    h2, w2 = p1h - 2, p1w - 2
    p2h, p2w = h2 // 2, w2 // 2

    w1c = params["conv1_w"]          # (C1, 1, 3, 3)
    w2c = params["conv2_w"]          # (C2, C1, 3, 3)

    # conv1 band weights, output lanes ordered (col parity, pooled col, ch):
    #   even half lane jp*C1+co <- output col 2*jp ; odd half <- col 2*jp+1.
    wi = jnp.arange(w)[:, None, None]
    jp = jnp.arange(p1w)[None, :, None]
    dj = jnp.arange(3)[None, None, :]
    m1e = (wi == 2 * jp + dj).astype(f32)
    m1o = (wi == 2 * jp + 1 + dj).astype(f32)
    b1e = jnp.einsum("wjd,cid->iwjc", m1e, w1c[:, 0], precision=hp)
    b1o = jnp.einsum("wjd,cid->iwjc", m1o, w1c[:, 0], precision=hp)
    b1w = jnp.concatenate([b1e.reshape(3, w, p1w * _C1),
                           b1o.reshape(3, w, p1w * _C1)], axis=2)
    b1b = jnp.tile(params["conv1_b"], 2 * p1w)[None, :]           # (1, 2*p1w*C1)

    # conv2 band weights, same (parity, pooled col, ch) output lane ordering;
    # input lane order is pool1's (pooled col, ch).
    ji = jnp.arange(p1w)[:, None, None]
    vp = jnp.arange(p2w)[None, :, None]
    m2e = (ji == 2 * vp + dj).astype(f32)
    m2o = (ji == 2 * vp + 1 + dj).astype(f32)
    b2e = jnp.einsum("jvd,ocid->ijcvo", m2e, w2c, precision=hp)
    b2o = jnp.einsum("jvd,ocid->ijcvo", m2o, w2c, precision=hp)
    b2w = jnp.concatenate([b2e.reshape(3, p1w * _C1, p2w * _C2),
                           b2o.reshape(3, p1w * _C1, p2w * _C2)], axis=2)
    b2b = jnp.tile(params["conv2_b"], 2 * p2w)[None, :]           # (1, 2*p2w*C2)

    # embedding Linear rows permuted from torch NCHW flatten order (co, u, vp)
    # to the kernel flatten order (u, vp, co).
    u_i = jnp.arange(p2h)[:, None, None]
    vp_i = jnp.arange(p2w)[None, :, None]
    co_i = jnp.arange(_C2)[None, None, :]
    perm = (co_i * (p2h * p2w) + u_i * p2w + vp_i).reshape(-1)
    wl = params["lin_w"].T[perm, :]                               # (flat, hidden)
    bl = params["lin_b"][None, :]                                 # (1, hidden)

    # fused lane-dense heads: columns [shapeg | scaleg | gate | zero-pad].
    whd = jnp.zeros((hidden, _HEAD_W), f32)
    whd = whd.at[:, 0:k].set(params["shapeg_w"].T)
    whd = whd.at[:, k:2 * k].set(params["scaleg_w"].T)
    whd = whd.at[:, 2 * k:3 * k].set(params["gate_w"].T)
    bhd = jnp.zeros((1, _HEAD_W), f32)
    bhd = bhd.at[0, 0:k].set(params["shapeg_b"])
    bhd = bhd.at[0, k:2 * k].set(params["scaleg_b"])
    par = jnp.zeros((1, _HEAD_W), f32)
    par = par.at[0, 0:k].set(params["shape"])
    par = par.at[0, k:2 * k].set(params["scale"])
    return b1w, b1b, b2w, b2b, wl, bl, whd, bhd, par


def _fixed(arr):
    """Constant-index BlockSpec: whole array, fetched once, stays in VMEM."""
    nd = arr.ndim
    return pl.BlockSpec(arr.shape, lambda i, _nd=nd: (0,) * _nd)


@functools.partial(jax.jit, static_argnames=("temp", "block_b"))
def deep_conv_dp_forward(x, params, temp=1000.0, block_b=16):
    """Forward of DeepConvolutionalDPTorch (dist='Weibull', risk='1')."""
    n = x.shape[0]
    h, w = int(x.shape[-2]), int(x.shape[-1])
    hidden = params["lin_w"].shape[0]
    k = params["shapeg_w"].shape[0]
    assert 3 * k <= _HEAD_W
    assert block_b % 8 == 0
    assert h >= 10 and w >= 10, "ConvNet needs >=10x10 inputs"

    h1, w1 = h - 2, w - 2
    p1h, p1w = h1 // 2, w1 // 2
    h2, w2 = p1h - 2, p1w - 2
    p2h, p2w = h2 // 2, w2 // 2
    c1l, c2l = p1w * _C1, p2w * _C2

    b1w, b1b, b2w, b2b, wl, bl, whd, bhd, par = _build_constants(
        params, h, w, hidden, k)

    nb = pl.cdiv(n, block_b)
    n_pad = nb * block_b
    x2 = x.reshape(n, h, w).astype(jnp.float32)
    if n_pad != n:
        x2 = jnp.pad(x2, ((0, n_pad - n), (0, 0), (0, 0)))
    xr = x2.reshape(nb, block_b, h, w)

    # Band o holds input rows (2p + o) for every pooled conv1 row p, stacked
    # over (sample-in-block, p) along the conv1 matmul M dim (layout plumbing
    # done once in the wrapper so the kernel needs no in-kernel reshapes).
    xb = jnp.stack([xr[:, :, o:o + 2 * p1h:2, :] for o in range(4)], axis=1)
    xb = xb.reshape(nb, 4, block_b * p1h, w)

    # Constant 0/1 row-selection matrices: pick pool2-row v of every sample.
    rows = block_b * p1h - 3
    b_idx = jnp.arange(block_b)
    sel = jnp.zeros((p2h, block_b, rows), jnp.float32)
    for v in range(p2h):
        sel = sel.at[v, b_idx, b_idx * p1h + 2 * v].set(1.0)

    kernel = functools.partial(
        _fused_kernel, bsz=block_b, p1h=p1h, c1l=c1l, c2l=c2l, p2h=p2h, k=k,
        inv_temp=1.0 / float(temp))

    out = pl.pallas_call(
        kernel,
        out_shape=jax.ShapeDtypeStruct((n_pad, _HEAD_W), jnp.float32),
        grid=(nb,),
        in_specs=[
            pl.BlockSpec((1, 4, block_b * p1h, w), lambda i: (i, 0, 0, 0)),
            _fixed(b1w), _fixed(b1b), _fixed(b2w), _fixed(b2b),
            _fixed(sel), _fixed(wl), _fixed(bl),
            _fixed(whd), _fixed(bhd), _fixed(par),
        ],
        out_specs=pl.BlockSpec((block_b, _HEAD_W), lambda i: (i, 0)),
        compiler_params=pltpu.CompilerParams(
            dimension_semantics=("parallel",)),
    )(xb, b1w, b1b, b2w, b2b, sel, wl, bl, whd, bhd, par)

    row = out[:n]
    return row[:, 0:k], row[:, k:2 * k], row[:, 2 * k:3 * k]


# --------------------------- parameter init ---------------------------------

def init_params(key, inputdim, hidden, k):
    h, w = inputdim
    h1, w1 = h - 2, w - 2
    p1h, p1w = h1 // 2, w1 // 2
    h2, w2 = p1h - 2, p1w - 2
    flat_dim = _C2 * (h2 // 2) * (w2 // 2)
    keys = jax.random.split(key, 9)
    f32 = jnp.float32
    return {
        "conv1_w": 0.1 * jax.random.normal(keys[0], (_C1, 1, 3, 3), f32),
        "conv1_b": 0.1 * jax.random.normal(keys[1], (_C1,), f32),
        "conv2_w": 0.1 * jax.random.normal(keys[2], (_C2, _C1, 3, 3), f32),
        "conv2_b": 0.1 * jax.random.normal(keys[3], (_C2,), f32),
        "lin_w": 0.1 * jax.random.normal(keys[4], (hidden, flat_dim), f32),
        "lin_b": 0.1 * jax.random.normal(keys[5], (hidden,), f32),
        "shapeg_w": 0.1 * jax.random.normal(keys[6], (k, hidden), f32),
        "shapeg_b": jnp.zeros((k,), f32),
        "scaleg_w": 0.1 * jax.random.normal(keys[7], (k, hidden), f32),
        "scaleg_b": jnp.zeros((k,), f32),
        "gate_w": 0.1 * jax.random.normal(keys[8], (k, hidden), f32),
        # Weibull init: shape/scale distribution parameters are -ones(k).
        "shape": -jnp.ones((k,), f32),
        "scale": -jnp.ones((k,), f32),
    }


# --------------------------- pure-JAX reference ------------------------------

def _ref_forward(x, p, temp):
    hp = jax.lax.Precision.HIGHEST

    def conv3x3(xc, wgt, bias):
        n, cin, hh, ww = xc.shape
        cout = wgt.shape[0]
        ho, wo = hh - 2, ww - 2
        y = jnp.zeros((n, cout, ho, wo), jnp.float32) + bias[None, :, None, None]
        for di in range(3):
            for dj in range(3):
                patch = xc[:, :, di:di + ho, dj:dj + wo]
                y = y + jnp.einsum("ncij,oc->noij", patch, wgt[:, :, di, dj],
                                   precision=hp)
        return y

    def pool2(v):
        n, c, hh, ww = v.shape
        ho, wo = hh // 2, ww // 2
        v = v[:, :, :2 * ho, :2 * wo].reshape(n, c, ho, 2, wo, 2)
        return v.max(axis=(3, 5))

    relu6 = lambda v: jnp.clip(v, 0.0, 6.0)
    a1 = pool2(relu6(conv3x3(x, p["conv1_w"], p["conv1_b"])))
    a2 = pool2(relu6(conv3x3(a1, p["conv2_w"], p["conv2_b"])))
    flat = relu6(a2.reshape(x.shape[0], -1))
    xrep = relu6(jnp.dot(flat, p["lin_w"].T, precision=hp) + p["lin_b"])
    alpha, scale = 1.6732632423543772, 1.0507009873554805
    selu = lambda v: scale * jnp.where(
        v > 0, v, alpha * (jnp.exp(jnp.minimum(v, 0.0)) - 1.0))
    shape_o = selu(jnp.dot(xrep, p["shapeg_w"].T, precision=hp) + p["shapeg_b"]) + p["shape"]
    scale_o = selu(jnp.dot(xrep, p["scaleg_w"].T, precision=hp) + p["scaleg_b"]) + p["scale"]
    gate_o = jnp.dot(xrep, p["gate_w"].T, precision=hp) / temp
    return shape_o, scale_o, gate_o


# ----------------------------------- main ------------------------------------

if __name__ == "__main__":
    import numpy as np

    key = jax.random.PRNGKey(0)
    N, H, W = 32, 16, 16            # inputdim = (16, 16), 1 input channel
    hidden, k = 32, 3
    temp = 1000.0

    kx, kp = jax.random.split(key)
    x = jax.random.normal(kx, (N, 1, H, W), jnp.float32)     # NCHW like PyTorch
    params = init_params(kp, (H, W), hidden, k)

    shape_o, scale_o, gate_o = deep_conv_dp_forward(x, params, temp=temp)
    jax.block_until_ready((shape_o, scale_o, gate_o))

    assert shape_o.shape == (N, k)
    assert scale_o.shape == (N, k)
    assert gate_o.shape == (N, k)

    ref_shape, ref_scale, ref_gate = _ref_forward(x, params, temp)
    # Tolerance sized to accommodate reduced-precision MXU f32 passes; the
    # all-f32 path itself is exact layout-wise (pure re-association of sums).
    np.testing.assert_allclose(np.asarray(shape_o), np.asarray(ref_shape), rtol=3e-2, atol=3e-2)
    np.testing.assert_allclose(np.asarray(scale_o), np.asarray(ref_scale), rtol=3e-2, atol=3e-2)
    np.testing.assert_allclose(np.asarray(gate_o), np.asarray(ref_gate), rtol=3e-2, atol=3e-2)

    print("KERNEL_OK")
</pallas_src>

<mosaic_0001>
module attributes {stable_mosaic.version = 11 : i64} {
  func.func @_fused_kernel(%arg0: i32, %arg1: memref<1x4x112x16xf32, #tpu.memory_space<vmem>>, %arg2: memref<3x16x84xf32, #tpu.memory_space<vmem>>, %arg3: memref<1x84xf32, #tpu.memory_space<vmem>>, %arg4: memref<3x42x64xf32, #tpu.memory_space<vmem>>, %arg5: memref<1x64xf32, #tpu.memory_space<vmem>>, %arg6: memref<2x16x109xf32, #tpu.memory_space<vmem>>, %arg7: memref<64x32xf32, #tpu.memory_space<vmem>>, %arg8: memref<1x32xf32, #tpu.memory_space<vmem>>, %arg9: memref<32x128xf32, #tpu.memory_space<vmem>>, %arg10: memref<1x128xf32, #tpu.memory_space<vmem>>, %arg11: memref<1x128xf32, #tpu.memory_space<vmem>>, %arg12: memref<16x128xf32, #tpu.memory_space<vmem>>) attributes {dimension_semantics = [#tpu.dimension_semantics<parallel>], iteration_bounds = array<i64: 2>, scalar_prefetch = 0 : i64, scratch_operands = 0 : i64, tpu.core_type = #tpu.core_type<tc>, window_params = [{transform_indices = @transform_0, window_bounds = array<i64: 1, 4, 112, 16>}, {pipeline_mode = #tpu.pipeline_mode<synchronous>, transform_indices = @transform_1, window_bounds = array<i64: 3, 16, 84>}, {pipeline_mode = #tpu.pipeline_mode<synchronous>, transform_indices = @transform_2, window_bounds = array<i64: 1, 84>}, {pipeline_mode = #tpu.pipeline_mode<synchronous>, transform_indices = @transform_3, window_bounds = array<i64: 3, 42, 64>}, {pipeline_mode = #tpu.pipeline_mode<synchronous>, transform_indices = @transform_4, window_bounds = array<i64: 1, 64>}, {pipeline_mode = #tpu.pipeline_mode<synchronous>, transform_indices = @transform_5, window_bounds = array<i64: 2, 16, 109>}, {pipeline_mode = #tpu.pipeline_mode<synchronous>, transform_indices = @transform_6, window_bounds = array<i64: 64, 32>}, {pipeline_mode = #tpu.pipeline_mode<synchronous>, transform_indices = @transform_7, window_bounds = array<i64: 1, 32>}, {pipeline_mode = #tpu.pipeline_mode<synchronous>, transform_indices = @transform_8, window_bounds = array<i64: 32, 128>}, {pipeline_mode = #tpu.pipeline_mode<synchronous>, transform_indices = @transform_9, window_bounds = array<i64: 1, 128>}, {pipeline_mode = #tpu.pipeline_mode<synchronous>, transform_indices = @transform_10, window_bounds = array<i64: 1, 128>}, {transform_indices = @transform_11, window_bounds = array<i64: 16, 128>}]} {
    %c0 = arith.constant 0 : index
    %c0_0 = arith.constant 0 : index
    %c0_1 = arith.constant 0 : index
    %c0_2 = arith.constant 0 : index
    %0 = vector.load %arg1[%c0, %c0_0, %c0_1, %c0_2] : memref<1x4x112x16xf32, #tpu.memory_space<vmem>>, vector<1x1x112x16xf32>
    %1 = vector.shape_cast %0 : vector<1x1x112x16xf32> to vector<112x16xf32>
    %c0_3 = arith.constant 0 : index
    %c0_4 = arith.constant 0 : index
    %c0_5 = arith.constant 0 : index
    %2 = vector.load %arg2[%c0_3, %c0_4, %c0_5] : memref<3x16x84xf32, #tpu.memory_space<vmem>>, vector<1x16x84xf32>
    %3 = vector.shape_cast %2 : vector<1x16x84xf32> to vector<16x84xf32>
    %cst = arith.constant dense<0.000000e+00> : vector<112x84xf32>
    %4 = tpu.matmul %1, %3, %cst {dimension_numbers = #tpu.dot_dimension_numbers<[1], [0], [0], [1], [0, 0, 1, 1], [], []>} : vector<112x16xf32>, vector<16x84xf32>, vector<112x84xf32> -> vector<112x84xf32>
    %c0_6 = arith.constant 0 : index
    %c1 = arith.constant 1 : index
    %c0_7 = arith.constant 0 : index
    %c0_8 = arith.constant 0 : index
    %5 = vector.load %arg1[%c0_6, %c1, %c0_7, %c0_8] : memref<1x4x112x16xf32, #tpu.memory_space<vmem>>, vector<1x1x112x16xf32>
    %6 = vector.shape_cast %5 : vector<1x1x112x16xf32> to vector<112x16xf32>
    %c1_9 = arith.constant 1 : index
    %c0_10 = arith.constant 0 : index
    %c0_11 = arith.constant 0 : index
    %7 = vector.load %arg2[%c1_9, %c0_10, %c0_11] : memref<3x16x84xf32, #tpu.memory_space<vmem>>, vector<1x16x84xf32>
    %8 = vector.shape_cast %7 : vector<1x16x84xf32> to vector<16x84xf32>
    %cst_12 = arith.constant dense<0.000000e+00> : vector<112x84xf32>
    %9 = tpu.matmul %6, %8, %cst_12 {dimension_numbers = #tpu.dot_dimension_numbers<[1], [0], [0], [1], [0, 0, 1, 1], [], []>} : vector<112x16xf32>, vector<16x84xf32>, vector<112x84xf32> -> vector<112x84xf32>
    %10 = arith.addf %4, %9 : vector<112x84xf32>
    %c0_13 = arith.constant 0 : index
    %c2 = arith.constant 2 : index
    %c0_14 = arith.constant 0 : index
    %c0_15 = arith.constant 0 : index
    %11 = vector.load %arg1[%c0_13, %c2, %c0_14, %c0_15] : memref<1x4x112x16xf32, #tpu.memory_space<vmem>>, vector<1x1x112x16xf32>
    %12 = vector.shape_cast %11 : vector<1x1x112x16xf32> to vector<112x16xf32>
    %c2_16 = arith.constant 2 : index
    %c0_17 = arith.constant 0 : index
    %c0_18 = arith.constant 0 : index
    %13 = vector.load %arg2[%c2_16, %c0_17, %c0_18] : memref<3x16x84xf32, #tpu.memory_space<vmem>>, vector<1x16x84xf32>
    %14 = vector.shape_cast %13 : vector<1x16x84xf32> to vector<16x84xf32>
    %cst_19 = arith.constant dense<0.000000e+00> : vector<112x84xf32>
    %15 = tpu.matmul %12, %14, %cst_19 {dimension_numbers = #tpu.dot_dimension_numbers<[1], [0], [0], [1], [0, 0, 1, 1], [], []>} : vector<112x16xf32>, vector<16x84xf32>, vector<112x84xf32> -> vector<112x84xf32>
    %16 = arith.addf %10, %15 : vector<112x84xf32>
    %c0_20 = arith.constant 0 : index
    %c1_21 = arith.constant 1 : index
    %c0_22 = arith.constant 0 : index
    %c0_23 = arith.constant 0 : index
    %17 = vector.load %arg1[%c0_20, %c1_21, %c0_22, %c0_23] : memref<1x4x112x16xf32, #tpu.memory_space<vmem>>, vector<1x1x112x16xf32>
    %18 = vector.shape_cast %17 : vector<1x1x112x16xf32> to vector<112x16xf32>
    %c0_24 = arith.constant 0 : index
    %c0_25 = arith.constant 0 : index
    %c0_26 = arith.constant 0 : index
    %19 = vector.load %arg2[%c0_24, %c0_25, %c0_26] : memref<3x16x84xf32, #tpu.memory_space<vmem>>, vector<1x16x84xf32>
    %20 = vector.shape_cast %19 : vector<1x16x84xf32> to vector<16x84xf32>
    %cst_27 = arith.constant dense<0.000000e+00> : vector<112x84xf32>
    %21 = tpu.matmul %18, %20, %cst_27 {dimension_numbers = #tpu.dot_dimension_numbers<[1], [0], [0], [1], [0, 0, 1, 1], [], []>} : vector<112x16xf32>, vector<16x84xf32>, vector<112x84xf32> -> vector<112x84xf32>
    %c0_28 = arith.constant 0 : index
    %c2_29 = arith.constant 2 : index
    %c0_30 = arith.constant 0 : index
    %c0_31 = arith.constant 0 : index
    %22 = vector.load %arg1[%c0_28, %c2_29, %c0_30, %c0_31] : memref<1x4x112x16xf32, #tpu.memory_space<vmem>>, vector<1x1x112x16xf32>
    %23 = vector.shape_cast %22 : vector<1x1x112x16xf32> to vector<112x16xf32>
    %c1_32 = arith.constant 1 : index
    %c0_33 = arith.constant 0 : index
    %c0_34 = arith.constant 0 : index
    %24 = vector.load %arg2[%c1_32, %c0_33, %c0_34] : memref<3x16x84xf32, #tpu.memory_space<vmem>>, vector<1x16x84xf32>
    %25 = vector.shape_cast %24 : vector<1x16x84xf32> to vector<16x84xf32>
    %cst_35 = arith.constant dense<0.000000e+00> : vector<112x84xf32>
    %26 = tpu.matmul %23, %25, %cst_35 {dimension_numbers = #tpu.dot_dimension_numbers<[1], [0], [0], [1], [0, 0, 1, 1], [], []>} : vector<112x16xf32>, vector<16x84xf32>, vector<112x84xf32> -> vector<112x84xf32>
    %27 = arith.addf %21, %26 : vector<112x84xf32>
    %c0_36 = arith.constant 0 : index
    %c3 = arith.constant 3 : index
    %c0_37 = arith.constant 0 : index
    %c0_38 = arith.constant 0 : index
    %28 = vector.load %arg1[%c0_36, %c3, %c0_37, %c0_38] : memref<1x4x112x16xf32, #tpu.memory_space<vmem>>, vector<1x1x112x16xf32>
    %29 = vector.shape_cast %28 : vector<1x1x112x16xf32> to vector<112x16xf32>
    %c2_39 = arith.constant 2 : index
    %c0_40 = arith.constant 0 : index
    %c0_41 = arith.constant 0 : index
    %30 = vector.load %arg2[%c2_39, %c0_40, %c0_41] : memref<3x16x84xf32, #tpu.memory_space<vmem>>, vector<1x16x84xf32>
    %31 = vector.shape_cast %30 : vector<1x16x84xf32> to vector<16x84xf32>
    %cst_42 = arith.constant dense<0.000000e+00> : vector<112x84xf32>
    %32 = tpu.matmul %29, %31, %cst_42 {dimension_numbers = #tpu.dot_dimension_numbers<[1], [0], [0], [1], [0, 0, 1, 1], [], []>} : vector<112x16xf32>, vector<16x84xf32>, vector<112x84xf32> -> vector<112x84xf32>
    %33 = arith.addf %27, %32 : vector<112x84xf32>
    %c0_43 = arith.constant 0 : index
    %c0_44 = arith.constant 0 : index
    %34 = vector.load %arg3[%c0_43, %c0_44] : memref<1x84xf32, #tpu.memory_space<vmem>>, vector<1x84xf32>
    %35 = vector.broadcast %34 : vector<1x84xf32> to vector<112x84xf32>
    %36 = arith.addf %16, %35 : vector<112x84xf32>
    %cst_45 = arith.constant 0.000000e+00 : f32
    %37 = vector.broadcast %cst_45 : f32 to vector<112x84xf32>
    %38 = arith.maximumf %36, %37 : vector<112x84xf32>
    %cst_46 = arith.constant 6.000000e+00 : f32
    %39 = vector.broadcast %cst_46 : f32 to vector<112x84xf32>
    %40 = arith.minimumf %38, %39 : vector<112x84xf32>
    %41 = vector.broadcast %34 : vector<1x84xf32> to vector<112x84xf32>
    %42 = arith.addf %33, %41 : vector<112x84xf32>
    %cst_47 = arith.constant 0.000000e+00 : f32
    %43 = vector.broadcast %cst_47 : f32 to vector<112x84xf32>
    %44 = arith.maximumf %42, %43 : vector<112x84xf32>
    %cst_48 = arith.constant 6.000000e+00 : f32
    %45 = vector.broadcast %cst_48 : f32 to vector<112x84xf32>
    %46 = arith.minimumf %44, %45 : vector<112x84xf32>
    %47 = arith.maximumf %40, %46 : vector<112x84xf32>
    %48 = vector.extract_strided_slice %47 {offsets = [0, 0], sizes = [112, 42], strides = [1, 1]} : vector<112x84xf32> to vector<112x42xf32>
    %49 = vector.extract_strided_slice %47 {offsets = [0, 42], sizes = [112, 42], strides = [1, 1]} : vector<112x84xf32> to vector<112x42xf32>
    %50 = arith.maximumf %48, %49 : vector<112x42xf32>
    %51 = vector.extract_strided_slice %50 {offsets = [0, 0], sizes = [110, 42], strides = [1, 1]} : vector<112x42xf32> to vector<110x42xf32>
    %c0_49 = arith.constant 0 : index
    %c0_50 = arith.constant 0 : index
    %c0_51 = arith.constant 0 : index
    %52 = vector.load %arg4[%c0_49, %c0_50, %c0_51] : memref<3x42x64xf32, #tpu.memory_space<vmem>>, vector<1x42x64xf32>
    %53 = vector.shape_cast %52 : vector<1x42x64xf32> to vector<42x64xf32>
    %cst_52 = arith.constant dense<0.000000e+00> : vector<110x64xf32>
    %54 = tpu.matmul %51, %53, %cst_52 {dimension_numbers = #tpu.dot_dimension_numbers<[1], [0], [0], [1], [0, 0, 1, 1], [], []>} : vector<110x42xf32>, vector<42x64xf32>, vector<110x64xf32> -> vector<110x64xf32>
    %55 = vector.extract_strided_slice %50 {offsets = [1, 0], sizes = [110, 42], strides = [1, 1]} : vector<112x42xf32> to vector<110x42xf32>
    %c1_53 = arith.constant 1 : index
    %c0_54 = arith.constant 0 : index
    %c0_55 = arith.constant 0 : index
    %56 = vector.load %arg4[%c1_53, %c0_54, %c0_55] : memref<3x42x64xf32, #tpu.memory_space<vmem>>, vector<1x42x64xf32>
    %57 = vector.shape_cast %56 : vector<1x42x64xf32> to vector<42x64xf32>
    %cst_56 = arith.constant dense<0.000000e+00> : vector<110x64xf32>
    %58 = tpu.matmul %55, %57, %cst_56 {dimension_numbers = #tpu.dot_dimension_numbers<[1], [0], [0], [1], [0, 0, 1, 1], [], []>} : vector<110x42xf32>, vector<42x64xf32>, vector<110x64xf32> -> vector<110x64xf32>
    %59 = arith.addf %54, %58 : vector<110x64xf32>
    %60 = vector.extract_strided_slice %50 {offsets = [2, 0], sizes = [110, 42], strides = [1, 1]} : vector<112x42xf32> to vector<110x42xf32>
    %c2_57 = arith.constant 2 : index
    %c0_58 = arith.constant 0 : index
    %c0_59 = arith.constant 0 : index
    %61 = vector.load %arg4[%c2_57, %c0_58, %c0_59] : memref<3x42x64xf32, #tpu.memory_space<vmem>>, vector<1x42x64xf32>
    %62 = vector.shape_cast %61 : vector<1x42x64xf32> to vector<42x64xf32>
    %cst_60 = arith.constant dense<0.000000e+00> : vector<110x64xf32>
    %63 = tpu.matmul %60, %62, %cst_60 {dimension_numbers = #tpu.dot_dimension_numbers<[1], [0], [0], [1], [0, 0, 1, 1], [], []>} : vector<110x42xf32>, vector<42x64xf32>, vector<110x64xf32> -> vector<110x64xf32>
    %64 = arith.addf %59, %63 : vector<110x64xf32>
    %c0_61 = arith.constant 0 : index
    %c0_62 = arith.constant 0 : index
    %65 = vector.load %arg5[%c0_61, %c0_62] : memref<1x64xf32, #tpu.memory_space<vmem>>, vector<1x64xf32>
    %66 = vector.broadcast %65 : vector<1x64xf32> to vector<110x64xf32>
    %67 = arith.addf %64, %66 : vector<110x64xf32>
    %cst_63 = arith.constant 0.000000e+00 : f32
    %68 = vector.broadcast %cst_63 : f32 to vector<110x64xf32>
    %69 = arith.maximumf %67, %68 : vector<110x64xf32>
    %cst_64 = arith.constant 6.000000e+00 : f32
    %70 = vector.broadcast %cst_64 : f32 to vector<110x64xf32>
    %71 = arith.minimumf %69, %70 : vector<110x64xf32>
    %72 = vector.extract_strided_slice %71 {offsets = [0, 0], sizes = [109, 64], strides = [1, 1]} : vector<110x64xf32> to vector<109x64xf32>
    %73 = vector.extract_strided_slice %71 {offsets = [1, 0], sizes = [109, 64], strides = [1, 1]} : vector<110x64xf32> to vector<109x64xf32>
    %74 = arith.maximumf %72, %73 : vector<109x64xf32>
    %75 = vector.extract_strided_slice %74 {offsets = [0, 0], sizes = [109, 32], strides = [1, 1]} : vector<109x64xf32> to vector<109x32xf32>
    %76 = vector.extract_strided_slice %74 {offsets = [0, 32], sizes = [109, 32], strides = [1, 1]} : vector<109x64xf32> to vector<109x32xf32>
    %77 = arith.maximumf %75, %76 : vector<109x32xf32>
    %c0_65 = arith.constant 0 : index
    %c0_66 = arith.constant 0 : index
    %c0_67 = arith.constant 0 : index
    %78 = vector.load %arg6[%c0_65, %c0_66, %c0_67] : memref<2x16x109xf32, #tpu.memory_space<vmem>>, vector<1x16x109xf32>
    %79 = vector.shape_cast %78 : vector<1x16x109xf32> to vector<16x109xf32>
    %cst_68 = arith.constant dense<0.000000e+00> : vector<16x32xf32>
    %80 = tpu.matmul %79, %77, %cst_68 {dimension_numbers = #tpu.dot_dimension_numbers<[1], [0], [0], [1], [0, 0, 1, 1], [], []>} : vector<16x109xf32>, vector<109x32xf32>, vector<16x32xf32> -> vector<16x32xf32>
    %c1_69 = arith.constant 1 : index
    %c0_70 = arith.constant 0 : index
    %c0_71 = arith.constant 0 : index
    %81 = vector.load %arg6[%c1_69, %c0_70, %c0_71] : memref<2x16x109xf32, #tpu.memory_space<vmem>>, vector<1x16x109xf32>
    %82 = vector.shape_cast %81 : vector<1x16x109xf32> to vector<16x109xf32>
    %cst_72 = arith.constant dense<0.000000e+00> : vector<16x32xf32>
    %83 = tpu.matmul %82, %77, %cst_72 {dimension_numbers = #tpu.dot_dimension_numbers<[1], [0], [0], [1], [0, 0, 1, 1], [], []>} : vector<16x109xf32>, vector<109x32xf32>, vector<16x32xf32> -> vector<16x32xf32>
    %84 = tpu.concatenate %80, %83 in 1 : vector<16x32xf32>, vector<16x32xf32> -> vector<16x64xf32>
    %cst_73 = arith.constant 0.000000e+00 : f32
    %85 = vector.broadcast %cst_73 : f32 to vector<16x64xf32>
    %86 = arith.maximumf %84, %85 : vector<16x64xf32>
    %cst_74 = arith.constant 6.000000e+00 : f32
    %87 = vector.broadcast %cst_74 : f32 to vector<16x64xf32>
    %88 = arith.minimumf %86, %87 : vector<16x64xf32>
    %c0_75 = arith.constant 0 : index
    %c0_76 = arith.constant 0 : index
    %89 = vector.load %arg7[%c0_75, %c0_76] : memref<64x32xf32, #tpu.memory_space<vmem>>, vector<64x32xf32>
    %cst_77 = arith.constant dense<0.000000e+00> : vector<16x32xf32>
    %90 = tpu.matmul %88, %89, %cst_77 {dimension_numbers = #tpu.dot_dimension_numbers<[1], [0], [0], [1], [0, 0, 1, 1], [], []>} : vector<16x64xf32>, vector<64x32xf32>, vector<16x32xf32> -> vector<16x32xf32>
    %c0_78 = arith.constant 0 : index
    %c0_79 = arith.constant 0 : index
    %91 = vector.load %arg8[%c0_78, %c0_79] : memref<1x32xf32, #tpu.memory_space<vmem>>, vector<1x32xf32>
    %92 = vector.broadcast %91 : vector<1x32xf32> to vector<16x32xf32>
    %93 = arith.addf %90, %92 : vector<16x32xf32>
    %cst_80 = arith.constant 0.000000e+00 : f32
    %94 = vector.broadcast %cst_80 : f32 to vector<16x32xf32>
    %95 = arith.maximumf %93, %94 : vector<16x32xf32>
    %cst_81 = arith.constant 6.000000e+00 : f32
    %96 = vector.broadcast %cst_81 : f32 to vector<16x32xf32>
    %97 = arith.minimumf %95, %96 : vector<16x32xf32>
    %c0_82 = arith.constant 0 : index
    %c0_83 = arith.constant 0 : index
    %98 = vector.load %arg9[%c0_82, %c0_83] : memref<32x128xf32, #tpu.memory_space<vmem>>, vector<32x128xf32>
    %cst_84 = arith.constant dense<0.000000e+00> : vector<16x128xf32>
    %99 = tpu.matmul %97, %98, %cst_84 {dimension_numbers = #tpu.dot_dimension_numbers<[1], [0], [0], [1], [0, 0, 1, 1], [], []>} : vector<16x32xf32>, vector<32x128xf32>, vector<16x128xf32> -> vector<16x128xf32>
    %c0_85 = arith.constant 0 : index
    %c0_86 = arith.constant 0 : index
    %100 = vector.load %arg10[%c0_85, %c0_86] : memref<1x128xf32, #tpu.memory_space<vmem>>, vector<1x128xf32>
    %101 = vector.broadcast %100 : vector<1x128xf32> to vector<16x128xf32>
    %102 = arith.addf %99, %101 : vector<16x128xf32>
    %103 = tpu.iota {dimensions = array<i32: 1>} : vector<16x128xi32>
    %c6_i32 = arith.constant 6 : i32
    %104 = vector.broadcast %c6_i32 : i32 to vector<16x128xi32>
    %105 = arith.cmpi slt, %103, %104 : vector<16x128xi32>
    %cst_87 = arith.constant 0.000000e+00 : f32
    %106 = vector.broadcast %cst_87 : f32 to vector<16x128xf32>
    %107 = arith.cmpf ogt, %102, %106 : vector<16x128xf32>
    %cst_88 = arith.constant 0.000000e+00 : f32
    %108 = vector.broadcast %cst_88 : f32 to vector<16x128xf32>
    %109 = arith.minimumf %102, %108 : vector<16x128xf32>
    %110 = math.exp %109 : vector<16x128xf32>
    %cst_89 = arith.constant 1.000000e+00 : f32
    %111 = vector.broadcast %cst_89 : f32 to vector<16x128xf32>
    %112 = arith.subf %110, %111 : vector<16x128xf32>
    %cst_90 = arith.constant 1.67326319 : f32
    %113 = vector.broadcast %cst_90 : f32 to vector<16x128xf32>
    %114 = arith.mulf %113, %112 : vector<16x128xf32>
    %115 = arith.select %107, %102, %114 : vector<16x128xi1>, vector<16x128xf32>
    %cst_91 = arith.constant 1.05070102 : f32
    %116 = vector.broadcast %cst_91 : f32 to vector<16x128xf32>
    %117 = arith.mulf %116, %115 : vector<16x128xf32>
    %c0_92 = arith.constant 0 : index
    %c0_93 = arith.constant 0 : index
    %118 = vector.load %arg11[%c0_92, %c0_93] : memref<1x128xf32, #tpu.memory_space<vmem>>, vector<1x128xf32>
    %119 = vector.broadcast %118 : vector<1x128xf32> to vector<16x128xf32>
    %120 = arith.addf %117, %119 : vector<16x128xf32>
    %cst_94 = arith.constant 1.000000e-03 : f32
    %121 = vector.broadcast %cst_94 : f32 to vector<16x128xf32>
    %122 = arith.mulf %102, %121 : vector<16x128xf32>
    %123 = arith.select %105, %120, %122 : vector<16x128xi1>, vector<16x128xf32>
    %c0_95 = arith.constant 0 : index
    %c0_96 = arith.constant 0 : index
    %124 = vector.load %arg12[%c0_95, %c0_96] : memref<16x128xf32, #tpu.memory_space<vmem>>, vector<16x128xf32>
    tpu.vector_store %arg12[%c0_95, %c0_96], %123 {strides = array<i32>} : memref<16x128xf32, #tpu.memory_space<vmem>>, vector<16x128xf32>,
    return
  }
  func.func @transform_0(%arg0: i32) -> (i32, i32, i32, i32) {
    %c0_i32 = arith.constant 0 : i32
    %c0_i32_0 = arith.constant 0 : i32
    %c0_i32_1 = arith.constant 0 : i32
    %c0_i32_2 = arith.constant 0 : i32
    return %arg0, %c0_i32, %c0_i32_0, %c0_i32_1 : i32, i32, i32, i32
  }
  func.func @transform_1(%arg0: i32) -> (i32, i32, i32) {
    %c0_i32 = arith.constant 0 : i32
    %c0_i32_0 = arith.constant 0 : i32
    %c0_i32_1 = arith.constant 0 : i32
    %c0_i32_2 = arith.constant 0 : i32
    return %c0_i32, %c0_i32_0, %c0_i32_1 : i32, i32, i32
  }
  func.func @transform_2(%arg0: i32) -> (i32, i32) {
    %c0_i32 = arith.constant 0 : i32
    %c0_i32_0 = arith.constant 0 : i32
    %c0_i32_1 = arith.constant 0 : i32
    return %c0_i32, %c0_i32_0 : i32, i32
  }
  func.func @transform_3(%arg0: i32) -> (i32, i32, i32) {
    %c0_i32 = arith.constant 0 : i32
    %c0_i32_0 = arith.constant 0 : i32
    %c0_i32_1 = arith.constant 0 : i32
    %c0_i32_2 = arith.constant 0 : i32
    return %c0_i32, %c0_i32_0, %c0_i32_1 : i32, i32, i32
  }
  func.func @transform_4(%arg0: i32) -> (i32, i32) {
    %c0_i32 = arith.constant 0 : i32
    %c0_i32_0 = arith.constant 0 : i32
    %c0_i32_1 = arith.constant 0 : i32
    return %c0_i32, %c0_i32_0 : i32, i32
  }
  func.func @transform_5(%arg0: i32) -> (i32, i32, i32) {
    %c0_i32 = arith.constant 0 : i32
    %c0_i32_0 = arith.constant 0 : i32
    %c0_i32_1 = arith.constant 0 : i32
    %c0_i32_2 = arith.constant 0 : i32
    return %c0_i32, %c0_i32_0, %c0_i32_1 : i32, i32, i32
  }
  func.func @transform_6(%arg0: i32) -> (i32, i32) {
    %c0_i32 = arith.constant 0 : i32
    %c0_i32_0 = arith.constant 0 : i32
    %c0_i32_1 = arith.constant 0 : i32
    return %c0_i32, %c0_i32_0 : i32, i32
  }
  func.func @transform_7(%arg0: i32) -> (i32, i32) {
    %c0_i32 = arith.constant 0 : i32
    %c0_i32_0 = arith.constant 0 : i32
    %c0_i32_1 = arith.constant 0 : i32
    return %c0_i32, %c0_i32_0 : i32, i32
  }
  func.func @transform_8(%arg0: i32) -> (i32, i32) {
    %c0_i32 = arith.constant 0 : i32
    %c0_i32_0 = arith.constant 0 : i32
    %c0_i32_1 = arith.constant 0 : i32
    return %c0_i32, %c0_i32_0 : i32, i32
  }
  func.func @transform_9(%arg0: i32) -> (i32, i32) {
    %c0_i32 = arith.constant 0 : i32
    %c0_i32_0 = arith.constant 0 : i32
    %c0_i32_1 = arith.constant 0 : i32
    return %c0_i32, %c0_i32_0 : i32, i32
  }
  func.func @transform_10(%arg0: i32) -> (i32, i32) {
    %c0_i32 = arith.constant 0 : i32
    %c0_i32_0 = arith.constant 0 : i32
    %c0_i32_1 = arith.constant 0 : i32
    return %c0_i32, %c0_i32_0 : i32, i32
  }
  func.func @transform_11(%arg0: i32) -> (i32, i32) {
    %c0_i32 = arith.constant 0 : i32
    %c0_i32_0 = arith.constant 0 : i32
    return %arg0, %c0_i32 : i32, i32
  }
}

</mosaic_0001>

<llo_original>
// kernel: tile.13
$region0: #{tile.13}
  #allocation0 [shape = 's32[1]{0}', space=sflag, size = 0x4, scoped, tag = 'scoped memory for tile.13']
  %s0 = inlined_call_operand.vmem [shape: f32[6], index: 0, kind: input, shape index: {}]
  %s1 = inlined_call_operand.vmem [shape: f32[14,6], index: 1, kind: output, shape index: {}]
  // Predicated region
  $region2: #{tile.13} parent=0 // pred_check
    _
  $region3: #{tile.13} parent=0 // pred_check_branch
    %3 = sbr.rel (0) target = $region5
  $region4: #{tile.13} parent=0 // pred_region
    _
  $region5: #{tile.13} parent=0 // pred_fallthru
    _
  %v4 = vld [vmem:[%s0] ss:$0 sm:$0xff]
  %5 = vst [vmem:[%s1] sm:$0xff] %v4
  %s6 = scalar_lea.vmem %s1, 8
  %7 = vst [vmem:[%s6] sm:$0xff] %v4

// kernel: tile.14
$region0: #{tile.14}
  %s0 = inlined_call_operand.vmem [shape: f32[14,6], index: 0, kind: input, shape index: {}]
  %s1 = inlined_call_operand.vmem [shape: f32[1,84], index: 1, kind: output, shape index: {}]
  $region1: #{tile.14} parent=0
    #allocation0 [shape = 'u8[4096]{0}', space=vmem, size = 0x1000, scoped, tag = 'scoped mem for output reshape']
    %v2 = vld [vmem:[%s0] sm:$0x1]
    %vm3 = vcmask 48128
    %4 = vst.msk [vmem:[#allocation0] sm:$0x1] %vm3, %v2
    %s5 = scalar_lea.vmem %s0, 13
    %v6 = vld [vmem:[%s5] sm:$0x1]
    %7 = vrot.lane.b32.xlu0 %v6, 78
    %v8 = vpop.permute.xlu0 %7
    %vm9 = vcmask 687728
    %10 = vst.msk [vmem:[#allocation0] sm:$0x1] %vm9, %v8
    %s11 = scalar_lea.vmem %s0, 12
    %v12 = vld [vmem:[%s11] sm:$0x1]
    %13 = vrot.lane.b32.xlu0 %v12, 72
    %v14 = vpop.permute.xlu0 %13
    %vm15 = vcmask 638528
    %16 = vst.msk [vmem:[#allocation0] sm:$0x1] %vm15, %v14
    %s17 = scalar_lea.vmem %s0, 11
    %v18 = vld [vmem:[%s17] sm:$0x1]
    %19 = vrot.lane.b32.xlu0 %v18, 66
    %v20 = vpop.permute.xlu0 %19
    %vm21 = vcmask 589328
    %22 = vst.msk [vmem:[#allocation0] sm:$0x1] %vm21, %v20
    %s23 = scalar_lea.vmem %s0, 10
    %v24 = vld [vmem:[%s23] sm:$0x1]
    %25 = vrot.lane.b32.xlu0 %v24, 60
    %v26 = vpop.permute.xlu0 %25
    %vm27 = vcmask 540128
    %28 = vst.msk [vmem:[#allocation0] sm:$0x1] %vm27, %v26
    %s29 = scalar_lea.vmem %s0, 9
    %v30 = vld [vmem:[%s29] sm:$0x1]
    %31 = vrot.lane.b32.xlu0 %v30, 54
    %v32 = vpop.permute.xlu0 %31
    %vm33 = vcmask 490928
    %34 = vst.msk [vmem:[#allocation0] sm:$0x1] %vm33, %v32
    %s35 = scalar_lea.vmem %s0, 8
    %v36 = vld [vmem:[%s35] sm:$0x1]
    %37 = vrot.lane.b32.xlu0 %v36, 48
    %v38 = vpop.permute.xlu0 %37
    %vm39 = vcmask 441728
    %40 = vst.msk [vmem:[#allocation0] sm:$0x1] %vm39, %v38
    %s41 = scalar_lea.vmem %s0, 7
    %v42 = vld [vmem:[%s41] sm:$0x1]
    %43 = vrot.lane.b32.xlu0 %v42, 42
    %v44 = vpop.permute.xlu0 %43
    %vm45 = vcmask 392528
    %46 = vst.msk [vmem:[#allocation0] sm:$0x1] %vm45, %v44
    %s47 = scalar_lea.vmem %s0, 6
    %v48 = vld [vmem:[%s47] sm:$0x1]
    %49 = vrot.lane.b32.xlu0 %v48, 36
    %v50 = vpop.permute.xlu0 %49
    %vm51 = vcmask 343328
    %52 = vst.msk [vmem:[#allocation0] sm:$0x1] %vm51, %v50
    %s53 = scalar_lea.vmem %s0, 5
    %v54 = vld [vmem:[%s53] sm:$0x1]
    %55 = vrot.lane.b32.xlu0 %v54, 30
    %v56 = vpop.permute.xlu0 %55
    %vm57 = vcmask 294128
    %58 = vst.msk [vmem:[#allocation0] sm:$0x1] %vm57, %v56
    %s59 = scalar_lea.vmem %s0, 4
    %v60 = vld [vmem:[%s59] sm:$0x1]
    %61 = vrot.lane.b32.xlu0 %v60, 24
    %v62 = vpop.permute.xlu0 %61
    %vm63 = vcmask 244928
    %64 = vst.msk [vmem:[#allocation0] sm:$0x1] %vm63, %v62
    %s65 = scalar_lea.vmem %s0, 3
    %v66 = vld [vmem:[%s65] sm:$0x1]
    %67 = vrot.lane.b32.xlu0 %v66, 18
    %v68 = vpop.permute.xlu0 %67
    %vm69 = vcmask 195728
    %70 = vst.msk [vmem:[#allocation0] sm:$0x1] %vm69, %v68
    %s71 = scalar_lea.vmem %s0, 2
    %v72 = vld [vmem:[%s71] sm:$0x1]
    %73 = vrot.lane.b32.xlu0 %v72, 12
    %v74 = vpop.permute.xlu0 %73
    %vm75 = vcmask 146528
    %76 = vst.msk [vmem:[#allocation0] sm:$0x1] %vm75, %v74
    %s77 = scalar_lea.vmem %s0, 1
    %v78 = vld [vmem:[%s77] sm:$0x1]
    %79 = vrot.lane.b32.xlu0 %v78, 6
    %v80 = vpop.permute.xlu0 %79
    %vm81 = vcmask 97328
    %82 = vst.msk [vmem:[#allocation0] sm:$0x1] %vm81, %v80
    %s84 = sshllo.u32 0, 1
    %v86 = vld [vmem:[#allocation0] sm:%s84]
    %s87 = sshllo.u32 0, 1
    %88 = vst [vmem:[%s1] sm:%s87] %v86

// kernel: tile.18
$region0: #{tile.18}
  #allocation0 [shape = 's32[1]{0}', space=sflag, size = 0x4, scoped, tag = 'scoped memory for tile.18']
  %s0 = inlined_call_operand.vmem [shape: f32[16], index: 0, kind: input, shape index: {}]
  %s1 = inlined_call_operand.vmem [shape: f32[4,16], index: 1, kind: output, shape index: {}]
  // Predicated region
  $region2: #{tile.18} parent=0 // pred_check
    _
  $region3: #{tile.18} parent=0 // pred_check_branch
    %3 = sbr.rel (0) target = $region5
  $region4: #{tile.18} parent=0 // pred_region
    _
  $region5: #{tile.18} parent=0 // pred_fallthru
    _
  %v4 = vld [vmem:[%s0] ss:$0 sm:$0xff]
  %5 = vst [vmem:[%s1] sm:$0xf] %v4

// kernel: tile.19
$region0: #{tile.19}
  %s0 = inlined_call_operand.vmem [shape: f32[4,16], index: 0, kind: input, shape index: {}]
  %s1 = inlined_call_operand.vmem [shape: f32[1,64], index: 1, kind: output, shape index: {}]
  $region1: #{tile.19} parent=0
    #allocation0 [shape = 'u8[4096]{0}', space=vmem, size = 0x1000, scoped, tag = 'scoped mem for output reshape']
    #allocation1 [shape = 'u8[4096]{0}', space=vmem, size = 0x1000, scoped, tag = 'scoped mem for input reshape']
    %s3 = sshllo.u32 0, 4
    %v4 = vld [vmem:[%s0] sm:%s3]
    %5 = vst [vmem:[#allocation1] sm:%s3] %v4
    %v6 = vld [vmem:[#allocation1] sm:$0x1]
    %vm7 = vcmask 130048
    %8 = vst.msk [vmem:[#allocation0] sm:$0x1] %vm7, %v6
    %s9 = scalar_lea.vmem [#allocation1], 3
    %v10 = vld [vmem:[%s9] sm:$0x1]
    %11 = vrot.lane.b32.xlu0 %v10, 48
    %v12 = vpop.permute.xlu0 %11
    %vm13 = vcmask 523648
    %14 = vst.msk [vmem:[#allocation0] sm:$0x1] %vm13, %v12
    %s15 = scalar_lea.vmem [#allocation1], 2
    %v16 = vld [vmem:[%s15] sm:$0x1]
    %17 = vrot.lane.b32.xlu0 %v16, 32
    %v18 = vpop.permute.xlu0 %17
    %vm19 = vcmask 392448
    %20 = vst.msk [vmem:[#allocation0] sm:$0x1] %vm19, %v18
    %s21 = scalar_lea.vmem [#allocation1], 1
    %v22 = vld [vmem:[%s21] sm:$0x1]
    %23 = vrot.lane.b32.xlu0 %v22, 16
    %v24 = vpop.permute.xlu0 %23
    %vm25 = vcmask 261248
    %26 = vst.msk [vmem:[#allocation0] sm:$0x1] %vm25, %v24
    %s28 = sshllo.u32 0, 1
    %v30 = vld [vmem:[#allocation0] sm:%s28]
    %s31 = sshllo.u32 0, 1
    %32 = vst [vmem:[%s1] sm:%s31] %v30

// kernel: deep_conv_dp_forward.1
$region0: #{deep_conv_dp_forward.1}
  #allocation0 [shape = 'u32[]', space=smem, size = 0x4, offset = 0x4, fixed_abs, tag = 'smem constant byte address 0x4 - core index']
  #allocation1 [shape = 'u32[144,128]{1,0:T(1,128)}', space=vmem, size = 0x12000, scoped, tag = 'internal scratch']
  %s0 = inlined_call_operand.vmem [shape: f32[2,4,112,16], index: 0, kind: input, shape index: {}]
  %s1 = inlined_call_operand.vmem [shape: f32[3,16,84], index: 1, kind: input, shape index: {}]
  %s2 = inlined_call_operand.vmem [shape: f32[1,84], index: 2, kind: input, shape index: {}]
  %s3 = inlined_call_operand.vmem [shape: f32[3,42,64], index: 3, kind: input, shape index: {}]
  %s4 = inlined_call_operand.vmem [shape: f32[1,64], index: 4, kind: input, shape index: {}]
  %s5 = inlined_call_operand.vmem [shape: f32[2,16,109], index: 5, kind: input, shape index: {}]
  %s6 = inlined_call_operand.vmem [shape: f32[64,32], index: 6, kind: input, shape index: {}]
  %s7 = inlined_call_operand.vmem [shape: f32[1,32], index: 7, kind: input, shape index: {}]
  %s8 = inlined_call_operand.vmem [shape: f32[32,128], index: 8, kind: input, shape index: {}]
  %s9 = inlined_call_operand.vmem [shape: f32[1,128], index: 9, kind: input, shape index: {}]
  %s10 = inlined_call_operand.vmem [shape: f32[1,128], index: 10, kind: input, shape index: {}]
  %s11 = inlined_call_operand.vmem [shape: f32[32,128], index: 11, kind: output, shape index: {}]
  %s12 = sld [smem:[#allocation0]]
  $region77: #{deep_conv_dp_forward.1} parent=0
    _
  %s14 = ssub.s32 1, %s12
  %s15 = scalar_select 0, %s14, %s12
  loop: start=0, step=1, limit=4
  $region2: #{deep_conv_dp_forward.1} parent=0 // loop_pre_header
    _
  $region3: #{deep_conv_dp_forward.1} parent=0 // loop_header
    %s17 = sphi 0, %s21
    %p18 = scmp.ge.s32.totalorder %s17, 4
    %s27 = sphi 0, %s29
    %s30 = sphi 0, %s27
    %s31 = sphi 0, %s30
    %s47 = sphi 0, %s31
    %s51 = sphi 0, %s51
    %s53 = sphi 0, %s51
    %s54 = sphi 0, %s53
    %s68 = sphi 0, %s54
    %s72 = sphi 0, %s72
    %s74 = sphi 0, %s72
    %s75 = sphi 0, %s74
    %s89 = sphi 0, %s75
    %s93 = sphi 0, %s93
    %s95 = sphi 0, %s93
    %s96 = sphi 0, %s95
    %s110 = sphi 0, %s96
    %s114 = sphi 0, %s114
    %s116 = sphi 0, %s114
    %s117 = sphi 0, %s116
    %s131 = sphi 0, %s117
    %s135 = sphi 0, %s135
    %s137 = sphi 0, %s135
    %s138 = sphi 0, %s137
    %s152 = sphi 0, %s138
    %s156 = sphi 0, %s156
    %s158 = sphi 0, %s156
    %s159 = sphi 0, %s158
    %s173 = sphi 0, %s159
    %s177 = sphi 0, %s177
    %s179 = sphi 0, %s177
    %s180 = sphi 0, %s179
    %s194 = sphi 0, %s180
    %s198 = sphi 0, %s198
    %s200 = sphi 0, %s198
    %s201 = sphi 0, %s200
    %s215 = sphi 0, %s201
    %s219 = sphi 0, %s219
    %s221 = sphi 0, %s219
    %s222 = sphi 0, %s221
    %s236 = sphi 0, %s222
    %s240 = sphi 0, %s240
    %s242 = sphi 0, %s240
    %s243 = sphi 0, %s242
    %s257 = sphi 0, %s243
    %s263 = sphi 0, %s265
    %s266 = sphi 0, %s263
    %s267 = sphi 0, %s266
    %s283 = sphi 0, %s267
  $region4: #{deep_conv_dp_forward.1} parent=0 // loop_header_branch
    %20 = sbr.rel (%p18) target = $region8
  $region5: #{deep_conv_dp_forward.1} parent=0 // loop_body
    %s22 = ssub.s32 %s17, 1
    %s23 = ssub.s32 %s17, 2
    %s24 = sadd.s32 %s17, 1
    %s25 = ssub.s32 %s17, %s24
    %p26 = scmp.eq.s32.totalorder %s25, 0
    %s28 = sadd.s32 %s27, 1
    %s29 = scalar_select %p26, %s27, %s28
    %p32 = pneg %p26
    %p33 = scmp.eq.s32.totalorder %s17, 1
    %p34 = por %p32, %p33
    %p35 = scmp.ne.s32.totalorder %s27, %s30
    %p36 = scmp.eq.s32.totalorder %s17, 0
    %p37 = por %p35, %p36
    %p38 = scmp.ne.s32.totalorder %s27, %s30
    %p39 = scmp.eq.s32.totalorder %s22, 1
    %p40 = por %p38, %p39
    %p41 = scmp.ne.s32.totalorder %s30, %s31
    %p42 = scmp.eq.s32.totalorder %s22, 0
    %p43 = por %p41, %p42
    %p44 = scmp.ne.s32.totalorder %s30, %s31
    %p45 = scmp.eq.s32.totalorder %s23, 1
    %p46 = por %p44, %p45
    %p48 = scmp.ne.s32.totalorder %s31, %s47
    %p49 = scmp.eq.s32.totalorder %s23, 0
    %p50 = por %p48, %p49
    %s52 = sadd.s32 %s51, 1
    %p55 = scmp.eq.s32.totalorder %s17, 1
    %p56 = scmp.ne.s32.totalorder %s51, %s53
    %p57 = scmp.eq.s32.totalorder %s17, 0
    %p58 = por %p56, %p57
    %p59 = scmp.ne.s32.totalorder %s51, %s53
    %p60 = scmp.eq.s32.totalorder %s22, 1
    %p61 = por %p59, %p60
    %p62 = scmp.ne.s32.totalorder %s53, %s54
    %p63 = scmp.eq.s32.totalorder %s22, 0
    %p64 = por %p62, %p63
    %p65 = scmp.ne.s32.totalorder %s53, %s54
    %p66 = scmp.eq.s32.totalorder %s23, 1
    %p67 = por %p65, %p66
    %p69 = scmp.ne.s32.totalorder %s54, %s68
    %p70 = scmp.eq.s32.totalorder %s23, 0
    %p71 = por %p69, %p70
    %s73 = sadd.s32 %s72, 1
    %p76 = scmp.eq.s32.totalorder %s17, 1
    %p77 = scmp.ne.s32.totalorder %s72, %s74
    %p78 = scmp.eq.s32.totalorder %s17, 0
    %p79 = por %p77, %p78
    %p80 = scmp.ne.s32.totalorder %s72, %s74
    %p81 = scmp.eq.s32.totalorder %s22, 1
    %p82 = por %p80, %p81
    %p83 = scmp.ne.s32.totalorder %s74, %s75
    %p84 = scmp.eq.s32.totalorder %s22, 0
    %p85 = por %p83, %p84
    %p86 = scmp.ne.s32.totalorder %s74, %s75
    %p87 = scmp.eq.s32.totalorder %s23, 1
    %p88 = por %p86, %p87
    %p90 = scmp.ne.s32.totalorder %s75, %s89
    %p91 = scmp.eq.s32.totalorder %s23, 0
    %p92 = por %p90, %p91
    %s94 = sadd.s32 %s93, 1
    %p97 = scmp.eq.s32.totalorder %s17, 1
    %p98 = scmp.ne.s32.totalorder %s93, %s95
    %p99 = scmp.eq.s32.totalorder %s17, 0
    %p100 = por %p98, %p99
    %p101 = scmp.ne.s32.totalorder %s93, %s95
    %p102 = scmp.eq.s32.totalorder %s22, 1
    %p103 = por %p101, %p102
    %p104 = scmp.ne.s32.totalorder %s95, %s96
    %p105 = scmp.eq.s32.totalorder %s22, 0
    %p106 = por %p104, %p105
    %p107 = scmp.ne.s32.totalorder %s95, %s96
    %p108 = scmp.eq.s32.totalorder %s23, 1
    %p109 = por %p107, %p108
    %p111 = scmp.ne.s32.totalorder %s96, %s110
    %p112 = scmp.eq.s32.totalorder %s23, 0
    %p113 = por %p111, %p112
    %s115 = sadd.s32 %s114, 1
    %p118 = scmp.eq.s32.totalorder %s17, 1
    %p119 = scmp.ne.s32.totalorder %s114, %s116
    %p120 = scmp.eq.s32.totalorder %s17, 0
    %p121 = por %p119, %p120
    %p122 = scmp.ne.s32.totalorder %s114, %s116
    %p123 = scmp.eq.s32.totalorder %s22, 1
    %p124 = por %p122, %p123
    %p125 = scmp.ne.s32.totalorder %s116, %s117
    %p126 = scmp.eq.s32.totalorder %s22, 0
    %p127 = por %p125, %p126
    %p128 = scmp.ne.s32.totalorder %s116, %s117
    %p129 = scmp.eq.s32.totalorder %s23, 1
    %p130 = por %p128, %p129
    %p132 = scmp.ne.s32.totalorder %s117, %s131
    %p133 = scmp.eq.s32.totalorder %s23, 0
    %p134 = por %p132, %p133
    %s136 = sadd.s32 %s135, 1
    %p139 = scmp.eq.s32.totalorder %s17, 1
    %p140 = scmp.ne.s32.totalorder %s135, %s137
    %p141 = scmp.eq.s32.totalorder %s17, 0
    %p142 = por %p140, %p141
    %p143 = scmp.ne.s32.totalorder %s135, %s137
    %p144 = scmp.eq.s32.totalorder %s22, 1
    %p145 = por %p143, %p144
    %p146 = scmp.ne.s32.totalorder %s137, %s138
    %p147 = scmp.eq.s32.totalorder %s22, 0
    %p148 = por %p146, %p147
    %p149 = scmp.ne.s32.totalorder %s137, %s138
    %p150 = scmp.eq.s32.totalorder %s23, 1
    %p151 = por %p149, %p150
    %p153 = scmp.ne.s32.totalorder %s138, %s152
    %p154 = scmp.eq.s32.totalorder %s23, 0
    %p155 = por %p153, %p154
    %s157 = sadd.s32 %s156, 1
    %p160 = scmp.eq.s32.totalorder %s17, 1
    %p161 = scmp.ne.s32.totalorder %s156, %s158
    %p162 = scmp.eq.s32.totalorder %s17, 0
    %p163 = por %p161, %p162
    %p164 = scmp.ne.s32.totalorder %s156, %s158
    %p165 = scmp.eq.s32.totalorder %s22, 1
    %p166 = por %p164, %p165
    %p167 = scmp.ne.s32.totalorder %s158, %s159
    %p168 = scmp.eq.s32.totalorder %s22, 0
    %p169 = por %p167, %p168
    %p170 = scmp.ne.s32.totalorder %s158, %s159
    %p171 = scmp.eq.s32.totalorder %s23, 1
    %p172 = por %p170, %p171
    %p174 = scmp.ne.s32.totalorder %s159, %s173
    %p175 = scmp.eq.s32.totalorder %s23, 0
    %p176 = por %p174, %p175
    %s178 = sadd.s32 %s177, 1
    %p181 = scmp.eq.s32.totalorder %s17, 1
    %p182 = scmp.ne.s32.totalorder %s177, %s179
    %p183 = scmp.eq.s32.totalorder %s17, 0
    %p184 = por %p182, %p183
    %p185 = scmp.ne.s32.totalorder %s177, %s179
    %p186 = scmp.eq.s32.totalorder %s22, 1
    %p187 = por %p185, %p186
    %p188 = scmp.ne.s32.totalorder %s179, %s180
    %p189 = scmp.eq.s32.totalorder %s22, 0
    %p190 = por %p188, %p189
    %p191 = scmp.ne.s32.totalorder %s179, %s180
    %p192 = scmp.eq.s32.totalorder %s23, 1
    %p193 = por %p191, %p192
    %p195 = scmp.ne.s32.totalorder %s180, %s194
    %p196 = scmp.eq.s32.totalorder %s23, 0
    %p197 = por %p195, %p196
    %s199 = sadd.s32 %s198, 1
    %p202 = scmp.eq.s32.totalorder %s17, 1
    %p203 = scmp.ne.s32.totalorder %s198, %s200
    %p204 = scmp.eq.s32.totalorder %s17, 0
    %p205 = por %p203, %p204
    %p206 = scmp.ne.s32.totalorder %s198, %s200
    %p207 = scmp.eq.s32.totalorder %s22, 1
    %p208 = por %p206, %p207
    %p209 = scmp.ne.s32.totalorder %s200, %s201
    %p210 = scmp.eq.s32.totalorder %s22, 0
    %p211 = por %p209, %p210
    %p212 = scmp.ne.s32.totalorder %s200, %s201
    %p213 = scmp.eq.s32.totalorder %s23, 1
    %p214 = por %p212, %p213
    %p216 = scmp.ne.s32.totalorder %s201, %s215
    %p217 = scmp.eq.s32.totalorder %s23, 0
    %p218 = por %p216, %p217
    %s220 = sadd.s32 %s219, 1
    %p223 = scmp.eq.s32.totalorder %s17, 1
    %p224 = scmp.ne.s32.totalorder %s219, %s221
    %p225 = scmp.eq.s32.totalorder %s17, 0
    %p226 = por %p224, %p225
    %p227 = scmp.ne.s32.totalorder %s219, %s221
    %p228 = scmp.eq.s32.totalorder %s22, 1
    %p229 = por %p227, %p228
    %p230 = scmp.ne.s32.totalorder %s221, %s222
    %p231 = scmp.eq.s32.totalorder %s22, 0
    %p232 = por %p230, %p231
    %p233 = scmp.ne.s32.totalorder %s221, %s222
    %p234 = scmp.eq.s32.totalorder %s23, 1
    %p235 = por %p233, %p234
    %p237 = scmp.ne.s32.totalorder %s222, %s236
    %p238 = scmp.eq.s32.totalorder %s23, 0
    %p239 = por %p237, %p238
    %s241 = sadd.s32 %s240, 1
    %p244 = scmp.eq.s32.totalorder %s17, 1
    %p245 = scmp.ne.s32.totalorder %s240, %s242
    %p246 = scmp.eq.s32.totalorder %s17, 0
    %p247 = por %p245, %p246
    %p248 = scmp.ne.s32.totalorder %s240, %s242
    %p249 = scmp.eq.s32.totalorder %s22, 1
    %p250 = por %p248, %p249
    %p251 = scmp.ne.s32.totalorder %s242, %s243
    %p252 = scmp.eq.s32.totalorder %s22, 0
    %p253 = por %p251, %p252
    %p254 = scmp.ne.s32.totalorder %s242, %s243
    %p255 = scmp.eq.s32.totalorder %s23, 1
    %p256 = por %p254, %p255
    %p258 = scmp.ne.s32.totalorder %s243, %s257
    %p259 = scmp.eq.s32.totalorder %s23, 0
    %p260 = por %p258, %p259
    %s261 = ssub.s32 %s17, %s24
    %p262 = scmp.eq.s32.totalorder %s261, 0
    %s264 = sadd.s32 %s263, 1
    %s265 = scalar_select %p262, %s263, %s264
    %p268 = pneg %p262
    %p269 = scmp.eq.s32.totalorder %s17, 1
    %p270 = por %p268, %p269
    %p271 = scmp.ne.s32.totalorder %s263, %s266
    %p272 = scmp.eq.s32.totalorder %s17, 0
    %p273 = por %p271, %p272
    %p274 = scmp.ne.s32.totalorder %s263, %s266
    %p275 = scmp.eq.s32.totalorder %s22, 1
    %p276 = por %p274, %p275
    %p277 = scmp.ne.s32.totalorder %s266, %s267
    %p278 = scmp.eq.s32.totalorder %s22, 0
    %p279 = por %p277, %p278
    %p280 = scmp.ne.s32.totalorder %s266, %s267
    %p281 = scmp.eq.s32.totalorder %s23, 1
    %p282 = por %p280, %p281
    %p284 = scmp.ne.s32.totalorder %s267, %s283
    %p285 = scmp.eq.s32.totalorder %s23, 0
    %p286 = por %p284, %p285
    %p287 = scmp.le.s32.totalorder 1, %s17
    %p288 = scmp.lt.s32.totalorder %s17, 3
    %p289 = pnand %p287, %p288
    %p290 = pneg %p289
    // Predicated region
    $region9: #{deep_conv_dp_forward.1} parent=5 // pred_check
      _
    $region10: #{deep_conv_dp_forward.1} parent=5 // pred_check_branch
      %292 = sbr.rel (%p289) target = $region12
    $region11: #{deep_conv_dp_forward.1} parent=5 // pred_region
      %s293 = ssub.s32 %s17, 1
      // Predicated region
      $region13: #{deep_conv_dp_forward.1} parent=11 // pred_check
        %p294 = pneg %p64
      $region14: #{deep_conv_dp_forward.1} parent=11 // pred_check_branch
        %296 = sbr.rel (%p294) target = $region16
      $region15: #{deep_conv_dp_forward.1} parent=11 // pred_region
        _
      $region16: #{deep_conv_dp_forward.1} parent=11 // pred_fallthru
        _
      // Predicated region
      $region17: #{deep_conv_dp_forward.1} parent=11 // pred_check
        %p297 = pneg %p85
      $region18: #{deep_conv_dp_forward.1} parent=11 // pred_check_branch
        %299 = sbr.rel (%p297) target = $region20
      $region19: #{deep_conv_dp_forward.1} parent=11 // pred_region
        _
      $region20: #{deep_conv_dp_forward.1} parent=11 // pred_fallthru
        _
      // Predicated region
      $region21: #{deep_conv_dp_forward.1} parent=11 // pred_check
        %p300 = pneg %p106
      $region22: #{deep_conv_dp_forward.1} parent=11 // pred_check_branch
        %302 = sbr.rel (%p300) target = $region24
      $region23: #{deep_conv_dp_forward.1} parent=11 // pred_region
        _
      $region24: #{deep_conv_dp_forward.1} parent=11 // pred_fallthru
        _
      // Predicated region
      $region25: #{deep_conv_dp_forward.1} parent=11 // pred_check
        %p303 = pneg %p127
      $region26: #{deep_conv_dp_forward.1} parent=11 // pred_check_branch
        %305 = sbr.rel (%p303) target = $region28
      $region27: #{deep_conv_dp_forward.1} parent=11 // pred_region
        _
      $region28: #{deep_conv_dp_forward.1} parent=11 // pred_fallthru
        _
      // Predicated region
      $region29: #{deep_conv_dp_forward.1} parent=11 // pred_check
        %p306 = pneg %p148
      $region30: #{deep_conv_dp_forward.1} parent=11 // pred_check_branch
        %308 = sbr.rel (%p306) target = $region32
      $region31: #{deep_conv_dp_forward.1} parent=11 // pred_region
        _
      $region32: #{deep_conv_dp_forward.1} parent=11 // pred_fallthru
        _
      // Predicated region
      $region33: #{deep_conv_dp_forward.1} parent=11 // pred_check
        %p309 = pneg %p169
      $region34: #{deep_conv_dp_forward.1} parent=11 // pred_check_branch
        %311 = sbr.rel (%p309) target = $region36
      $region35: #{deep_conv_dp_forward.1} parent=11 // pred_region
        _
      $region36: #{deep_conv_dp_forward.1} parent=11 // pred_fallthru
        _
      // Predicated region
      $region37: #{deep_conv_dp_forward.1} parent=11 // pred_check
        %p312 = pneg %p190
      $region38: #{deep_conv_dp_forward.1} parent=11 // pred_check_branch
        %314 = sbr.rel (%p312) target = $region40
      $region39: #{deep_conv_dp_forward.1} parent=11 // pred_region
        _
      $region40: #{deep_conv_dp_forward.1} parent=11 // pred_fallthru
        _
      // Predicated region
      $region41: #{deep_conv_dp_forward.1} parent=11 // pred_check
        %p315 = pneg %p211
      $region42: #{deep_conv_dp_forward.1} parent=11 // pred_check_branch
        %317 = sbr.rel (%p315) target = $region44
      $region43: #{deep_conv_dp_forward.1} parent=11 // pred_region
        _
      $region44: #{deep_conv_dp_forward.1} parent=11 // pred_fallthru
        _
      // Predicated region
      $region45: #{deep_conv_dp_forward.1} parent=11 // pred_check
        %p318 = pneg %p232
      $region46: #{deep_conv_dp_forward.1} parent=11 // pred_check_branch
        %320 = sbr.rel (%p318) target = $region48
      $region47: #{deep_conv_dp_forward.1} parent=11 // pred_region
        _
      $region48: #{deep_conv_dp_forward.1} parent=11 // pred_fallthru
        _
      // Predicated region
      $region49: #{deep_conv_dp_forward.1} parent=11 // pred_check
        %p321 = pneg %p253
      $region50: #{deep_conv_dp_forward.1} parent=11 // pred_check_branch
        %323 = sbr.rel (%p321) target = $region52
      $region51: #{deep_conv_dp_forward.1} parent=11 // pred_region
        _
      $region52: #{deep_conv_dp_forward.1} parent=11 // pred_fallthru
        _
    $region12: #{deep_conv_dp_forward.1} parent=5 // pred_fallthru
      _
    %p324 = scmp.lt.s32.totalorder %s17, 2
    // Predicated region
    $region53: #{deep_conv_dp_forward.1} parent=5 // pred_check
      %p325 = pneg %p324
    $region54: #{deep_conv_dp_forward.1} parent=5 // pred_check_branch
      %327 = sbr.rel (%p325) target = $region56
    $region55: #{deep_conv_dp_forward.1} parent=5 // pred_region
      // Predicated region
      $region57: #{deep_conv_dp_forward.1} parent=55 // pred_check
        %p328 = pneg %p37
      $region58: #{deep_conv_dp_forward.1} parent=55 // pred_check_branch
        %330 = sbr.rel (%p328) target = $region60
      $region59: #{deep_conv_dp_forward.1} parent=55 // pred_region
        %p331 = scmp.lt.s32.totalorder %s17, 1
        %s332 = scalar_select %p331, %s17, 1
        %s333 = smul.addr %s332, 56
        %s334 = smul.addr %s333, 8
        %s335 = scalar_lea.vmem %s0, %s334
      $region60: #{deep_conv_dp_forward.1} parent=55 // pred_fallthru
        _
    $region56: #{deep_conv_dp_forward.1} parent=5 // pred_fallthru
      _
    %p336 = scmp.le.s32.totalorder 1, %s17
    %p337 = scmp.lt.s32.totalorder %s17, 3
    %p338 = pnand %p336, %p337
    %p339 = pneg %p338
    // Predicated region
    $region61: #{deep_conv_dp_forward.1} parent=5 // pred_check
      _
    $region62: #{deep_conv_dp_forward.1} parent=5 // pred_check_branch
      %341 = sbr.rel (%p338) target = $region64
    $region63: #{deep_conv_dp_forward.1} parent=5 // pred_region
      %s342 = ssub.s32 %s17, 1
      %p343 = scmp.lt.s32.totalorder %s22, 1
      %s344 = scalar_select %p343, %s22, 1
      %s345 = smul.addr %s344, 56
      %s346 = smul.addr %s345, 8
      %s347 = scalar_lea.vmem %s0, %s346
      %p348 = pneg %p43
      %p349 = pneg %p40
      %p350 = pneg %p64
      %p351 = pneg %p61
      %p352 = pneg %p85
      %p353 = pneg %p82
      %p354 = pneg %p106
      %p355 = pneg %p103
      %p356 = pneg %p127
      %p357 = pneg %p124
      %p358 = pneg %p148
      %p359 = pneg %p145
      %p360 = pneg %p169
      %p361 = pneg %p166
      %p362 = pneg %p190
      %p363 = pneg %p187
      %p364 = pneg %p211
      %p365 = pneg %p208
      %p366 = pneg %p232
      %p367 = pneg %p229
      %p368 = pneg %p253
      %p369 = pneg %p250
      %p370 = pneg %p279
      %p371 = pneg %p276
      %s372 = smul.u32 2, %s22
      %p373 = scmp.lt.s32.totalorder %s372, 3
      %s374 = scalar_select %p373, %s372, 3
      %s375 = smul.addr %s374, 8
      %s376 = scalar_lea.vmem %s11, %s375
      %p377 = scmp.lt.s32.totalorder %s22, 1
      %s378 = scalar_select %p377, %s22, 1
      %s379 = smul.addr %s378, 56
      %s380 = smul.addr %s379, 8
      %s381 = scalar_lea.vmem %s0, %s380
      %s382 = smul.u32 2, %s22
      %p383 = scmp.lt.s32.totalorder %s382, 3
      %s384 = scalar_select %p383, %s382, 3
      %s385 = smul.addr %s384, 8
      %s386 = scalar_lea.vmem %s11, %s385
      %s387 = smul.u32 2, %s22
      %v388 = vld [vmem:[%s381] sm:$0xff]
      %v389 = vld [vmem:[%s381 + $0x8] sm:$0xff]
      %v390 = vld [vmem:[%s381 + $0x10] sm:$0xff]
      %v391 = vld [vmem:[%s381 + $0x18] sm:$0xff]
      %v392 = vld [vmem:[%s381 + $0x20] sm:$0xff]
      %v393 = vld [vmem:[%s381 + $0x28] sm:$0xff]
      %v394 = vld [vmem:[%s381 + $0x30] sm:$0xff]
      %v395 = vld [vmem:[%s381 + $0x38] sm:$0xff]
      %v396 = vld [vmem:[%s381 + $0x40] sm:$0xff]
      %v397 = vld [vmem:[%s381 + $0x48] sm:$0xff]
      %v398 = vld [vmem:[%s381 + $0x50] sm:$0xff]
      %v399 = vld [vmem:[%s381 + $0x58] sm:$0xff]
      %v400 = vld [vmem:[%s381 + $0x60] sm:$0xff]
      %v401 = vld [vmem:[%s381 + $0x68] sm:$0xff]
      %v402 = vld [vmem:[%s1] sm:$0xff]
      %v403 = vld [vmem:[%s1 + $0x8] sm:$0xff]
      %s404 = scalar_lea.vmem %s381, 112
      %v405 = vld [vmem:[%s404] sm:$0xff]
      %v406 = vld [vmem:[%s404 + $0x8] sm:$0xff]
      %v407 = vld [vmem:[%s404 + $0x10] sm:$0xff]
      %v408 = vld [vmem:[%s404 + $0x18] sm:$0xff]
      %v409 = vld [vmem:[%s404 + $0x20] sm:$0xff]
      %v410 = vld [vmem:[%s404 + $0x28] sm:$0xff]
      %v411 = vld [vmem:[%s404 + $0x30] sm:$0xff]
      %v412 = vld [vmem:[%s404 + $0x38] sm:$0xff]
      %v413 = vld [vmem:[%s404 + $0x40] sm:$0xff]
      %v414 = vld [vmem:[%s404 + $0x48] sm:$0xff]
      %v415 = vld [vmem:[%s404 + $0x50] sm:$0xff]
      %v416 = vld [vmem:[%s404 + $0x58] sm:$0xff]
      %v417 = vld [vmem:[%s404 + $0x60] sm:$0xff]
      %v418 = vld [vmem:[%s404 + $0x68] sm:$0xff]
      %s419 = scalar_lea.vmem %s1, 16
      %v420 = vld [vmem:[%s419] sm:$0xff]
      %v421 = vld [vmem:[%s419 + $0x8] sm:$0xff]
      %vm422 = vcmask 130048
      %v424 = vsel %vm422, %v405, 0
      %v427 = vsel %vm422, %v406, 0
      %v430 = vsel %vm422, %v407, 0
      %v433 = vsel %vm422, %v408, 0
      %v436 = vsel %vm422, %v409, 0
      %v439 = vsel %vm422, %v410, 0
      %v442 = vsel %vm422, %v411, 0
      %v445 = vsel %vm422, %v412, 0
      %v448 = vsel %vm422, %v413, 0
      %v451 = vsel %vm422, %v414, 0
      %v454 = vsel %vm422, %v415, 0
      %v457 = vsel %vm422, %v416, 0
      %v460 = vsel %vm422, %v417, 0
      %v463 = vsel %vm422, %v418, 0
      %465 = vmatprep.subr.mxu0 0.0
      %466 = vmatpush1.msra.mxu0 %v420
      %467 = vmatprep.subr.mxu0 0.0
      %468 = vmatpush1.msra.mxu0 %v421
      %469 = vmatprep.subr.mxu0 0.0
      %470 = vmatpush1.msra.mxu0 0.0
      %471 = vmatprep.subr.mxu0 0.0
      %472 = vmatpush1.msra.mxu0 0.0
      %473 = vmatprep.subr.mxu0 0.0
      %474 = vmatpush1.msra.mxu0 0.0
      %475 = vmatprep.subr.mxu0 0.0
      %476 = vmatpush1.msra.mxu0 0.0
      %477 = vmatprep.subr.mxu0 0.0
      %478 = vmatpush1.msra.mxu0 0.0
      %479 = vmatprep.subr.mxu0 0.0
      %480 = vmatpush1.msra.mxu0 0.0
      %481 = vmatprep.subr.mxu0 0.0
      %482 = vmatpush1.msra.mxu0 0.0
      %483 = vmatprep.subr.mxu0 0.0
      %484 = vmatpush1.msra.mxu0 0.0
      %485 = vmatprep.subr.mxu0 0.0
      %486 = vmatpush1.msra.mxu0 0.0
      %487 = vmatprep.subr.mxu0 0.0
      %488 = vmatpush1.msra.mxu0 0.0
      %489 = vmatprep.subr.mxu0 0.0
      %490 = vmatpush1.msra.mxu0 0.0
      %491 = vmatprep.subr.mxu0 0.0
      %492 = vmatpush1.msra.mxu0 0.0
      %493 = vmatprep.subr.mxu0 0.0
      %494 = vmatpush1.msra.mxu0 0.0
      %495 = vmatprep.subr.mxu0 0.0
      %496 = vmatpush1.msra.mxu0 0.0
      %497 = vmatprep.subr.mxu0 0.0
      %498 = vmatpush1.msra.mxu0 0.0
      %499 = vmatprep.subr.mxu0 0.0
      %500 = vmatpush1.msra.mxu0 0.0
      %501 = vmatprep.subr.mxu0 0.0
      %502 = vmatpush1.msra.mxu0 0.0
      %503 = vmatprep.subr.mxu0 0.0
      %504 = vmatpush1.msra.mxu0 0.0
      %505 = vmatprep.subr.mxu0 0.0
      %506 = vmatpush1.msra.mxu0 0.0
      %507 = vmatprep.subr.mxu0 0.0
      %508 = vmatpush1.msra.mxu0 0.0
      %509 = vmatprep.subr.mxu0 0.0
      %510 = vmatpush1.msra.mxu0 0.0
      %511 = vmatprep.subr.mxu0 0.0
      %512 = vmatpush1.msra.mxu0 0.0
      %513 = vmatprep.subr.mxu0 0.0
      %514 = vmatpush1.msra.mxu0 0.0
      %515 = vmatprep.subr.mxu0 0.0
      %516 = vmatpush1.msra.mxu0 0.0
      %517 = vmatprep.subr.mxu0 0.0
      %518 = vmatpush1.msra.mxu0 0.0
      %519 = vmatprep.subr.mxu0 0.0
      %520 = vmatpush1.msra.mxu0 0.0
      %521 = vmatprep.subr.mxu0 0.0
      %522 = vmatpush1.msra.mxu0 0.0
      %523 = vmatprep.subr.mxu0 0.0
      %524 = vmatpush1.msra.mxu0 0.0
      %525 = vmatprep.subr.mxu0 0.0
      %526 = vmatpush1.msra.mxu0 0.0
      %527 = vmatprep.subr.mxu0 0.0
      %528 = vmatpush1.msra.mxu0 0.0
      %529 = vmatprep.mubr.f32.mxu0 0.0
      %530 = vmatmul.mubr.f32.gmra.mrb[0].mxu0 %v424
      %v531 = vpop.f32.mrb[0].mxu0
      %v532 = vadd.f32 0.0, %v531
      %v533 = vpop.f32.mrb[0].mxu0
      %534 = vmatprep.mubr.f32.mxu0 0.0
      %535 = vmatmul.mubr.f32.gmra.mrb[0].mxu0 %v427
      %v536 = vpop.f32.mrb[0].mxu0
      %v537 = vadd.f32 0.0, %v536
      %v538 = vpop.f32.mrb[0].mxu0
      %539 = vmatprep.mubr.f32.mxu0 0.0
      %540 = vmatmul.mubr.f32.gmra.mrb[0].mxu0 %v430
      %v541 = vpop.f32.mrb[0].mxu0
      %v542 = vadd.f32 0.0, %v541
      %v543 = vpop.f32.mrb[0].mxu0
      %544 = vmatprep.mubr.f32.mxu0 0.0
      %545 = vmatmul.mubr.f32.gmra.mrb[0].mxu0 %v433
      %v546 = vpop.f32.mrb[0].mxu0
      %v547 = vadd.f32 0.0, %v546
      %v548 = vpop.f32.mrb[0].mxu0
      %549 = vmatprep.mubr.f32.mxu0 0.0
      %550 = vmatmul.mubr.f32.gmra.mrb[0].mxu0 %v436
      %v551 = vpop.f32.mrb[0].mxu0
      %v552 = vadd.f32 0.0, %v551
      %v553 = vpop.f32.mrb[0].mxu0
      %554 = vmatprep.mubr.f32.mxu0 0.0
      %555 = vmatmul.mubr.f32.gmra.mrb[0].mxu0 %v439
      %v556 = vpop.f32.mrb[0].mxu0
      %v557 = vadd.f32 0.0, %v556
      %v558 = vpop.f32.mrb[0].mxu0
      %559 = vmatprep.mubr.f32.mxu0 0.0
      %560 = vmatmul.mubr.f32.gmra.mrb[0].mxu0 %v442
      %v561 = vpop.f32.mrb[0].mxu0
      %v562 = vadd.f32 0.0, %v561
      %v563 = vpop.f32.mrb[0].mxu0
      %564 = vmatprep.mubr.f32.mxu0 0.0
      %565 = vmatmul.mubr.f32.gmra.mrb[0].mxu0 %v445
      %v566 = vpop.f32.mrb[0].mxu0
      %v567 = vadd.f32 0.0, %v566
      %v568 = vpop.f32.mrb[0].mxu0
      %569 = vmatprep.mubr.f32.mxu0 0.0
      %570 = vmatmul.mubr.f32.gmra.mrb[0].mxu0 %v448
      %v571 = vpop.f32.mrb[0].mxu0
      %v572 = vadd.f32 0.0, %v571
      %v573 = vpop.f32.mrb[0].mxu0
      %574 = vmatprep.mubr.f32.mxu0 0.0
      %575 = vmatmul.mubr.f32.gmra.mrb[0].mxu0 %v451
      %v576 = vpop.f32.mrb[0].mxu0
      %v577 = vadd.f32 0.0, %v576
      %v578 = vpop.f32.mrb[0].mxu0
      %579 = vmatprep.mubr.f32.mxu0 0.0
      %580 = vmatmul.mubr.f32.gmra.mrb[0].mxu0 %v454
      %v581 = vpop.f32.mrb[0].mxu0
      %v582 = vadd.f32 0.0, %v581
      %v583 = vpop.f32.mrb[0].mxu0
      %584 = vmatprep.mubr.f32.mxu0 0.0
      %585 = vmatmul.mubr.f32.gmra.mrb[0].mxu0 %v457
      %v586 = vpop.f32.mrb[0].mxu0
      %v587 = vadd.f32 0.0, %v586
      %v588 = vpop.f32.mrb[0].mxu0
      %589 = vmatprep.mubr.f32.mxu0 0.0
      %590 = vmatmul.mubr.f32.gmra.mrb[0].mxu0 %v460
      %v591 = vpop.f32.mrb[0].mxu0
      %v592 = vadd.f32 0.0, %v591
      %v593 = vpop.f32.mrb[0].mxu0
      %594 = vmatprep.mubr.f32.mxu0 0.0
      %595 = vmatmul.mubr.f32.gmra.mrb[0].mxu0 %v463
      %v596 = vpop.f32.mrb[0].mxu0
      %v597 = vadd.f32 0.0, %v596
      %v598 = vpop.f32.mrb[0].mxu0
      %599 = vdwg.mxu0
      %v601 = vsel %vm422, %v388, 0
      %v604 = vsel %vm422, %v389, 0
      %v607 = vsel %vm422, %v390, 0
      %v610 = vsel %vm422, %v391, 0
      %v613 = vsel %vm422, %v392, 0
      %v616 = vsel %vm422, %v393, 0
      %v619 = vsel %vm422, %v394, 0
      %v622 = vsel %vm422, %v395, 0
      %v625 = vsel %vm422, %v396, 0
      %v628 = vsel %vm422, %v397, 0
      %v631 = vsel %vm422, %v398, 0
      %v634 = vsel %vm422, %v399, 0
      %v637 = vsel %vm422, %v400, 0
      %v640 = vsel %vm422, %v401, 0
      %642 = vmatprep.subr.mxu0 0.0
      %643 = vmatpush1.msra.mxu0 %v402
      %644 = vmatprep.subr.mxu0 0.0
      %645 = vmatpush1.msra.mxu0 %v403
      %646 = vmatprep.subr.mxu0 0.0
      %647 = vmatpush1.msra.mxu0 0.0
      %648 = vmatprep.subr.mxu0 0.0
      %649 = vmatpush1.msra.mxu0 0.0
      %650 = vmatprep.subr.mxu0 0.0
      %651 = vmatpush1.msra.mxu0 0.0
      %652 = vmatprep.subr.mxu0 0.0
      %653 = vmatpush1.msra.mxu0 0.0
      %654 = vmatprep.subr.mxu0 0.0
      %655 = vmatpush1.msra.mxu0 0.0
      %656 = vmatprep.subr.mxu0 0.0
      %657 = vmatpush1.msra.mxu0 0.0
      %658 = vmatprep.subr.mxu0 0.0
      %659 = vmatpush1.msra.mxu0 0.0
      %660 = vmatprep.subr.mxu0 0.0
      %661 = vmatpush1.msra.mxu0 0.0
      %662 = vmatprep.subr.mxu0 0.0
      %663 = vmatpush1.msra.mxu0 0.0
      %664 = vmatprep.subr.mxu0 0.0
      %665 = vmatpush1.msra.mxu0 0.0
      %666 = vmatprep.subr.mxu0 0.0
      %667 = vmatpush1.msra.mxu0 0.0
      %668 = vmatprep.subr.mxu0 0.0
      %669 = vmatpush1.msra.mxu0 0.0
      %670 = vmatprep.subr.mxu0 0.0
      %671 = vmatpush1.msra.mxu0 0.0
      %672 = vmatprep.subr.mxu0 0.0
      %673 = vmatpush1.msra.mxu0 0.0
      %674 = vmatprep.subr.mxu0 0.0
      %675 = vmatpush1.msra.mxu0 0.0
      %676 = vmatprep.subr.mxu0 0.0
      %677 = vmatpush1.msra.mxu0 0.0
      %678 = vmatprep.subr.mxu0 0.0
      %679 = vmatpush1.msra.mxu0 0.0
      %680 = vmatprep.subr.mxu0 0.0
      %681 = vmatpush1.msra.mxu0 0.0
      %682 = vmatprep.subr.mxu0 0.0
      %683 = vmatpush1.msra.mxu0 0.0
      %684 = vmatprep.subr.mxu0 0.0
      %685 = vmatpush1.msra.mxu0 0.0
      %686 = vmatprep.subr.mxu0 0.0
      %687 = vmatpush1.msra.mxu0 0.0
      %688 = vmatprep.subr.mxu0 0.0
      %689 = vmatpush1.msra.mxu0 0.0
      %690 = vmatprep.subr.mxu0 0.0
      %691 = vmatpush1.msra.mxu0 0.0
      %692 = vmatprep.subr.mxu0 0.0
      %693 = vmatpush1.msra.mxu0 0.0
      %694 = vmatprep.subr.mxu0 0.0
      %695 = vmatpush1.msra.mxu0 0.0
      %696 = vmatprep.subr.mxu0 0.0
      %697 = vmatpush1.msra.mxu0 0.0
      %698 = vmatprep.subr.mxu0 0.0
      %699 = vmatpush1.msra.mxu0 0.0
      %700 = vmatprep.subr.mxu0 0.0
      %701 = vmatpush1.msra.mxu0 0.0
      %702 = vmatprep.subr.mxu0 0.0
      %703 = vmatpush1.msra.mxu0 0.0
      %704 = vmatprep.subr.mxu0 0.0
      %705 = vmatpush1.msra.mxu0 0.0
      %706 = vmatprep.mubr.f32.mxu0 0.0
      %707 = vmatmul.mubr.f32.gmra.mrb[0].mxu0 %v601
      %v708 = vpop.f32.mrb[0].mxu0
      %v709 = vadd.f32 %v532, %v708
      %v710 = vpop.f32.mrb[0].mxu0
      %711 = vmatprep.mubr.f32.mxu0 0.0
      %712 = vmatmul.mubr.f32.gmra.mrb[0].mxu0 %v604
      %v713 = vpop.f32.mrb[0].mxu0
      %v714 = vadd.f32 %v537, %v713
      %v715 = vpop.f32.mrb[0].mxu0
      %716 = vmatprep.mubr.f32.mxu0 0.0
      %717 = vmatmul.mubr.f32.gmra.mrb[0].mxu0 %v607
      %v718 = vpop.f32.mrb[0].mxu0
      %v719 = vadd.f32 %v542, %v718
      %v720 = vpop.f32.mrb[0].mxu0
      %721 = vmatprep.mubr.f32.mxu0 0.0
      %722 = vmatmul.mubr.f32.gmra.mrb[0].mxu0 %v610
      %v723 = vpop.f32.mrb[0].mxu0
      %v724 = vadd.f32 %v547, %v723
      %v725 = vpop.f32.mrb[0].mxu0
      %726 = vmatprep.mubr.f32.mxu0 0.0
      %727 = vmatmul.mubr.f32.gmra.mrb[0].mxu0 %v613
      %v728 = vpop.f32.mrb[0].mxu0
      %v729 = vadd.f32 %v552, %v728
      %v730 = vpop.f32.mrb[0].mxu0
      %731 = vmatprep.mubr.f32.mxu0 0.0
      %732 = vmatmul.mubr.f32.gmra.mrb[0].mxu0 %v616
      %v733 = vpop.f32.mrb[0].mxu0
      %v734 = vadd.f32 %v557, %v733
      %v735 = vpop.f32.mrb[0].mxu0
      %736 = vmatprep.mubr.f32.mxu0 0.0
      %737 = vmatmul.mubr.f32.gmra.mrb[0].mxu0 %v619
      %v738 = vpop.f32.mrb[0].mxu0
      %v739 = vadd.f32 %v562, %v738
      %v740 = vpop.f32.mrb[0].mxu0
      %741 = vmatprep.mubr.f32.mxu0 0.0
      %742 = vmatmul.mubr.f32.gmra.mrb[0].mxu0 %v622
      %v743 = vpop.f32.mrb[0].mxu0
      %v744 = vadd.f32 %v567, %v743
      %v745 = vpop.f32.mrb[0].mxu0
      %746 = vmatprep.mubr.f32.mxu0 0.0
      %747 = vmatmul.mubr.f32.gmra.mrb[0].mxu0 %v625
      %v748 = vpop.f32.mrb[0].mxu0
      %v749 = vadd.f32 %v572, %v748
      %v750 = vpop.f32.mrb[0].mxu0
      %751 = vmatprep.mubr.f32.mxu0 0.0
      %752 = vmatmul.mubr.f32.gmra.mrb[0].mxu0 %v628
      %v753 = vpop.f32.mrb[0].mxu0
      %v754 = vadd.f32 %v577, %v753
      %v755 = vpop.f32.mrb[0].mxu0
      %756 = vmatprep.mubr.f32.mxu0 0.0
      %757 = vmatmul.mubr.f32.gmra.mrb[0].mxu0 %v631
      %v758 = vpop.f32.mrb[0].mxu0
      %v759 = vadd.f32 %v582, %v758
      %v760 = vpop.f32.mrb[0].mxu0
      %761 = vmatprep.mubr.f32.mxu0 0.0
      %762 = vmatmul.mubr.f32.gmra.mrb[0].mxu0 %v634
      %v763 = vpop.f32.mrb[0].mxu0
      %v764 = vadd.f32 %v587, %v763
      %v765 = vpop.f32.mrb[0].mxu0
      %766 = vmatprep.mubr.f32.mxu0 0.0
      %767 = vmatmul.mubr.f32.gmra.mrb[0].mxu0 %v637
      %v768 = vpop.f32.mrb[0].mxu0
      %v769 = vadd.f32 %v592, %v768
      %v770 = vpop.f32.mrb[0].mxu0
      %771 = vmatprep.mubr.f32.mxu0 0.0
      %772 = vmatmul.mubr.f32.gmra.mrb[0].mxu0 %v640
      %v773 = vpop.f32.mrb[0].mxu0
      %v774 = vadd.f32 %v597, %v773
      %v775 = vpop.f32.mrb[0].mxu0
      %776 = vdwg.mxu0
      %s777 = scalar_lea.vmem %s381, 224
      %v778 = vld [vmem:[%s777] sm:$0xff]
      %v779 = vld [vmem:[%s777 + $0x8] sm:$0xff]
      %v780 = vld [vmem:[%s777 + $0x10] sm:$0xff]
      %v781 = vld [vmem:[%s777 + $0x18] sm:$0xff]
      %v782 = vld [vmem:[%s777 + $0x20] sm:$0xff]
      %v783 = vld [vmem:[%s777 + $0x28] sm:$0xff]
      %v784 = vld [vmem:[%s777 + $0x30] sm:$0xff]
      %v785 = vld [vmem:[%s777 + $0x38] sm:$0xff]
      %v786 = vld [vmem:[%s777 + $0x40] sm:$0xff]
      %v787 = vld [vmem:[%s777 + $0x48] sm:$0xff]
      %v788 = vld [vmem:[%s777 + $0x50] sm:$0xff]
      %v789 = vld [vmem:[%s777 + $0x58] sm:$0xff]
      %v790 = vld [vmem:[%s777 + $0x60] sm:$0xff]
      %v791 = vld [vmem:[%s777 + $0x68] sm:$0xff]
      %s792 = scalar_lea.vmem %s1, 32
      %v793 = vld [vmem:[%s792] sm:$0xff]
      %v794 = vld [vmem:[%s792 + $0x8] sm:$0xff]
      %v796 = vsel %vm422, %v778, 0
      %v799 = vsel %vm422, %v779, 0
      %v802 = vsel %vm422, %v780, 0
      %v805 = vsel %vm422, %v781, 0
      %v808 = vsel %vm422, %v782, 0
      %v811 = vsel %vm422, %v783, 0
      %v814 = vsel %vm422, %v784, 0
      %v817 = vsel %vm422, %v785, 0
      %v820 = vsel %vm422, %v786, 0
      %v823 = vsel %vm422, %v787, 0
      %v826 = vsel %vm422, %v788, 0
      %v829 = vsel %vm422, %v789, 0
      %v832 = vsel %vm422, %v790, 0
      %v835 = vsel %vm422, %v791, 0
      %837 = vmatprep.subr.mxu0 0.0
      %838 = vmatpush1.msra.mxu0 %v793
      %839 = vmatprep.subr.mxu0 0.0
      %840 = vmatpush1.msra.mxu0 %v794
      %841 = vmatprep.subr.mxu0 0.0
      %842 = vmatpush1.msra.mxu0 0.0
      %843 = vmatprep.subr.mxu0 0.0
      %844 = vmatpush1.msra.mxu0 0.0
      %845 = vmatprep.subr.mxu0 0.0
      %846 = vmatpush1.msra.mxu0 0.0
      %847 = vmatprep.subr.mxu0 0.0
      %848 = vmatpush1.msra.mxu0 0.0
      %849 = vmatprep.subr.mxu0 0.0
      %850 = vmatpush1.msra.mxu0 0.0
      %851 = vmatprep.subr.mxu0 0.0
      %852 = vmatpush1.msra.mxu0 0.0
      %853 = vmatprep.subr.mxu0 0.0
      %854 = vmatpush1.msra.mxu0 0.0
      %855 = vmatprep.subr.mxu0 0.0
      %856 = vmatpush1.msra.mxu0 0.0
      %857 = vmatprep.subr.mxu0 0.0
      %858 = vmatpush1.msra.mxu0 0.0
      %859 = vmatprep.subr.mxu0 0.0
      %860 = vmatpush1.msra.mxu0 0.0
      %861 = vmatprep.subr.mxu0 0.0
      %862 = vmatpush1.msra.mxu0 0.0
      %863 = vmatprep.subr.mxu0 0.0
      %864 = vmatpush1.msra.mxu0 0.0
      %865 = vmatprep.subr.mxu0 0.0
      %866 = vmatpush1.msra.mxu0 0.0
      %867 = vmatprep.subr.mxu0 0.0
      %868 = vmatpush1.msra.mxu0 0.0
      %869 = vmatprep.subr.mxu0 0.0
      %870 = vmatpush1.msra.mxu0 0.0
      %871 = vmatprep.subr.mxu0 0.0
      %872 = vmatpush1.msra.mxu0 0.0
      %873 = vmatprep.subr.mxu0 0.0
      %874 = vmatpush1.msra.mxu0 0.0
      %875 = vmatprep.subr.mxu0 0.0
      %876 = vmatpush1.msra.mxu0 0.0
      %877 = vmatprep.subr.mxu0 0.0
      %878 = vmatpush1.msra.mxu0 0.0
      %879 = vmatprep.subr.mxu0 0.0
      %880 = vmatpush1.msra.mxu0 0.0
      %881 = vmatprep.subr.mxu0 0.0
      %882 = vmatpush1.msra.mxu0 0.0
      %883 = vmatprep.subr.mxu0 0.0
      %884 = vmatpush1.msra.mxu0 0.0
      %885 = vmatprep.subr.mxu0 0.0
      %886 = vmatpush1.msra.mxu0 0.0
      %887 = vmatprep.subr.mxu0 0.0
      %888 = vmatpush1.msra.mxu0 0.0
      %889 = vmatprep.subr.mxu0 0.0
      %890 = vmatpush1.msra.mxu0 0.0
      %891 = vmatprep.subr.mxu0 0.0
      %892 = vmatpush1.msra.mxu0 0.0
      %893 = vmatprep.subr.mxu0 0.0
      %894 = vmatpush1.msra.mxu0 0.0
      %895 = vmatprep.subr.mxu0 0.0
      %896 = vmatpush1.msra.mxu0 0.0
      %897 = vmatprep.subr.mxu0 0.0
      %898 = vmatpush1.msra.mxu0 0.0
      %899 = vmatprep.subr.mxu0 0.0
      %900 = vmatpush1.msra.mxu0 0.0
      %901 = vmatprep.mubr.f32.mxu0 0.0
      %902 = vmatmul.mubr.f32.gmra.mrb[0].mxu0 %v796
      %v903 = vpop.f32.mrb[0].mxu0
      %v904 = vadd.f32 0.0, %v903
      %v905 = vpop.f32.mrb[0].mxu0
      %906 = vmatprep.mubr.f32.mxu0 0.0
      %907 = vmatmul.mubr.f32.gmra.mrb[0].mxu0 %v799
      %v908 = vpop.f32.mrb[0].mxu0
      %v909 = vadd.f32 0.0, %v908
      %v910 = vpop.f32.mrb[0].mxu0
      %911 = vmatprep.mubr.f32.mxu0 0.0
      %912 = vmatmul.mubr.f32.gmra.mrb[0].mxu0 %v802
      %v913 = vpop.f32.mrb[0].mxu0
      %v914 = vadd.f32 0.0, %v913
      %v915 = vpop.f32.mrb[0].mxu0
      %916 = vmatprep.mubr.f32.mxu0 0.0
      %917 = vmatmul.mubr.f32.gmra.mrb[0].mxu0 %v805
      %v918 = vpop.f32.mrb[0].mxu0
      %v919 = vadd.f32 0.0, %v918
      %v920 = vpop.f32.mrb[0].mxu0
      %921 = vmatprep.mubr.f32.mxu0 0.0
      %922 = vmatmul.mubr.f32.gmra.mrb[0].mxu0 %v808
      %v923 = vpop.f32.mrb[0].mxu0
      %v924 = vadd.f32 0.0, %v923
      %v925 = vpop.f32.mrb[0].mxu0
      %926 = vmatprep.mubr.f32.mxu0 0.0
      %927 = vmatmul.mubr.f32.gmra.mrb[0].mxu0 %v811
      %v928 = vpop.f32.mrb[0].mxu0
      %v929 = vadd.f32 0.0, %v928
      %v930 = vpop.f32.mrb[0].mxu0
      %931 = vmatprep.mubr.f32.mxu0 0.0
      %932 = vmatmul.mubr.f32.gmra.mrb[0].mxu0 %v814
      %v933 = vpop.f32.mrb[0].mxu0
      %v934 = vadd.f32 0.0, %v933
      %v935 = vpop.f32.mrb[0].mxu0
      %936 = vmatprep.mubr.f32.mxu0 0.0
      %937 = vmatmul.mubr.f32.gmra.mrb[0].mxu0 %v817
      %v938 = vpop.f32.mrb[0].mxu0
      %v939 = vadd.f32 0.0, %v938
      %v940 = vpop.f32.mrb[0].mxu0
      %941 = vmatprep.mubr.f32.mxu0 0.0
      %942 = vmatmul.mubr.f32.gmra.mrb[0].mxu0 %v820
      %v943 = vpop.f32.mrb[0].mxu0
      %v944 = vadd.f32 0.0, %v943
      %v945 = vpop.f32.mrb[0].mxu0
      %946 = vmatprep.mubr.f32.mxu0 0.0
      %947 = vmatmul.mubr.f32.gmra.mrb[0].mxu0 %v823
      %v948 = vpop.f32.mrb[0].mxu0
      %v949 = vadd.f32 0.0, %v948
      %v950 = vpop.f32.mrb[0].mxu0
      %951 = vmatprep.mubr.f32.mxu0 0.0
      %952 = vmatmul.mubr.f32.gmra.mrb[0].mxu0 %v826
      %v953 = vpop.f32.mrb[0].mxu0
      %v954 = vadd.f32 0.0, %v953
      %v955 = vpop.f32.mrb[0].mxu0
      %956 = vmatprep.mubr.f32.mxu0 0.0
      %957 = vmatmul.mubr.f32.gmra.mrb[0].mxu0 %v829
      %v958 = vpop.f32.mrb[0].mxu0
      %v959 = vadd.f32 0.0, %v958
      %v960 = vpop.f32.mrb[0].mxu0
      %961 = vmatprep.mubr.f32.mxu0 0.0
      %962 = vmatmul.mubr.f32.gmra.mrb[0].mxu0 %v832
      %v963 = vpop.f32.mrb[0].mxu0
      %v964 = vadd.f32 0.0, %v963
      %v965 = vpop.f32.mrb[0].mxu0
      %966 = vmatprep.mubr.f32.mxu0 0.0
      %967 = vmatmul.mubr.f32.gmra.mrb[0].mxu0 %v835
      %v968 = vpop.f32.mrb[0].mxu0
      %v969 = vadd.f32 0.0, %v968
      %v970 = vpop.f32.mrb[0].mxu0
      %971 = vdwg.mxu0
      %v972 = vadd.f32 %v709, %v904
      %v973 = vadd.f32 %v714, %v909
      %v974 = vadd.f32 %v719, %v914
      %v975 = vadd.f32 %v724, %v919
      %v976 = vadd.f32 %v729, %v924
      %v977 = vadd.f32 %v734, %v929
      %v978 = vadd.f32 %v739, %v934
      %v979 = vadd.f32 %v744, %v939
      %v980 = vadd.f32 %v749, %v944
      %v981 = vadd.f32 %v754, %v949
      %v982 = vadd.f32 %v759, %v954
      %v983 = vadd.f32 %v764, %v959
      %v984 = vadd.f32 %v769, %v964
      %v985 = vadd.f32 %v774, %v969
      %986 = vmatprep.subr.mxu0 0.0
      %987 = vmatpush1.msra.mxu0 %v420
      %988 = vmatprep.subr.mxu0 0.0
      %989 = vmatpush1.msra.mxu0 %v421
      %990 = vmatprep.subr.mxu0 0.0
      %991 = vmatpush1.msra.mxu0 0.0
      %992 = vmatprep.subr.mxu0 0.0
      %993 = vmatpush1.msra.mxu0 0.0
      %994 = vmatprep.subr.mxu0 0.0
      %995 = vmatpush1.msra.mxu0 0.0
      %996 = vmatprep.subr.mxu0 0.0
      %997 = vmatpush1.msra.mxu0 0.0
      %998 = vmatprep.subr.mxu0 0.0
      %999 = vmatpush1.msra.mxu0 0.0
      %1000 = vmatprep.subr.mxu0 0.0
      %1001 = vmatpush1.msra.mxu0 0.0
      %1002 = vmatprep.subr.mxu0 0.0
      %1003 = vmatpush1.msra.mxu0 0.0
      %1004 = vmatprep.subr.mxu0 0.0
      %1005 = vmatpush1.msra.mxu0 0.0
      %1006 = vmatprep.subr.mxu0 0.0
      %1007 = vmatpush1.msra.mxu0 0.0
      %1008 = vmatprep.subr.mxu0 0.0
      %1009 = vmatpush1.msra.mxu0 0.0
      %1010 = vmatprep.subr.mxu0 0.0
      %1011 = vmatpush1.msra.mxu0 0.0
      %1012 = vmatprep.subr.mxu0 0.0
      %1013 = vmatpush1.msra.mxu0 0.0
      %1014 = vmatprep.subr.mxu0 0.0
      %1015 = vmatpush1.msra.mxu0 0.0
      %1016 = vmatprep.subr.mxu0 0.0
      %1017 = vmatpush1.msra.mxu0 0.0
      %1018 = vmatprep.subr.mxu0 0.0
      %1019 = vmatpush1.msra.mxu0 0.0
      %1020 = vmatprep.subr.mxu0 0.0
      %1021 = vmatpush1.msra.mxu0 0.0
      %1022 = vmatprep.subr.mxu0 0.0
      %1023 = vmatpush1.msra.mxu0 0.0
      %1024 = vmatprep.subr.mxu0 0.0
      %1025 = vmatpush1.msra.mxu0 0.0
      %1026 = vmatprep.subr.mxu0 0.0
      %1027 = vmatpush1.msra.mxu0 0.0
      %1028 = vmatprep.subr.mxu0 0.0
      %1029 = vmatpush1.msra.mxu0 0.0
      %1030 = vmatprep.subr.mxu0 0.0
      %1031 = vmatpush1.msra.mxu0 0.0
      %1032 = vmatprep.subr.mxu0 0.0
      %1033 = vmatpush1.msra.mxu0 0.0
      %1034 = vmatprep.subr.mxu0 0.0
      %1035 = vmatpush1.msra.mxu0 0.0
      %1036 = vmatprep.subr.mxu0 0.0
      %1037 = vmatpush1.msra.mxu0 0.0
      %1038 = vmatprep.subr.mxu0 0.0
      %1039 = vmatpush1.msra.mxu0 0.0
      %1040 = vmatprep.subr.mxu0 0.0
      %1041 = vmatpush1.msra.mxu0 0.0
      %1042 = vmatprep.subr.mxu0 0.0
      %1043 = vmatpush1.msra.mxu0 0.0
      %1044 = vmatprep.subr.mxu0 0.0
      %1045 = vmatpush1.msra.mxu0 0.0
      %1046 = vmatprep.subr.mxu0 0.0
      %1047 = vmatpush1.msra.mxu0 0.0
      %1048 = vmatprep.subr.mxu0 0.0
      %1049 = vmatpush1.msra.mxu0 0.0
      %1050 = vmatprep.mubr.f32.mxu0 0.0
      %1051 = vmatmul.mubr.f32.gmra.mrb[0].mxu0 %v796
      %v1052 = vpop.f32.mrb[0].mxu0
      %v1053 = vadd.f32 0.0, %v1052
      %v1054 = vpop.f32.mrb[0].mxu0
      %1055 = vmatprep.mubr.f32.mxu0 0.0
      %1056 = vmatmul.mubr.f32.gmra.mrb[0].mxu0 %v799
      %v1057 = vpop.f32.mrb[0].mxu0
      %v1058 = vadd.f32 0.0, %v1057
      %v1059 = vpop.f32.mrb[0].mxu0
      %1060 = vmatprep.mubr.f32.mxu0 0.0
      %1061 = vmatmul.mubr.f32.gmra.mrb[0].mxu0 %v802
      %v1062 = vpop.f32.mrb[0].mxu0
      %v1063 = vadd.f32 0.0, %v1062
      %v1064 = vpop.f32.mrb[0].mxu0
      %1065 = vmatprep.mubr.f32.mxu0 0.0
      %1066 = vmatmul.mubr.f32.gmra.mrb[0].mxu0 %v805
      %v1067 = vpop.f32.mrb[0].mxu0
      %v1068 = vadd.f32 0.0, %v1067
      %v1069 = vpop.f32.mrb[0].mxu0
      %1070 = vmatprep.mubr.f32.mxu0 0.0
      %1071 = vmatmul.mubr.f32.gmra.mrb[0].mxu0 %v808
      %v1072 = vpop.f32.mrb[0].mxu0
      %v1073 = vadd.f32 0.0, %v1072
      %v1074 = vpop.f32.mrb[0].mxu0
      %1075 = vmatprep.mubr.f32.mxu0 0.0
      %1076 = vmatmul.mubr.f32.gmra.mrb[0].mxu0 %v811
      %v1077 = vpop.f32.mrb[0].mxu0
      %v1078 = vadd.f32 0.0, %v1077
      %v1079 = vpop.f32.mrb[0].mxu0
      %1080 = vmatprep.mubr.f32.mxu0 0.0
      %1081 = vmatmul.mubr.f32.gmra.mrb[0].mxu0 %v814
      %v1082 = vpop.f32.mrb[0].mxu0
      %v1083 = vadd.f32 0.0, %v1082
      %v1084 = vpop.f32.mrb[0].mxu0
      %1085 = vmatprep.mubr.f32.mxu0 0.0
      %1086 = vmatmul.mubr.f32.gmra.mrb[0].mxu0 %v817
      %v1087 = vpop.f32.mrb[0].mxu0
      %v1088 = vadd.f32 0.0, %v1087
      %v1089 = vpop.f32.mrb[0].mxu0
      %1090 = vmatprep.mubr.f32.mxu0 0.0
      %1091 = vmatmul.mubr.f32.gmra.mrb[0].mxu0 %v820
      %v1092 = vpop.f32.mrb[0].mxu0
      %v1093 = vadd.f32 0.0, %v1092
      %v1094 = vpop.f32.mrb[0].mxu0
      %1095 = vmatprep.mubr.f32.mxu0 0.0
      %1096 = vmatmul.mubr.f32.gmra.mrb[0].mxu0 %v823
      %v1097 = vpop.f32.mrb[0].mxu0
      %v1098 = vadd.f32 0.0, %v1097
      %v1099 = vpop.f32.mrb[0].mxu0
      %1100 = vmatprep.mubr.f32.mxu0 0.0
      %1101 = vmatmul.mubr.f32.gmra.mrb[0].mxu0 %v826
      %v1102 = vpop.f32.mrb[0].mxu0
      %v1103 = vadd.f32 0.0, %v1102
      %v1104 = vpop.f32.mrb[0].mxu0
      %1105 = vmatprep.mubr.f32.mxu0 0.0
      %1106 = vmatmul.mubr.f32.gmra.mrb[0].mxu0 %v829
      %v1107 = vpop.f32.mrb[0].mxu0
      %v1108 = vadd.f32 0.0, %v1107
      %v1109 = vpop.f32.mrb[0].mxu0
      %1110 = vmatprep.mubr.f32.mxu0 0.0
      %1111 = vmatmul.mubr.f32.gmra.mrb[0].mxu0 %v832
      %v1112 = vpop.f32.mrb[0].mxu0
      %v1113 = vadd.f32 0.0, %v1112
      %v1114 = vpop.f32.mrb[0].mxu0
      %1115 = vmatprep.mubr.f32.mxu0 0.0
      %1116 = vmatmul.mubr.f32.gmra.mrb[0].mxu0 %v835
      %v1117 = vpop.f32.mrb[0].mxu0
      %v1118 = vadd.f32 0.0, %v1117
      %v1119 = vpop.f32.mrb[0].mxu0
      %1120 = vdwg.mxu0
      %1121 = vmatprep.subr.mxu0 0.0
      %1122 = vmatpush1.msra.mxu0 %v402
      %1123 = vmatprep.subr.mxu0 0.0
      %1124 = vmatpush1.msra.mxu0 %v403
      %1125 = vmatprep.subr.mxu0 0.0
      %1126 = vmatpush1.msra.mxu0 0.0
      %1127 = vmatprep.subr.mxu0 0.0
      %1128 = vmatpush1.msra.mxu0 0.0
      %1129 = vmatprep.subr.mxu0 0.0
      %1130 = vmatpush1.msra.mxu0 0.0
      %1131 = vmatprep.subr.mxu0 0.0
      %1132 = vmatpush1.msra.mxu0 0.0
      %1133 = vmatprep.subr.mxu0 0.0
      %1134 = vmatpush1.msra.mxu0 0.0
      %1135 = vmatprep.subr.mxu0 0.0
      %1136 = vmatpush1.msra.mxu0 0.0
      %1137 = vmatprep.subr.mxu0 0.0
      %1138 = vmatpush1.msra.mxu0 0.0
      %1139 = vmatprep.subr.mxu0 0.0
      %1140 = vmatpush1.msra.mxu0 0.0
      %1141 = vmatprep.subr.mxu0 0.0
      %1142 = vmatpush1.msra.mxu0 0.0
      %1143 = vmatprep.subr.mxu0 0.0
      %1144 = vmatpush1.msra.mxu0 0.0
      %1145 = vmatprep.subr.mxu0 0.0
      %1146 = vmatpush1.msra.mxu0 0.0
      %1147 = vmatprep.subr.mxu0 0.0
      %1148 = vmatpush1.msra.mxu0 0.0
      %1149 = vmatprep.subr.mxu0 0.0
      %1150 = vmatpush1.msra.mxu0 0.0
      %1151 = vmatprep.subr.mxu0 0.0
      %1152 = vmatpush1.msra.mxu0 0.0
      %1153 = vmatprep.subr.mxu0 0.0
      %1154 = vmatpush1.msra.mxu0 0.0
      %1155 = vmatprep.subr.mxu0 0.0
      %1156 = vmatpush1.msra.mxu0 0.0
      %1157 = vmatprep.subr.mxu0 0.0
      %1158 = vmatpush1.msra.mxu0 0.0
      %1159 = vmatprep.subr.mxu0 0.0
      %1160 = vmatpush1.msra.mxu0 0.0
      %1161 = vmatprep.subr.mxu0 0.0
      %1162 = vmatpush1.msra.mxu0 0.0
      %1163 = vmatprep.subr.mxu0 0.0
      %1164 = vmatpush1.msra.mxu0 0.0
      %1165 = vmatprep.subr.mxu0 0.0
      %1166 = vmatpush1.msra.mxu0 0.0
      %1167 = vmatprep.subr.mxu0 0.0
      %1168 = vmatpush1.msra.mxu0 0.0
      %1169 = vmatprep.subr.mxu0 0.0
      %1170 = vmatpush1.msra.mxu0 0.0
      %1171 = vmatprep.subr.mxu0 0.0
      %1172 = vmatpush1.msra.mxu0 0.0
      %1173 = vmatprep.subr.mxu0 0.0
      %1174 = vmatpush1.msra.mxu0 0.0
      %1175 = vmatprep.subr.mxu0 0.0
      %1176 = vmatpush1.msra.mxu0 0.0
      %1177 = vmatprep.subr.mxu0 0.0
      %1178 = vmatpush1.msra.mxu0 0.0
      %1179 = vmatprep.subr.mxu0 0.0
      %1180 = vmatpush1.msra.mxu0 0.0
      %1181 = vmatprep.subr.mxu0 0.0
      %1182 = vmatpush1.msra.mxu0 0.0
      %1183 = vmatprep.subr.mxu0 0.0
      %1184 = vmatpush1.msra.mxu0 0.0
      %1185 = vmatprep.mubr.f32.mxu0 0.0
      %1186 = vmatmul.mubr.f32.gmra.mrb[0].mxu0 %v424
      %v1187 = vpop.f32.mrb[0].mxu0
      %v1188 = vadd.f32 %v1053, %v1187
      %v1189 = vpop.f32.mrb[0].mxu0
      %1190 = vmatprep.mubr.f32.mxu0 0.0
      %1191 = vmatmul.mubr.f32.gmra.mrb[0].mxu0 %v427
      %v1192 = vpop.f32.mrb[0].mxu0
      %v1193 = vadd.f32 %v1058, %v1192
      %v1194 = vpop.f32.mrb[0].mxu0
      %1195 = vmatprep.mubr.f32.mxu0 0.0
      %1196 = vmatmul.mubr.f32.gmra.mrb[0].mxu0 %v430
      %v1197 = vpop.f32.mrb[0].mxu0
      %v1198 = vadd.f32 %v1063, %v1197
      %v1199 = vpop.f32.mrb[0].mxu0
      %1200 = vmatprep.mubr.f32.mxu0 0.0
      %1201 = vmatmul.mubr.f32.gmra.mrb[0].mxu0 %v433
      %v1202 = vpop.f32.mrb[0].mxu0
      %v1203 = vadd.f32 %v1068, %v1202
      %v1204 = vpop.f32.mrb[0].mxu0
      %1205 = vmatprep.mubr.f32.mxu0 0.0
      %1206 = vmatmul.mubr.f32.gmra.mrb[0].mxu0 %v436
      %v1207 = vpop.f32.mrb[0].mxu0
      %v1208 = vadd.f32 %v1073, %v1207
      %v1209 = vpop.f32.mrb[0].mxu0
      %1210 = vmatprep.mubr.f32.mxu0 0.0
      %1211 = vmatmul.mubr.f32.gmra.mrb[0].mxu0 %v439
      %v1212 = vpop.f32.mrb[0].mxu0
      %v1213 = vadd.f32 %v1078, %v1212
      %v1214 = vpop.f32.mrb[0].mxu0
      %1215 = vmatprep.mubr.f32.mxu0 0.0
      %1216 = vmatmul.mubr.f32.gmra.mrb[0].mxu0 %v442
      %v1217 = vpop.f32.mrb[0].mxu0
      %v1218 = vadd.f32 %v1083, %v1217
      %v1219 = vpop.f32.mrb[0].mxu0
      %1220 = vmatprep.mubr.f32.mxu0 0.0
      %1221 = vmatmul.mubr.f32.gmra.mrb[0].mxu0 %v445
      %v1222 = vpop.f32.mrb[0].mxu0
      %v1223 = vadd.f32 %v1088, %v1222
      %v1224 = vpop.f32.mrb[0].mxu0
      %1225 = vmatprep.mubr.f32.mxu0 0.0
      %1226 = vmatmul.mubr.f32.gmra.mrb[0].mxu0 %v448
      %v1227 = vpop.f32.mrb[0].mxu0
      %v1228 = vadd.f32 %v1093, %v1227
      %v1229 = vpop.f32.mrb[0].mxu0
      %1230 = vmatprep.mubr.f32.mxu0 0.0
      %1231 = vmatmul.mubr.f32.gmra.mrb[0].mxu0 %v451
      %v1232 = vpop.f32.mrb[0].mxu0
      %v1233 = vadd.f32 %v1098, %v1232
      %v1234 = vpop.f32.mrb[0].mxu0
      %1235 = vmatprep.mubr.f32.mxu0 0.0
      %1236 = vmatmul.mubr.f32.gmra.mrb[0].mxu0 %v454
      %v1237 = vpop.f32.mrb[0].mxu0
      %v1238 = vadd.f32 %v1103, %v1237
      %v1239 = vpop.f32.mrb[0].mxu0
      %1240 = vmatprep.mubr.f32.mxu0 0.0
      %1241 = vmatmul.mubr.f32.gmra.mrb[0].mxu0 %v457
      %v1242 = vpop.f32.mrb[0].mxu0
      %v1243 = vadd.f32 %v1108, %v1242
      %v1244 = vpop.f32.mrb[0].mxu0
      %1245 = vmatprep.mubr.f32.mxu0 0.0
      %1246 = vmatmul.mubr.f32.gmra.mrb[0].mxu0 %v460
      %v1247 = vpop.f32.mrb[0].mxu0
      %v1248 = vadd.f32 %v1113, %v1247
      %v1249 = vpop.f32.mrb[0].mxu0
      %1250 = vmatprep.mubr.f32.mxu0 0.0
      %1251 = vmatmul.mubr.f32.gmra.mrb[0].mxu0 %v463
      %v1252 = vpop.f32.mrb[0].mxu0
      %v1253 = vadd.f32 %v1118, %v1252
      %v1254 = vpop.f32.mrb[0].mxu0
      %1255 = vdwg.mxu0
      %s1256 = scalar_lea.vmem %s381, 336
      %v1257 = vld [vmem:[%s1256] sm:$0xff]
      %v1258 = vld [vmem:[%s1256 + $0x8] sm:$0xff]
      %v1259 = vld [vmem:[%s1256 + $0x10] sm:$0xff]
      %v1260 = vld [vmem:[%s1256 + $0x18] sm:$0xff]
      %v1261 = vld [vmem:[%s1256 + $0x20] sm:$0xff]
      %v1262 = vld [vmem:[%s1256 + $0x28] sm:$0xff]
      %v1263 = vld [vmem:[%s1256 + $0x30] sm:$0xff]
      %v1264 = vld [vmem:[%s1256 + $0x38] sm:$0xff]
      %v1265 = vld [vmem:[%s1256 + $0x40] sm:$0xff]
      %v1266 = vld [vmem:[%s1256 + $0x48] sm:$0xff]
      %v1267 = vld [vmem:[%s1256 + $0x50] sm:$0xff]
      %v1268 = vld [vmem:[%s1256 + $0x58] sm:$0xff]
      %v1269 = vld [vmem:[%s1256 + $0x60] sm:$0xff]
      %v1270 = vld [vmem:[%s1256 + $0x68] sm:$0xff]
      %v1272 = vsel %vm422, %v1257, 0
      %v1275 = vsel %vm422, %v1258, 0
      %v1278 = vsel %vm422, %v1259, 0
      %v1281 = vsel %vm422, %v1260, 0
      %v1284 = vsel %vm422, %v1261, 0
      %v1287 = vsel %vm422, %v1262, 0
      %v1290 = vsel %vm422, %v1263, 0
      %v1293 = vsel %vm422, %v1264, 0
      %v1296 = vsel %vm422, %v1265, 0
      %v1299 = vsel %vm422, %v1266, 0
      %v1302 = vsel %vm422, %v1267, 0
      %v1305 = vsel %vm422, %v1268, 0
      %v1308 = vsel %vm422, %v1269, 0
      %v1311 = vsel %vm422, %v1270, 0
      %1313 = vmatprep.subr.mxu0 0.0
      %1314 = vmatpush1.msra.mxu0 %v793
      %1315 = vmatprep.subr.mxu0 0.0
      %1316 = vmatpush1.msra.mxu0 %v794
      %1317 = vmatprep.subr.mxu0 0.0
      %1318 = vmatpush1.msra.mxu0 0.0
      %1319 = vmatprep.subr.mxu0 0.0
      %1320 = vmatpush1.msra.mxu0 0.0
      %1321 = vmatprep.subr.mxu0 0.0
      %1322 = vmatpush1.msra.mxu0 0.0
      %1323 = vmatprep.subr.mxu0 0.0
      %1324 = vmatpush1.msra.mxu0 0.0
      %1325 = vmatprep.subr.mxu0 0.0
      %1326 = vmatpush1.msra.mxu0 0.0
      %1327 = vmatprep.subr.mxu0 0.0
      %1328 = vmatpush1.msra.mxu0 0.0
      %1329 = vmatprep.subr.mxu0 0.0
      %1330 = vmatpush1.msra.mxu0 0.0
      %1331 = vmatprep.subr.mxu0 0.0
      %1332 = vmatpush1.msra.mxu0 0.0
      %1333 = vmatprep.subr.mxu0 0.0
      %1334 = vmatpush1.msra.mxu0 0.0
      %1335 = vmatprep.subr.mxu0 0.0
      %1336 = vmatpush1.msra.mxu0 0.0
      %1337 = vmatprep.subr.mxu0 0.0
      %1338 = vmatpush1.msra.mxu0 0.0
      %1339 = vmatprep.subr.mxu0 0.0
      %1340 = vmatpush1.msra.mxu0 0.0
      %1341 = vmatprep.subr.mxu0 0.0
      %1342 = vmatpush1.msra.mxu0 0.0
      %1343 = vmatprep.subr.mxu0 0.0
      %1344 = vmatpush1.msra.mxu0 0.0
      %1345 = vmatprep.subr.mxu0 0.0
      %1346 = vmatpush1.msra.mxu0 0.0
      %1347 = vmatprep.subr.mxu0 0.0
      %1348 = vmatpush1.msra.mxu0 0.0
      %1349 = vmatprep.subr.mxu0 0.0
      %1350 = vmatpush1.msra.mxu0 0.0
      %1351 = vmatprep.subr.mxu0 0.0
      %1352 = vmatpush1.msra.mxu0 0.0
      %1353 = vmatprep.subr.mxu0 0.0
      %1354 = vmatpush1.msra.mxu0 0.0
      %1355 = vmatprep.subr.mxu0 0.0
      %1356 = vmatpush1.msra.mxu0 0.0
      %1357 = vmatprep.subr.mxu0 0.0
      %1358 = vmatpush1.msra.mxu0 0.0
      %1359 = vmatprep.subr.mxu0 0.0
      %1360 = vmatpush1.msra.mxu0 0.0
      %1361 = vmatprep.subr.mxu0 0.0
      %1362 = vmatpush1.msra.mxu0 0.0
      %1363 = vmatprep.subr.mxu0 0.0
      %1364 = vmatpush1.msra.mxu0 0.0
      %1365 = vmatprep.subr.mxu0 0.0
      %1366 = vmatpush1.msra.mxu0 0.0
      %1367 = vmatprep.subr.mxu0 0.0
      %1368 = vmatpush1.msra.mxu0 0.0
      %1369 = vmatprep.subr.mxu0 0.0
      %1370 = vmatpush1.msra.mxu0 0.0
      %1371 = vmatprep.subr.mxu0 0.0
      %1372 = vmatpush1.msra.mxu0 0.0
      %1373 = vmatprep.subr.mxu0 0.0
      %1374 = vmatpush1.msra.mxu0 0.0
      %1375 = vmatprep.subr.mxu0 0.0
      %1376 = vmatpush1.msra.mxu0 0.0
      %1377 = vmatprep.mubr.f32.mxu0 0.0
      %1378 = vmatmul.mubr.f32.gmra.mrb[0].mxu0 %v1272
      %v1379 = vpop.f32.mrb[0].mxu0
      %v1380 = vadd.f32 0.0, %v1379
      %v1381 = vpop.f32.mrb[0].mxu0
      %1382 = vmatprep.mubr.f32.mxu0 0.0
      %1383 = vmatmul.mubr.f32.gmra.mrb[0].mxu0 %v1275
      %v1384 = vpop.f32.mrb[0].mxu0
      %v1385 = vadd.f32 0.0, %v1384
      %v1386 = vpop.f32.mrb[0].mxu0
      %1387 = vmatprep.mubr.f32.mxu0 0.0
      %1388 = vmatmul.mubr.f32.gmra.mrb[0].mxu0 %v1278
      %v1389 = vpop.f32.mrb[0].mxu0
      %v1390 = vadd.f32 0.0, %v1389
      %v1391 = vpop.f32.mrb[0].mxu0
      %1392 = vmatprep.mubr.f32.mxu0 0.0
      %1393 = vmatmul.mubr.f32.gmra.mrb[0].mxu0 %v1281
      %v1394 = vpop.f32.mrb[0].mxu0
      %v1395 = vadd.f32 0.0, %v1394
      %v1396 = vpop.f32.mrb[0].mxu0
      %1397 = vmatprep.mubr.f32.mxu0 0.0
      %1398 = vmatmul.mubr.f32.gmra.mrb[0].mxu0 %v1284
      %v1399 = vpop.f32.mrb[0].mxu0
      %v1400 = vadd.f32 0.0, %v1399
      %v1401 = vpop.f32.mrb[0].mxu0
      %1402 = vmatprep.mubr.f32.mxu0 0.0
      %1403 = vmatmul.mubr.f32.gmra.mrb[0].mxu0 %v1287
      %v1404 = vpop.f32.mrb[0].mxu0
      %v1405 = vadd.f32 0.0, %v1404
      %v1406 = vpop.f32.mrb[0].mxu0
      %1407 = vmatprep.mubr.f32.mxu0 0.0
      %1408 = vmatmul.mubr.f32.gmra.mrb[0].mxu0 %v1290
      %v1409 = vpop.f32.mrb[0].mxu0
      %v1410 = vadd.f32 0.0, %v1409
      %v1411 = vpop.f32.mrb[0].mxu0
      %1412 = vmatprep.mubr.f32.mxu0 0.0
      %1413 = vmatmul.mubr.f32.gmra.mrb[0].mxu0 %v1293
      %v1414 = vpop.f32.mrb[0].mxu0
      %v1415 = vadd.f32 0.0, %v1414
      %v1416 = vpop.f32.mrb[0].mxu0
      %1417 = vmatprep.mubr.f32.mxu0 0.0
      %1418 = vmatmul.mubr.f32.gmra.mrb[0].mxu0 %v1296
      %v1419 = vpop.f32.mrb[0].mxu0
      %v1420 = vadd.f32 0.0, %v1419
      %v1421 = vpop.f32.mrb[0].mxu0
      %1422 = vmatprep.mubr.f32.mxu0 0.0
      %1423 = vmatmul.mubr.f32.gmra.mrb[0].mxu0 %v1299
      %v1424 = vpop.f32.mrb[0].mxu0
      %v1425 = vadd.f32 0.0, %v1424
      %v1426 = vpop.f32.mrb[0].mxu0
      %1427 = vmatprep.mubr.f32.mxu0 0.0
      %1428 = vmatmul.mubr.f32.gmra.mrb[0].mxu0 %v1302
      %v1429 = vpop.f32.mrb[0].mxu0
      %v1430 = vadd.f32 0.0, %v1429
      %v1431 = vpop.f32.mrb[0].mxu0
      %1432 = vmatprep.mubr.f32.mxu0 0.0
      %1433 = vmatmul.mubr.f32.gmra.mrb[0].mxu0 %v1305
      %v1434 = vpop.f32.mrb[0].mxu0
      %v1435 = vadd.f32 0.0, %v1434
      %v1436 = vpop.f32.mrb[0].mxu0
      %1437 = vmatprep.mubr.f32.mxu0 0.0
      %1438 = vmatmul.mubr.f32.gmra.mrb[0].mxu0 %v1308
      %v1439 = vpop.f32.mrb[0].mxu0
      %v1440 = vadd.f32 0.0, %v1439
      %v1441 = vpop.f32.mrb[0].mxu0
      %1442 = vmatprep.mubr.f32.mxu0 0.0
      %1443 = vmatmul.mubr.f32.gmra.mrb[0].mxu0 %v1311
      %v1444 = vpop.f32.mrb[0].mxu0
      %v1445 = vadd.f32 0.0, %v1444
      %v1446 = vpop.f32.mrb[0].mxu0
      %1447 = vdwg.mxu0
      %v1448 = vadd.f32 %v1188, %v1380
      %v1449 = vadd.f32 %v1193, %v1385
      %v1450 = vadd.f32 %v1198, %v1390
      %v1451 = vadd.f32 %v1203, %v1395
      %v1452 = vadd.f32 %v1208, %v1400
      %v1453 = vadd.f32 %v1213, %v1405
      %v1454 = vadd.f32 %v1218, %v1410
      %v1455 = vadd.f32 %v1223, %v1415
      %v1456 = vadd.f32 %v1228, %v1420
      %v1457 = vadd.f32 %v1233, %v1425
      %v1458 = vadd.f32 %v1238, %v1430
      %v1459 = vadd.f32 %v1243, %v1435
      %v1460 = vadd.f32 %v1248, %v1440
      %v1461 = vadd.f32 %v1253, %v1445
      %v1462 = vld [vmem:[%s2] sm:$0x1]
      %v1464 = vlaneseq
      %v1465 = vshrl.u32 %v1464, 7
      %v1466 = vsub.s32 0, %v1465
      %v1467 = vrot.slane %v1462, %v1466
      %v1469 = vadd.f32 %v972, %v1467
      %v1470 = vadd.f32 %v973, %v1467
      %v1471 = vadd.f32 %v974, %v1467
      %v1472 = vadd.f32 %v975, %v1467
      %v1473 = vadd.f32 %v976, %v1467
      %v1474 = vadd.f32 %v977, %v1467
      %v1475 = vadd.f32 %v978, %v1467
      %v1476 = vadd.f32 %v979, %v1467
      %v1477 = vadd.f32 %v980, %v1467
      %v1478 = vadd.f32 %v981, %v1467
      %v1479 = vadd.f32 %v982, %v1467
      %v1480 = vadd.f32 %v983, %v1467
      %v1481 = vadd.f32 %v984, %v1467
      %v1482 = vadd.f32 %v985, %v1467
      %v1483 = vmax.f32 %v1469, 0.0
      %v1484 = vmax.f32 %v1470, 0.0
      %v1485 = vmax.f32 %v1471, 0.0
      %v1486 = vmax.f32 %v1472, 0.0
      %v1487 = vmax.f32 %v1473, 0.0
      %v1488 = vmax.f32 %v1474, 0.0
      %v1489 = vmax.f32 %v1475, 0.0
      %v1490 = vmax.f32 %v1476, 0.0
      %v1491 = vmax.f32 %v1477, 0.0
      %v1492 = vmax.f32 %v1478, 0.0
      %v1493 = vmax.f32 %v1479, 0.0
      %v1494 = vmax.f32 %v1480, 0.0
      %v1495 = vmax.f32 %v1481, 0.0
      %v1496 = vmax.f32 %v1482, 0.0
      %v1497 = vmin.f32 %v1483, 6.0
      %v1498 = vmin.f32 %v1484, 6.0
      %v1499 = vmin.f32 %v1485, 6.0
      %v1500 = vmin.f32 %v1486, 6.0
      %v1501 = vmin.f32 %v1487, 6.0
      %v1502 = vmin.f32 %v1488, 6.0
      %v1503 = vmin.f32 %v1489, 6.0
      %v1504 = vmin.f32 %v1490, 6.0
      %v1505 = vmin.f32 %v1491, 6.0
      %v1506 = vmin.f32 %v1492, 6.0
      %v1507 = vmin.f32 %v1493, 6.0
      %v1508 = vmin.f32 %v1494, 6.0
      %v1509 = vmin.f32 %v1495, 6.0
      %v1510 = vmin.f32 %v1496, 6.0
      %v1511 = vadd.f32 %v1448, %v1467
      %v1512 = vadd.f32 %v1449, %v1467
      %v1513 = vadd.f32 %v1450, %v1467
      %v1514 = vadd.f32 %v1451, %v1467
      %v1515 = vadd.f32 %v1452, %v1467
      %v1516 = vadd.f32 %v1453, %v1467
      %v1517 = vadd.f32 %v1454, %v1467
      %v1518 = vadd.f32 %v1455, %v1467
      %v1519 = vadd.f32 %v1456, %v1467
      %v1520 = vadd.f32 %v1457, %v1467
      %v1521 = vadd.f32 %v1458, %v1467
      %v1522 = vadd.f32 %v1459, %v1467
      %v1523 = vadd.f32 %v1460, %v1467
      %v1524 = vadd.f32 %v1461, %v1467
      %v1525 = vmax.f32 %v1511, 0.0
      %v1526 = vmax.f32 %v1512, 0.0
      %v1527 = vmax.f32 %v1513, 0.0
      %v1528 = vmax.f32 %v1514, 0.0
      %v1529 = vmax.f32 %v1515, 0.0
      %v1530 = vmax.f32 %v1516, 0.0
      %v1531 = vmax.f32 %v1517, 0.0
      %v1532 = vmax.f32 %v1518, 0.0
      %v1533 = vmax.f32 %v1519, 0.0
      %v1534 = vmax.f32 %v1520, 0.0
      %v1535 = vmax.f32 %v1521, 0.0
      %v1536 = vmax.f32 %v1522, 0.0
      %v1537 = vmax.f32 %v1523, 0.0
      %v1538 = vmax.f32 %v1524, 0.0
      %v1539 = vmin.f32 %v1525, 6.0
      %v1540 = vmin.f32 %v1526, 6.0
      %v1541 = vmin.f32 %v1527, 6.0
      %v1542 = vmin.f32 %v1528, 6.0
      %v1543 = vmin.f32 %v1529, 6.0
      %v1544 = vmin.f32 %v1530, 6.0
      %v1545 = vmin.f32 %v1531, 6.0
      %v1546 = vmin.f32 %v1532, 6.0
      %v1547 = vmin.f32 %v1533, 6.0
      %v1548 = vmin.f32 %v1534, 6.0
      %v1549 = vmin.f32 %v1535, 6.0
      %v1550 = vmin.f32 %v1536, 6.0
      %v1551 = vmin.f32 %v1537, 6.0
      %v1552 = vmin.f32 %v1538, 6.0
      %v1553 = vmax.f32 %v1497, %v1539
      %v1554 = vmax.f32 %v1498, %v1540
      %v1555 = vmax.f32 %v1499, %v1541
      %v1556 = vmax.f32 %v1500, %v1542
      %v1557 = vmax.f32 %v1501, %v1543
      %v1558 = vmax.f32 %v1502, %v1544
      %v1559 = vmax.f32 %v1503, %v1545
      %v1560 = vmax.f32 %v1504, %v1546
      %v1561 = vmax.f32 %v1505, %v1547
      %v1562 = vmax.f32 %v1506, %v1548
      %v1563 = vmax.f32 %v1507, %v1549
      %v1564 = vmax.f32 %v1508, %v1550
      %v1565 = vmax.f32 %v1509, %v1551
      %v1566 = vmax.f32 %v1510, %v1552
      %1581 = vrot.lane.b32.xlu0 %v1553, 86
      %v1582 = vpop.permute.xlu0 %1581
      %1583 = vrot.lane.b32.xlu0 %v1554, 86
      %v1584 = vpop.permute.xlu0 %1583
      %1585 = vrot.lane.b32.xlu0 %v1555, 86
      %v1586 = vpop.permute.xlu0 %1585
      %1587 = vrot.lane.b32.xlu0 %v1556, 86
      %v1588 = vpop.permute.xlu0 %1587
      %1589 = vrot.lane.b32.xlu0 %v1557, 86
      %v1590 = vpop.permute.xlu0 %1589
      %1591 = vrot.lane.b32.xlu0 %v1558, 86
      %v1592 = vpop.permute.xlu0 %1591
      %1593 = vrot.lane.b32.xlu0 %v1559, 86
      %v1594 = vpop.permute.xlu0 %1593
      %1595 = vrot.lane.b32.xlu0 %v1560, 86
      %v1596 = vpop.permute.xlu0 %1595
      %1597 = vrot.lane.b32.xlu0 %v1561, 86
      %v1598 = vpop.permute.xlu0 %1597
      %1599 = vrot.lane.b32.xlu0 %v1562, 86
      %v1600 = vpop.permute.xlu0 %1599
      %1601 = vrot.lane.b32.xlu0 %v1563, 86
      %v1602 = vpop.permute.xlu0 %1601
      %1603 = vrot.lane.b32.xlu0 %v1564, 86
      %v1604 = vpop.permute.xlu0 %1603
      %1605 = vrot.lane.b32.xlu0 %v1565, 86
      %v1606 = vpop.permute.xlu0 %1605
      %1607 = vrot.lane.b32.xlu0 %v1566, 86
      %v1608 = vpop.permute.xlu0 %1607
      %v1623 = vmax.f32 %v1553, %v1582
      %v1624 = vmax.f32 %v1554, %v1584
      %v1625 = vmax.f32 %v1555, %v1586
      %v1626 = vmax.f32 %v1556, %v1588
      %v1627 = vmax.f32 %v1557, %v1590
      %v1628 = vmax.f32 %v1558, %v1592
      %v1629 = vmax.f32 %v1559, %v1594
      %v1630 = vmax.f32 %v1560, %v1596
      %v1631 = vmax.f32 %v1561, %v1598
      %v1632 = vmax.f32 %v1562, %v1600
      %v1633 = vmax.f32 %v1563, %v1602
      %v1634 = vmax.f32 %v1564, %v1604
      %v1635 = vmax.f32 %v1565, %v1606
      %v1636 = vmax.f32 %v1566, %v1608
      %v1637 = vld [vmem:[%s3] sm:$0xff]
      %v1638 = vld [vmem:[%s3 + $0x8] sm:$0xff]
      %v1639 = vld [vmem:[%s3 + $0x10] sm:$0xff]
      %v1640 = vld [vmem:[%s3 + $0x18] sm:$0xff]
      %v1641 = vld [vmem:[%s3 + $0x20] sm:$0xff]
      %v1642 = vld [vmem:[%s3 + $0x28] sm:$0x3]
      %s1643 = scalar_lea.vmem %s3, 48
      %v1644 = vld [vmem:[%s1643] sm:$0xff]
      %v1645 = vld [vmem:[%s1643 + $0x8] sm:$0xff]
      %v1646 = vld [vmem:[%s1643 + $0x10] sm:$0xff]
      %v1647 = vld [vmem:[%s1643 + $0x18] sm:$0xff]
      %v1648 = vld [vmem:[%s1643 + $0x20] sm:$0xff]
      %v1649 = vld [vmem:[%s1643 + $0x28] sm:$0x3]
      %vm1664 = vcmask 1046528
      %v1665 = vrot.slane %v1623, 1
      %v1666 = vrot.slane %v1624, 1
      %v1667 = vsel %vm1664, %v1665, %v1666
      %v1668 = vrot.slane %v1625, 1
      %v1669 = vsel %vm1664, %v1666, %v1668
      %v1670 = vrot.slane %v1626, 1
      %v1671 = vsel %vm1664, %v1668, %v1670
      %v1672 = vrot.slane %v1627, 1
      %v1673 = vsel %vm1664, %v1670, %v1672
      %v1674 = vrot.slane %v1628, 1
      %v1675 = vsel %vm1664, %v1672, %v1674
      %v1676 = vrot.slane %v1629, 1
      %v1677 = vsel %vm1664, %v1674, %v1676
      %v1678 = vrot.slane %v1630, 1
      %v1679 = vsel %vm1664, %v1676, %v1678
      %v1680 = vrot.slane %v1631, 1
      %v1681 = vsel %vm1664, %v1678, %v1680
      %v1682 = vrot.slane %v1632, 1
      %v1683 = vsel %vm1664, %v1680, %v1682
      %v1684 = vrot.slane %v1633, 1
      %v1685 = vsel %vm1664, %v1682, %v1684
      %v1686 = vrot.slane %v1634, 1
      %v1687 = vsel %vm1664, %v1684, %v1686
      %v1688 = vrot.slane %v1635, 1
      %v1689 = vsel %vm1664, %v1686, %v1688
      %v1690 = vrot.slane %v1636, 1
      %v1691 = vsel %vm1664, %v1688, %v1690
      %vm1692 = vcmask 343040
      %v1693 = vsel %vm1692, %v1667, 0
      %v1695 = vsel %vm1692, %v1669, 0
      %v1697 = vsel %vm1692, %v1671, 0
      %v1699 = vsel %vm1692, %v1673, 0
      %v1701 = vsel %vm1692, %v1675, 0
      %v1703 = vsel %vm1692, %v1677, 0
      %v1705 = vsel %vm1692, %v1679, 0
      %v1707 = vsel %vm1692, %v1681, 0
      %v1709 = vsel %vm1692, %v1683, 0
      %v1711 = vsel %vm1692, %v1685, 0
      %v1713 = vsel %vm1692, %v1687, 0
      %v1715 = vsel %vm1692, %v1689, 0
      %v1717 = vsel %vm1692, %v1691, 0
      %v1719 = vsel %vm1692, %v1690, 0
      %vm1721 = vcmask 1041408
      %v1723 = vsel %vm1721, %v1649, 0
      %1725 = vmatprep.subr.mxu0 0.0
      %1726 = vmatpush1.msra.mxu0 %v1644
      %1727 = vmatprep.subr.mxu0 0.0
      %1728 = vmatpush1.msra.mxu0 %v1645
      %1729 = vmatprep.subr.mxu0 0.0
      %1730 = vmatpush1.msra.mxu0 %v1646
      %1731 = vmatprep.subr.mxu0 0.0
      %1732 = vmatpush1.msra.mxu0 %v1647
      %1733 = vmatprep.subr.mxu0 0.0
      %1734 = vmatpush1.msra.mxu0 %v1648
      %1735 = vmatprep.subr.mxu0 0.0
      %1736 = vmatpush1.msra.mxu0 %v1723
      %1737 = vmatprep.subr.mxu0 0.0
      %1738 = vmatpush1.msra.mxu0 0.0
      %1739 = vmatprep.subr.mxu0 0.0
      %1740 = vmatpush1.msra.mxu0 0.0
      %1741 = vmatprep.subr.mxu0 0.0
      %1742 = vmatpush1.msra.mxu0 0.0
      %1743 = vmatprep.subr.mxu0 0.0
      %1744 = vmatpush1.msra.mxu0 0.0
      %1745 = vmatprep.subr.mxu0 0.0
      %1746 = vmatpush1.msra.mxu0 0.0
      %1747 = vmatprep.subr.mxu0 0.0
      %1748 = vmatpush1.msra.mxu0 0.0
      %1749 = vmatprep.subr.mxu0 0.0
      %1750 = vmatpush1.msra.mxu0 0.0
      %1751 = vmatprep.subr.mxu0 0.0
      %1752 = vmatpush1.msra.mxu0 0.0
      %1753 = vmatprep.subr.mxu0 0.0
      %1754 = vmatpush1.msra.mxu0 0.0
      %1755 = vmatprep.subr.mxu0 0.0
      %1756 = vmatpush1.msra.mxu0 0.0
      %1757 = vmatprep.subr.mxu0 0.0
      %1758 = vmatpush1.msra.mxu0 0.0
      %1759 = vmatprep.subr.mxu0 0.0
      %1760 = vmatpush1.msra.mxu0 0.0
      %1761 = vmatprep.subr.mxu0 0.0
      %1762 = vmatpush1.msra.mxu0 0.0
      %1763 = vmatprep.subr.mxu0 0.0
      %1764 = vmatpush1.msra.mxu0 0.0
      %1765 = vmatprep.subr.mxu0 0.0
      %1766 = vmatpush1.msra.mxu0 0.0
      %1767 = vmatprep.subr.mxu0 0.0
      %1768 = vmatpush1.msra.mxu0 0.0
      %1769 = vmatprep.subr.mxu0 0.0
      %1770 = vmatpush1.msra.mxu0 0.0
      %1771 = vmatprep.subr.mxu0 0.0
      %1772 = vmatpush1.msra.mxu0 0.0
      %1773 = vmatprep.subr.mxu0 0.0
      %1774 = vmatpush1.msra.mxu0 0.0
      %1775 = vmatprep.subr.mxu0 0.0
      %1776 = vmatpush1.msra.mxu0 0.0
      %1777 = vmatprep.subr.mxu0 0.0
      %1778 = vmatpush1.msra.mxu0 0.0
      %1779 = vmatprep.subr.mxu0 0.0
      %1780 = vmatpush1.msra.mxu0 0.0
      %1781 = vmatprep.subr.mxu0 0.0
      %1782 = vmatpush1.msra.mxu0 0.0
      %1783 = vmatprep.subr.mxu0 0.0
      %1784 = vmatpush1.msra.mxu0 0.0
      %1785 = vmatprep.subr.mxu0 0.0
      %1786 = vmatpush1.msra.mxu0 0.0
      %1787 = vmatprep.subr.mxu0 0.0
      %1788 = vmatpush1.msra.mxu0 0.0
      %1789 = vmatprep.mubr.f32.mxu0 0.0
      %1790 = vmatmul.mubr.f32.gmra.mrb[0].mxu0 %v1693
      %v1791 = vpop.f32.mrb[0].mxu0
      %v1792 = vadd.f32 0.0, %v1791
      %v1793 = vpop.f32.mrb[0].mxu0
      %1794 = vmatprep.mubr.f32.mxu0 0.0
      %1795 = vmatmul.mubr.f32.gmra.mrb[0].mxu0 %v1695
      %v1796 = vpop.f32.mrb[0].mxu0
      %v1797 = vadd.f32 0.0, %v1796
      %v1798 = vpop.f32.mrb[0].mxu0
      %1799 = vmatprep.mubr.f32.mxu0 0.0
      %1800 = vmatmul.mubr.f32.gmra.mrb[0].mxu0 %v1697
      %v1801 = vpop.f32.mrb[0].mxu0
      %v1802 = vadd.f32 0.0, %v1801
      %v1803 = vpop.f32.mrb[0].mxu0
      %1804 = vmatprep.mubr.f32.mxu0 0.0
      %1805 = vmatmul.mubr.f32.gmra.mrb[0].mxu0 %v1699
      %v1806 = vpop.f32.mrb[0].mxu0
      %v1807 = vadd.f32 0.0, %v1806
      %v1808 = vpop.f32.mrb[0].mxu0
      %1809 = vmatprep.mubr.f32.mxu0 0.0
      %1810 = vmatmul.mubr.f32.gmra.mrb[0].mxu0 %v1701
      %v1811 = vpop.f32.mrb[0].mxu0
      %v1812 = vadd.f32 0.0, %v1811
      %v1813 = vpop.f32.mrb[0].mxu0
      %1814 = vmatprep.mubr.f32.mxu0 0.0
      %1815 = vmatmul.mubr.f32.gmra.mrb[0].mxu0 %v1703
      %v1816 = vpop.f32.mrb[0].mxu0
      %v1817 = vadd.f32 0.0, %v1816
      %v1818 = vpop.f32.mrb[0].mxu0
      %1819 = vmatprep.mubr.f32.mxu0 0.0
      %1820 = vmatmul.mubr.f32.gmra.mrb[0].mxu0 %v1705
      %v1821 = vpop.f32.mrb[0].mxu0
      %v1822 = vadd.f32 0.0, %v1821
      %v1823 = vpop.f32.mrb[0].mxu0
      %1824 = vmatprep.mubr.f32.mxu0 0.0
      %1825 = vmatmul.mubr.f32.gmra.mrb[0].mxu0 %v1707
      %v1826 = vpop.f32.mrb[0].mxu0
      %v1827 = vadd.f32 0.0, %v1826
      %v1828 = vpop.f32.mrb[0].mxu0
      %1829 = vmatprep.mubr.f32.mxu0 0.0
      %1830 = vmatmul.mubr.f32.gmra.mrb[0].mxu0 %v1709
      %v1831 = vpop.f32.mrb[0].mxu0
      %v1832 = vadd.f32 0.0, %v1831
      %v1833 = vpop.f32.mrb[0].mxu0
      %1834 = vmatprep.mubr.f32.mxu0 0.0
      %1835 = vmatmul.mubr.f32.gmra.mrb[0].mxu0 %v1711
      %v1836 = vpop.f32.mrb[0].mxu0
      %v1837 = vadd.f32 0.0, %v1836
      %v1838 = vpop.f32.mrb[0].mxu0
      %1839 = vmatprep.mubr.f32.mxu0 0.0
      %1840 = vmatmul.mubr.f32.gmra.mrb[0].mxu0 %v1713
      %v1841 = vpop.f32.mrb[0].mxu0
      %v1842 = vadd.f32 0.0, %v1841
      %v1843 = vpop.f32.mrb[0].mxu0
      %1844 = vmatprep.mubr.f32.mxu0 0.0
      %1845 = vmatmul.mubr.f32.gmra.mrb[0].mxu0 %v1715
      %v1846 = vpop.f32.mrb[0].mxu0
      %v1847 = vadd.f32 0.0, %v1846
      %v1848 = vpop.f32.mrb[0].mxu0
      %1849 = vmatprep.mubr.f32.mxu0 0.0
      %1850 = vmatmul.mubr.f32.gmra.mrb[0].mxu0 %v1717
      %v1851 = vpop.f32.mrb[0].mxu0
      %v1852 = vadd.f32 0.0, %v1851
      %v1853 = vpop.f32.mrb[0].mxu0
      %1854 = vmatprep.mubr.f32.mxu0 0.0
      %1855 = vmatmul.mubr.f32.gmra.mrb[0].mxu0 %v1719
      %v1856 = vpop.f32.mrb[0].mxu0
      %v1857 = vadd.f32 0.0, %v1856
      %v1858 = vpop.f32.mrb[0].mxu0
      %1859 = vdwg.mxu0
      %v1860 = vsel %vm1692, %v1623, 0
      %v1862 = vsel %vm1692, %v1624, 0
      %v1864 = vsel %vm1692, %v1625, 0
      %v1866 = vsel %vm1692, %v1626, 0
      %v1868 = vsel %vm1692, %v1627, 0
      %v1870 = vsel %vm1692, %v1628, 0
      %v1872 = vsel %vm1692, %v1629, 0
      %v1874 = vsel %vm1692, %v1630, 0
      %v1876 = vsel %vm1692, %v1631, 0
      %v1878 = vsel %vm1692, %v1632, 0
      %v1880 = vsel %vm1692, %v1633, 0
      %v1882 = vsel %vm1692, %v1634, 0
      %v1884 = vsel %vm1692, %v1635, 0
      %v1886 = vsel %vm1692, %v1636, 0
      %v1889 = vsel %vm1721, %v1642, 0
      %1891 = vmatprep.subr.mxu0 0.0
      %1892 = vmatpush1.msra.mxu0 %v1637
      %1893 = vmatprep.subr.mxu0 0.0
      %1894 = vmatpush1.msra.mxu0 %v1638
      %1895 = vmatprep.subr.mxu0 0.0
      %1896 = vmatpush1.msra.mxu0 %v1639
      %1897 = vmatprep.subr.mxu0 0.0
      %1898 = vmatpush1.msra.mxu0 %v1640
      %1899 = vmatprep.subr.mxu0 0.0
      %1900 = vmatpush1.msra.mxu0 %v1641
      %1901 = vmatprep.subr.mxu0 0.0
      %1902 = vmatpush1.msra.mxu0 %v1889
      %1903 = vmatprep.subr.mxu0 0.0
      %1904 = vmatpush1.msra.mxu0 0.0
      %1905 = vmatprep.subr.mxu0 0.0
      %1906 = vmatpush1.msra.mxu0 0.0
      %1907 = vmatprep.subr.mxu0 0.0
      %1908 = vmatpush1.msra.mxu0 0.0
      %1909 = vmatprep.subr.mxu0 0.0
      %1910 = vmatpush1.msra.mxu0 0.0
      %1911 = vmatprep.subr.mxu0 0.0
      %1912 = vmatpush1.msra.mxu0 0.0
      %1913 = vmatprep.subr.mxu0 0.0
      %1914 = vmatpush1.msra.mxu0 0.0
      %1915 = vmatprep.subr.mxu0 0.0
      %1916 = vmatpush1.msra.mxu0 0.0
      %1917 = vmatprep.subr.mxu0 0.0
      %1918 = vmatpush1.msra.mxu0 0.0
      %1919 = vmatprep.subr.mxu0 0.0
      %1920 = vmatpush1.msra.mxu0 0.0
      %1921 = vmatprep.subr.mxu0 0.0
      %1922 = vmatpush1.msra.mxu0 0.0
      %1923 = vmatprep.subr.mxu0 0.0
      %1924 = vmatpush1.msra.mxu0 0.0
      %1925 = vmatprep.subr.mxu0 0.0
      %1926 = vmatpush1.msra.mxu0 0.0
      %1927 = vmatprep.subr.mxu0 0.0
      %1928 = vmatpush1.msra.mxu0 0.0
      %1929 = vmatprep.subr.mxu0 0.0
      %1930 = vmatpush1.msra.mxu0 0.0
      %1931 = vmatprep.subr.mxu0 0.0
      %1932 = vmatpush1.msra.mxu0 0.0
      %1933 = vmatprep.subr.mxu0 0.0
      %1934 = vmatpush1.msra.mxu0 0.0
      %1935 = vmatprep.subr.mxu0 0.0
      %1936 = vmatpush1.msra.mxu0 0.0
      %1937 = vmatprep.subr.mxu0 0.0
      %1938 = vmatpush1.msra.mxu0 0.0
      %1939 = vmatprep.subr.mxu0 0.0
      %1940 = vmatpush1.msra.mxu0 0.0
      %1941 = vmatprep.subr.mxu0 0.0
      %1942 = vmatpush1.msra.mxu0 0.0
      %1943 = vmatprep.subr.mxu0 0.0
      %1944 = vmatpush1.msra.mxu0 0.0
      %1945 = vmatprep.subr.mxu0 0.0
      %1946 = vmatpush1.msra.mxu0 0.0
      %1947 = vmatprep.subr.mxu0 0.0
      %1948 = vmatpush1.msra.mxu0 0.0
      %1949 = vmatprep.subr.mxu0 0.0
      %1950 = vmatpush1.msra.mxu0 0.0
      %1951 = vmatprep.subr.mxu0 0.0
      %1952 = vmatpush1.msra.mxu0 0.0
      %1953 = vmatprep.subr.mxu0 0.0
      %1954 = vmatpush1.msra.mxu0 0.0
      %1955 = vmatprep.mubr.f32.mxu0 0.0
      %1956 = vmatmul.mubr.f32.gmra.mrb[0].mxu0 %v1860
      %v1957 = vpop.f32.mrb[0].mxu0
      %v1958 = vadd.f32 %v1792, %v1957
      %v1959 = vpop.f32.mrb[0].mxu0
      %1960 = vmatprep.mubr.f32.mxu0 0.0
      %1961 = vmatmul.mubr.f32.gmra.mrb[0].mxu0 %v1862
      %v1962 = vpop.f32.mrb[0].mxu0
      %v1963 = vadd.f32 %v1797, %v1962
      %v1964 = vpop.f32.mrb[0].mxu0
      %1965 = vmatprep.mubr.f32.mxu0 0.0
      %1966 = vmatmul.mubr.f32.gmra.mrb[0].mxu0 %v1864
      %v1967 = vpop.f32.mrb[0].mxu0
      %v1968 = vadd.f32 %v1802, %v1967
      %v1969 = vpop.f32.mrb[0].mxu0
      %1970 = vmatprep.mubr.f32.mxu0 0.0
      %1971 = vmatmul.mubr.f32.gmra.mrb[0].mxu0 %v1866
      %v1972 = vpop.f32.mrb[0].mxu0
      %v1973 = vadd.f32 %v1807, %v1972
      %v1974 = vpop.f32.mrb[0].mxu0
      %1975 = vmatprep.mubr.f32.mxu0 0.0
      %1976 = vmatmul.mubr.f32.gmra.mrb[0].mxu0 %v1868
      %v1977 = vpop.f32.mrb[0].mxu0
      %v1978 = vadd.f32 %v1812, %v1977
      %v1979 = vpop.f32.mrb[0].mxu0
      %1980 = vmatprep.mubr.f32.mxu0 0.0
      %1981 = vmatmul.mubr.f32.gmra.mrb[0].mxu0 %v1870
      %v1982 = vpop.f32.mrb[0].mxu0
      %v1983 = vadd.f32 %v1817, %v1982
      %v1984 = vpop.f32.mrb[0].mxu0
      %1985 = vmatprep.mubr.f32.mxu0 0.0
      %1986 = vmatmul.mubr.f32.gmra.mrb[0].mxu0 %v1872
      %v1987 = vpop.f32.mrb[0].mxu0
      %v1988 = vadd.f32 %v1822, %v1987
      %v1989 = vpop.f32.mrb[0].mxu0
      %1990 = vmatprep.mubr.f32.mxu0 0.0
      %1991 = vmatmul.mubr.f32.gmra.mrb[0].mxu0 %v1874
      %v1992 = vpop.f32.mrb[0].mxu0
      %v1993 = vadd.f32 %v1827, %v1992
      %v1994 = vpop.f32.mrb[0].mxu0
      %1995 = vmatprep.mubr.f32.mxu0 0.0
      %1996 = vmatmul.mubr.f32.gmra.mrb[0].mxu0 %v1876
      %v1997 = vpop.f32.mrb[0].mxu0
      %v1998 = vadd.f32 %v1832, %v1997
      %v1999 = vpop.f32.mrb[0].mxu0
      %2000 = vmatprep.mubr.f32.mxu0 0.0
      %2001 = vmatmul.mubr.f32.gmra.mrb[0].mxu0 %v1878
      %v2002 = vpop.f32.mrb[0].mxu0
      %v2003 = vadd.f32 %v1837, %v2002
      %v2004 = vpop.f32.mrb[0].mxu0
      %2005 = vmatprep.mubr.f32.mxu0 0.0
      %2006 = vmatmul.mubr.f32.gmra.mrb[0].mxu0 %v1880
      %v2007 = vpop.f32.mrb[0].mxu0
      %v2008 = vadd.f32 %v1842, %v2007
      %v2009 = vpop.f32.mrb[0].mxu0
      %2010 = vmatprep.mubr.f32.mxu0 0.0
      %2011 = vmatmul.mubr.f32.gmra.mrb[0].mxu0 %v1882
      %v2012 = vpop.f32.mrb[0].mxu0
      %v2013 = vadd.f32 %v1847, %v2012
      %v2014 = vpop.f32.mrb[0].mxu0
      %2015 = vmatprep.mubr.f32.mxu0 0.0
      %2016 = vmatmul.mubr.f32.gmra.mrb[0].mxu0 %v1884
      %v2017 = vpop.f32.mrb[0].mxu0
      %v2018 = vadd.f32 %v1852, %v2017
      %v2019 = vpop.f32.mrb[0].mxu0
      %2020 = vmatprep.mubr.f32.mxu0 0.0
      %2021 = vmatmul.mubr.f32.gmra.mrb[0].mxu0 %v1886
      %v2022 = vpop.f32.mrb[0].mxu0
      %v2023 = vadd.f32 %v1857, %v2022
      %v2024 = vpop.f32.mrb[0].mxu0
      %2025 = vdwg.mxu0
      %s2026 = scalar_lea.vmem %s3, 96
      %v2027 = vld [vmem:[%s2026] sm:$0xff]
      %v2028 = vld [vmem:[%s2026 + $0x8] sm:$0xff]
      %v2029 = vld [vmem:[%s2026 + $0x10] sm:$0xff]
      %v2030 = vld [vmem:[%s2026 + $0x18] sm:$0xff]
      %v2031 = vld [vmem:[%s2026 + $0x20] sm:$0xff]
      %v2032 = vld [vmem:[%s2026 + $0x28] sm:$0x3]
      %vm2033 = vcmask 1045504
      %v2034 = vrot.slane %v1623, 2
      %v2035 = vrot.slane %v1624, 2
      %v2036 = vsel %vm2033, %v2034, %v2035
      %v2037 = vrot.slane %v1625, 2
      %v2038 = vsel %vm2033, %v2035, %v2037
      %v2039 = vrot.slane %v1626, 2
      %v2040 = vsel %vm2033, %v2037, %v2039
      %v2041 = vrot.slane %v1627, 2
      %v2042 = vsel %vm2033, %v2039, %v2041
      %v2043 = vrot.slane %v1628, 2
      %v2044 = vsel %vm2033, %v2041, %v2043
      %v2045 = vrot.slane %v1629, 2
      %v2046 = vsel %vm2033, %v2043, %v2045
      %v2047 = vrot.slane %v1630, 2
      %v2048 = vsel %vm2033, %v2045, %v2047
      %v2049 = vrot.slane %v1631, 2
      %v2050 = vsel %vm2033, %v2047, %v2049
      %v2051 = vrot.slane %v1632, 2
      %v2052 = vsel %vm2033, %v2049, %v2051
      %v2053 = vrot.slane %v1633, 2
      %v2054 = vsel %vm2033, %v2051, %v2053
      %v2055 = vrot.slane %v1634, 2
      %v2056 = vsel %vm2033, %v2053, %v2055
      %v2057 = vrot.slane %v1635, 2
      %v2058 = vsel %vm2033, %v2055, %v2057
      %v2059 = vrot.slane %v1636, 2
      %v2060 = vsel %vm2033, %v2057, %v2059
      %v2061 = vsel %vm1692, %v2036, 0
      %v2063 = vsel %vm1692, %v2038, 0
      %v2065 = vsel %vm1692, %v2040, 0
      %v2067 = vsel %vm1692, %v2042, 0
      %v2069 = vsel %vm1692, %v2044, 0
      %v2071 = vsel %vm1692, %v2046, 0
      %v2073 = vsel %vm1692, %v2048, 0
      %v2075 = vsel %vm1692, %v2050, 0
      %v2077 = vsel %vm1692, %v2052, 0
      %v2079 = vsel %vm1692, %v2054, 0
      %v2081 = vsel %vm1692, %v2056, 0
      %v2083 = vsel %vm1692, %v2058, 0
      %v2085 = vsel %vm1692, %v2060, 0
      %v2087 = vsel %vm1692, %v2059, 0
      %v2090 = vsel %vm1721, %v2032, 0
      %2092 = vmatprep.subr.mxu0 0.0
      %2093 = vmatpush1.msra.mxu0 %v2027
      %2094 = vmatprep.subr.mxu0 0.0
      %2095 = vmatpush1.msra.mxu0 %v2028
      %2096 = vmatprep.subr.mxu0 0.0
      %2097 = vmatpush1.msra.mxu0 %v2029
      %2098 = vmatprep.subr.mxu0 0.0
      %2099 = vmatpush1.msra.mxu0 %v2030
      %2100 = vmatprep.subr.mxu0 0.0
      %2101 = vmatpush1.msra.mxu0 %v2031
      %2102 = vmatprep.subr.mxu0 0.0
      %2103 = vmatpush1.msra.mxu0 %v2090
      %2104 = vmatprep.subr.mxu0 0.0
      %2105 = vmatpush1.msra.mxu0 0.0
      %2106 = vmatprep.subr.mxu0 0.0
      %2107 = vmatpush1.msra.mxu0 0.0
      %2108 = vmatprep.subr.mxu0 0.0
      %2109 = vmatpush1.msra.mxu0 0.0
      %2110 = vmatprep.subr.mxu0 0.0
      %2111 = vmatpush1.msra.mxu0 0.0
      %2112 = vmatprep.subr.mxu0 0.0
      %2113 = vmatpush1.msra.mxu0 0.0
      %2114 = vmatprep.subr.mxu0 0.0
      %2115 = vmatpush1.msra.mxu0 0.0
      %2116 = vmatprep.subr.mxu0 0.0
      %2117 = vmatpush1.msra.mxu0 0.0
      %2118 = vmatprep.subr.mxu0 0.0
      %2119 = vmatpush1.msra.mxu0 0.0
      %2120 = vmatprep.subr.mxu0 0.0
      %2121 = vmatpush1.msra.mxu0 0.0
      %2122 = vmatprep.subr.mxu0 0.0
      %2123 = vmatpush1.msra.mxu0 0.0
      %2124 = vmatprep.subr.mxu0 0.0
      %2125 = vmatpush1.msra.mxu0 0.0
      %2126 = vmatprep.subr.mxu0 0.0
      %2127 = vmatpush1.msra.mxu0 0.0
      %2128 = vmatprep.subr.mxu0 0.0
      %2129 = vmatpush1.msra.mxu0 0.0
      %2130 = vmatprep.subr.mxu0 0.0
      %2131 = vmatpush1.msra.mxu0 0.0
      %2132 = vmatprep.subr.mxu0 0.0
      %2133 = vmatpush1.msra.mxu0 0.0
      %2134 = vmatprep.subr.mxu0 0.0
      %2135 = vmatpush1.msra.mxu0 0.0
      %2136 = vmatprep.subr.mxu0 0.0
      %2137 = vmatpush1.msra.mxu0 0.0
      %2138 = vmatprep.subr.mxu0 0.0
      %2139 = vmatpush1.msra.mxu0 0.0
      %2140 = vmatprep.subr.mxu0 0.0
      %2141 = vmatpush1.msra.mxu0 0.0
      %2142 = vmatprep.subr.mxu0 0.0
      %2143 = vmatpush1.msra.mxu0 0.0
      %2144 = vmatprep.subr.mxu0 0.0
      %2145 = vmatpush1.msra.mxu0 0.0
      %2146 = vmatprep.subr.mxu0 0.0
      %2147 = vmatpush1.msra.mxu0 0.0
      %2148 = vmatprep.subr.mxu0 0.0
      %2149 = vmatpush1.msra.mxu0 0.0
      %2150 = vmatprep.subr.mxu0 0.0
      %2151 = vmatpush1.msra.mxu0 0.0
      %2152 = vmatprep.subr.mxu0 0.0
      %2153 = vmatpush1.msra.mxu0 0.0
      %2154 = vmatprep.subr.mxu0 0.0
      %2155 = vmatpush1.msra.mxu0 0.0
      %2156 = vmatprep.mubr.f32.mxu0 0.0
      %2157 = vmatmul.mubr.f32.gmra.mrb[0].mxu0 %v2061
      %v2158 = vpop.f32.mrb[0].mxu0
      %v2159 = vadd.f32 0.0, %v2158
      %v2160 = vpop.f32.mrb[0].mxu0
      %2161 = vmatprep.mubr.f32.mxu0 0.0
      %2162 = vmatmul.mubr.f32.gmra.mrb[0].mxu0 %v2063
      %v2163 = vpop.f32.mrb[0].mxu0
      %v2164 = vadd.f32 0.0, %v2163
      %v2165 = vpop.f32.mrb[0].mxu0
      %2166 = vmatprep.mubr.f32.mxu0 0.0
      %2167 = vmatmul.mubr.f32.gmra.mrb[0].mxu0 %v2065
      %v2168 = vpop.f32.mrb[0].mxu0
      %v2169 = vadd.f32 0.0, %v2168
      %v2170 = vpop.f32.mrb[0].mxu0
      %2171 = vmatprep.mubr.f32.mxu0 0.0
      %2172 = vmatmul.mubr.f32.gmra.mrb[0].mxu0 %v2067
      %v2173 = vpop.f32.mrb[0].mxu0
      %v2174 = vadd.f32 0.0, %v2173
      %v2175 = vpop.f32.mrb[0].mxu0
      %2176 = vmatprep.mubr.f32.mxu0 0.0
      %2177 = vmatmul.mubr.f32.gmra.mrb[0].mxu0 %v2069
      %v2178 = vpop.f32.mrb[0].mxu0
      %v2179 = vadd.f32 0.0, %v2178
      %v2180 = vpop.f32.mrb[0].mxu0
      %2181 = vmatprep.mubr.f32.mxu0 0.0
      %2182 = vmatmul.mubr.f32.gmra.mrb[0].mxu0 %v2071
      %v2183 = vpop.f32.mrb[0].mxu0
      %v2184 = vadd.f32 0.0, %v2183
      %v2185 = vpop.f32.mrb[0].mxu0
      %2186 = vmatprep.mubr.f32.mxu0 0.0
      %2187 = vmatmul.mubr.f32.gmra.mrb[0].mxu0 %v2073
      %v2188 = vpop.f32.mrb[0].mxu0
      %v2189 = vadd.f32 0.0, %v2188
      %v2190 = vpop.f32.mrb[0].mxu0
      %2191 = vmatprep.mubr.f32.mxu0 0.0
      %2192 = vmatmul.mubr.f32.gmra.mrb[0].mxu0 %v2075
      %v2193 = vpop.f32.mrb[0].mxu0
      %v2194 = vadd.f32 0.0, %v2193
      %v2195 = vpop.f32.mrb[0].mxu0
      %2196 = vmatprep.mubr.f32.mxu0 0.0
      %2197 = vmatmul.mubr.f32.gmra.mrb[0].mxu0 %v2077
      %v2198 = vpop.f32.mrb[0].mxu0
      %v2199 = vadd.f32 0.0, %v2198
      %v2200 = vpop.f32.mrb[0].mxu0
      %2201 = vmatprep.mubr.f32.mxu0 0.0
      %2202 = vmatmul.mubr.f32.gmra.mrb[0].mxu0 %v2079
      %v2203 = vpop.f32.mrb[0].mxu0
      %v2204 = vadd.f32 0.0, %v2203
      %v2205 = vpop.f32.mrb[0].mxu0
      %2206 = vmatprep.mubr.f32.mxu0 0.0
      %2207 = vmatmul.mubr.f32.gmra.mrb[0].mxu0 %v2081
      %v2208 = vpop.f32.mrb[0].mxu0
      %v2209 = vadd.f32 0.0, %v2208
      %v2210 = vpop.f32.mrb[0].mxu0
      %2211 = vmatprep.mubr.f32.mxu0 0.0
      %2212 = vmatmul.mubr.f32.gmra.mrb[0].mxu0 %v2083
      %v2213 = vpop.f32.mrb[0].mxu0
      %v2214 = vadd.f32 0.0, %v2213
      %v2215 = vpop.f32.mrb[0].mxu0
      %2216 = vmatprep.mubr.f32.mxu0 0.0
      %2217 = vmatmul.mubr.f32.gmra.mrb[0].mxu0 %v2085
      %v2218 = vpop.f32.mrb[0].mxu0
      %v2219 = vadd.f32 0.0, %v2218
      %v2220 = vpop.f32.mrb[0].mxu0
      %2221 = vmatprep.mubr.f32.mxu0 0.0
      %2222 = vmatmul.mubr.f32.gmra.mrb[0].mxu0 %v2087
      %v2223 = vpop.f32.mrb[0].mxu0
      %v2224 = vadd.f32 0.0, %v2223
      %v2225 = vpop.f32.mrb[0].mxu0
      %2226 = vdwg.mxu0
      %v2227 = vadd.f32 %v1958, %v2159
      %v2228 = vadd.f32 %v1963, %v2164
      %v2229 = vadd.f32 %v1968, %v2169
      %v2230 = vadd.f32 %v1973, %v2174
      %v2231 = vadd.f32 %v1978, %v2179
      %v2232 = vadd.f32 %v1983, %v2184
      %v2233 = vadd.f32 %v1988, %v2189
      %v2234 = vadd.f32 %v1993, %v2194
      %v2235 = vadd.f32 %v1998, %v2199
      %v2236 = vadd.f32 %v2003, %v2204
      %v2237 = vadd.f32 %v2008, %v2209
      %v2238 = vadd.f32 %v2013, %v2214
      %v2239 = vadd.f32 %v2018, %v2219
      %v2240 = vadd.f32 %v2023, %v2224
      %v2241 = vld [vmem:[%s4] sm:$0x1]
      %v2243 = vlaneseq
      %v2244 = vshrl.u32 %v2243, 7
      %v2245 = vsub.s32 0, %v2244
      %v2246 = vrot.slane %v2241, %v2245
      %v2248 = vadd.f32 %v2227, %v2246
      %v2249 = vadd.f32 %v2228, %v2246
      %v2250 = vadd.f32 %v2229, %v2246
      %v2251 = vadd.f32 %v2230, %v2246
      %v2252 = vadd.f32 %v2231, %v2246
      %v2253 = vadd.f32 %v2232, %v2246
      %v2254 = vadd.f32 %v2233, %v2246
      %v2255 = vadd.f32 %v2234, %v2246
      %v2256 = vadd.f32 %v2235, %v2246
      %v2257 = vadd.f32 %v2236, %v2246
      %v2258 = vadd.f32 %v2237, %v2246
      %v2259 = vadd.f32 %v2238, %v2246
      %v2260 = vadd.f32 %v2239, %v2246
      %v2261 = vadd.f32 %v2240, %v2246
      %v2262 = vmax.f32 %v2248, 0.0
      %v2263 = vmax.f32 %v2249, 0.0
      %v2264 = vmax.f32 %v2250, 0.0
      %v2265 = vmax.f32 %v2251, 0.0
      %v2266 = vmax.f32 %v2252, 0.0
      %v2267 = vmax.f32 %v2253, 0.0
      %v2268 = vmax.f32 %v2254, 0.0
      %v2269 = vmax.f32 %v2255, 0.0
      %v2270 = vmax.f32 %v2256, 0.0
      %v2271 = vmax.f32 %v2257, 0.0
      %v2272 = vmax.f32 %v2258, 0.0
      %v2273 = vmax.f32 %v2259, 0.0
      %v2274 = vmax.f32 %v2260, 0.0
      %v2275 = vmax.f32 %v2261, 0.0
      %v2276 = vmin.f32 %v2262, 6.0
      %v2277 = vmin.f32 %v2263, 6.0
      %v2278 = vmin.f32 %v2264, 6.0
      %v2279 = vmin.f32 %v2265, 6.0
      %v2280 = vmin.f32 %v2266, 6.0
      %v2281 = vmin.f32 %v2267, 6.0
      %v2282 = vmin.f32 %v2268, 6.0
      %v2283 = vmin.f32 %v2269, 6.0
      %v2284 = vmin.f32 %v2270, 6.0
      %v2285 = vmin.f32 %v2271, 6.0
      %v2286 = vmin.f32 %v2272, 6.0
      %v2287 = vmin.f32 %v2273, 6.0
      %v2288 = vmin.f32 %v2274, 6.0
      %v2289 = vmin.f32 %v2275, 6.0
      %v2304 = vrot.slane %v2276, 1
      %v2305 = vrot.slane %v2277, 1
      %v2306 = vsel %vm1664, %v2304, %v2305
      %v2307 = vrot.slane %v2278, 1
      %v2308 = vsel %vm1664, %v2305, %v2307
      %v2309 = vrot.slane %v2279, 1
      %v2310 = vsel %vm1664, %v2307, %v2309
      %v2311 = vrot.slane %v2280, 1
      %v2312 = vsel %vm1664, %v2309, %v2311
      %v2313 = vrot.slane %v2281, 1
      %v2314 = vsel %vm1664, %v2311, %v2313
      %v2315 = vrot.slane %v2282, 1
      %v2316 = vsel %vm1664, %v2313, %v2315
      %v2317 = vrot.slane %v2283, 1
      %v2318 = vsel %vm1664, %v2315, %v2317
      %v2319 = vrot.slane %v2284, 1
      %v2320 = vsel %vm1664, %v2317, %v2319
      %v2321 = vrot.slane %v2285, 1
      %v2322 = vsel %vm1664, %v2319, %v2321
      %v2323 = vrot.slane %v2286, 1
      %v2324 = vsel %vm1664, %v2321, %v2323
      %v2325 = vrot.slane %v2287, 1
      %v2326 = vsel %vm1664, %v2323, %v2325
      %v2327 = vrot.slane %v2288, 1
      %v2328 = vsel %vm1664, %v2325, %v2327
      %v2329 = vrot.slane %v2289, 1
      %v2330 = vsel %vm1664, %v2327, %v2329
      %v2345 = vmax.f32 %v2276, %v2306
      %v2346 = vmax.f32 %v2277, %v2308
      %v2347 = vmax.f32 %v2278, %v2310
      %v2348 = vmax.f32 %v2279, %v2312
      %v2349 = vmax.f32 %v2280, %v2314
      %v2350 = vmax.f32 %v2281, %v2316
      %v2351 = vmax.f32 %v2282, %v2318
      %v2352 = vmax.f32 %v2283, %v2320
      %v2353 = vmax.f32 %v2284, %v2322
      %v2354 = vmax.f32 %v2285, %v2324
      %v2355 = vmax.f32 %v2286, %v2326
      %v2356 = vmax.f32 %v2287, %v2328
      %v2357 = vmax.f32 %v2288, %v2330
      %v2358 = vmax.f32 %v2289, %v2329
      %2373 = vrot.lane.b32.xlu0 %v2345, 96
      %v2374 = vpop.permute.xlu0 %2373
      %2375 = vrot.lane.b32.xlu0 %v2346, 96
      %v2376 = vpop.permute.xlu0 %2375
      %2377 = vrot.lane.b32.xlu0 %v2347, 96
      %v2378 = vpop.permute.xlu0 %2377
      %2379 = vrot.lane.b32.xlu0 %v2348, 96
      %v2380 = vpop.permute.xlu0 %2379
      %2381 = vrot.lane.b32.xlu0 %v2349, 96
      %v2382 = vpop.permute.xlu0 %2381
      %2383 = vrot.lane.b32.xlu0 %v2350, 96
      %v2384 = vpop.permute.xlu0 %2383
      %2385 = vrot.lane.b32.xlu0 %v2351, 96
      %v2386 = vpop.permute.xlu0 %2385
      %2387 = vrot.lane.b32.xlu0 %v2352, 96
      %v2388 = vpop.permute.xlu0 %2387
      %2389 = vrot.lane.b32.xlu0 %v2353, 96
      %v2390 = vpop.permute.xlu0 %2389
      %2391 = vrot.lane.b32.xlu0 %v2354, 96
      %v2392 = vpop.permute.xlu0 %2391
      %2393 = vrot.lane.b32.xlu0 %v2355, 96
      %v2394 = vpop.permute.xlu0 %2393
      %2395 = vrot.lane.b32.xlu0 %v2356, 96
      %v2396 = vpop.permute.xlu0 %2395
      %2397 = vrot.lane.b32.xlu0 %v2357, 96
      %v2398 = vpop.permute.xlu0 %2397
      %2399 = vrot.lane.b32.xlu0 %v2358, 96
      %v2400 = vpop.permute.xlu0 %2399
      %v2415 = vmax.f32 %v2345, %v2374
      %v2416 = vmax.f32 %v2346, %v2376
      %v2417 = vmax.f32 %v2347, %v2378
      %v2418 = vmax.f32 %v2348, %v2380
      %v2419 = vmax.f32 %v2349, %v2382
      %v2420 = vmax.f32 %v2350, %v2384
      %v2421 = vmax.f32 %v2351, %v2386
      %v2422 = vmax.f32 %v2352, %v2388
      %v2423 = vmax.f32 %v2353, %v2390
      %v2424 = vmax.f32 %v2354, %v2392
      %v2425 = vmax.f32 %v2355, %v2394
      %v2426 = vmax.f32 %v2356, %v2396
      %v2427 = vmax.f32 %v2357, %v2398
      %v2428 = vmax.f32 %v2358, %v2400
      %v2429 = vld [vmem:[%s5] sm:$0xff]
      %v2430 = vld [vmem:[%s5 + $0x8] sm:$0xff]
      %vm2431 = vcmask 891904
      %v2433 = vsel %vm2431, %v2429, 0
      %v2436 = vsel %vm2431, %v2430, 0
      %vm2438 = vcmask 1044480
      %v2440 = vsel %vm2438, %v2428, 0
      %2442 = vmatprep.subr.mxu0 0.0
      %2443 = vmatpush1.msra.mxu0 %v2415
      %2444 = vmatprep.subr.mxu0 0.0
      %2445 = vmatpush1.msra.mxu0 %v2416
      %2446 = vmatprep.subr.mxu0 0.0
      %2447 = vmatpush1.msra.mxu0 %v2417
      %2448 = vmatprep.subr.mxu0 0.0
      %2449 = vmatpush1.msra.mxu0 %v2418
      %2450 = vmatprep.subr.mxu0 0.0
      %2451 = vmatpush1.msra.mxu0 %v2419
      %2452 = vmatprep.subr.mxu0 0.0
      %2453 = vmatpush1.msra.mxu0 %v2420
      %2454 = vmatprep.subr.mxu0 0.0
      %2455 = vmatpush1.msra.mxu0 %v2421
      %2456 = vmatprep.subr.mxu0 0.0
      %2457 = vmatpush1.msra.mxu0 %v2422
      %2458 = vmatprep.subr.mxu0 0.0
      %2459 = vmatpush1.msra.mxu0 %v2423
      %2460 = vmatprep.subr.mxu0 0.0
      %2461 = vmatpush1.msra.mxu0 %v2424
      %2462 = vmatprep.subr.mxu0 0.0
      %2463 = vmatpush1.msra.mxu0 %v2425
      %2464 = vmatprep.subr.mxu0 0.0
      %2465 = vmatpush1.msra.mxu0 %v2426
      %2466 = vmatprep.subr.mxu0 0.0
      %2467 = vmatpush1.msra.mxu0 %v2427
      %2468 = vmatprep.subr.mxu0 0.0
      %2469 = vmatpush1.msra.mxu0 %v2440
      %2470 = vmatprep.subr.mxu0 0.0
      %2471 = vmatpush1.msra.mxu0 0.0
      %2472 = vmatprep.subr.mxu0 0.0
      %2473 = vmatpush1.msra.mxu0 0.0
      %2474 = vmatprep.subr.mxu0 0.0
      %2475 = vmatpush1.msra.mxu0 0.0
      %2476 = vmatprep.subr.mxu0 0.0
      %2477 = vmatpush1.msra.mxu0 0.0
      %2478 = vmatprep.subr.mxu0 0.0
      %2479 = vmatpush1.msra.mxu0 0.0
      %2480 = vmatprep.subr.mxu0 0.0
      %2481 = vmatpush1.msra.mxu0 0.0
      %2482 = vmatprep.subr.mxu0 0.0
      %2483 = vmatpush1.msra.mxu0 0.0
      %2484 = vmatprep.subr.mxu0 0.0
      %2485 = vmatpush1.msra.mxu0 0.0
      %2486 = vmatprep.subr.mxu0 0.0
      %2487 = vmatpush1.msra.mxu0 0.0
      %2488 = vmatprep.subr.mxu0 0.0
      %2489 = vmatpush1.msra.mxu0 0.0
      %2490 = vmatprep.subr.mxu0 0.0
      %2491 = vmatpush1.msra.mxu0 0.0
      %2492 = vmatprep.subr.mxu0 0.0
      %2493 = vmatpush1.msra.mxu0 0.0
      %2494 = vmatprep.subr.mxu0 0.0
      %2495 = vmatpush1.msra.mxu0 0.0
      %2496 = vmatprep.subr.mxu0 0.0
      %2497 = vmatpush1.msra.mxu0 0.0
      %2498 = vmatprep.subr.mxu0 0.0
      %2499 = vmatpush1.msra.mxu0 0.0
      %2500 = vmatprep.subr.mxu0 0.0
      %2501 = vmatpush1.msra.mxu0 0.0
      %2502 = vmatprep.subr.mxu0 0.0
      %2503 = vmatpush1.msra.mxu0 0.0
      %2504 = vmatprep.subr.mxu0 0.0
      %2505 = vmatpush1.msra.mxu0 0.0
      %2506 = vmatprep.mubr.f32.mxu0 0.0
      %2507 = vmatmul.mubr.f32.gmra.mrb[0].mxu0 %v2433
      %v2508 = vpop.f32.mrb[0].mxu0
      %v2509 = vadd.f32 0.0, %v2508
      %v2510 = vpop.f32.mrb[0].mxu0
      %2511 = vmatprep.mubr.f32.mxu0 0.0
      %2512 = vmatmul.mubr.f32.gmra.mrb[0].mxu0 %v2436
      %v2513 = vpop.f32.mrb[0].mxu0
      %v2514 = vadd.f32 0.0, %v2513
      %v2515 = vpop.f32.mrb[0].mxu0
      %2516 = vdwg.mxu0
      %s2517 = scalar_lea.vmem %s5, 16
      %v2518 = vld [vmem:[%s2517] sm:$0xff]
      %v2519 = vld [vmem:[%s2517 + $0x8] sm:$0xff]
      %v2521 = vsel %vm2431, %v2518, 0
      %v2524 = vsel %vm2431, %v2519, 0
      %2526 = vmatprep.subr.mxu0 0.0
      %2527 = vmatpush1.msra.mxu0 %v2415
      %2528 = vmatprep.subr.mxu0 0.0
      %2529 = vmatpush1.msra.mxu0 %v2416
      %2530 = vmatprep.subr.mxu0 0.0
      %2531 = vmatpush1.msra.mxu0 %v2417
      %2532 = vmatprep.subr.mxu0 0.0
      %2533 = vmatpush1.msra.mxu0 %v2418
      %2534 = vmatprep.subr.mxu0 0.0
      %2535 = vmatpush1.msra.mxu0 %v2419
      %2536 = vmatprep.subr.mxu0 0.0
      %2537 = vmatpush1.msra.mxu0 %v2420
      %2538 = vmatprep.subr.mxu0 0.0
      %2539 = vmatpush1.msra.mxu0 %v2421
      %2540 = vmatprep.subr.mxu0 0.0
      %2541 = vmatpush1.msra.mxu0 %v2422
      %2542 = vmatprep.subr.mxu0 0.0
      %2543 = vmatpush1.msra.mxu0 %v2423
      %2544 = vmatprep.subr.mxu0 0.0
      %2545 = vmatpush1.msra.mxu0 %v2424
      %2546 = vmatprep.subr.mxu0 0.0
      %2547 = vmatpush1.msra.mxu0 %v2425
      %2548 = vmatprep.subr.mxu0 0.0
      %2549 = vmatpush1.msra.mxu0 %v2426
      %2550 = vmatprep.subr.mxu0 0.0
      %2551 = vmatpush1.msra.mxu0 %v2427
      %2552 = vmatprep.subr.mxu0 0.0
      %2553 = vmatpush1.msra.mxu0 %v2440
      %2554 = vmatprep.subr.mxu0 0.0
      %2555 = vmatpush1.msra.mxu0 0.0
      %2556 = vmatprep.subr.mxu0 0.0
      %2557 = vmatpush1.msra.mxu0 0.0
      %2558 = vmatprep.subr.mxu0 0.0
      %2559 = vmatpush1.msra.mxu0 0.0
      %2560 = vmatprep.subr.mxu0 0.0
      %2561 = vmatpush1.msra.mxu0 0.0
      %2562 = vmatprep.subr.mxu0 0.0
      %2563 = vmatpush1.msra.mxu0 0.0
      %2564 = vmatprep.subr.mxu0 0.0
      %2565 = vmatpush1.msra.mxu0 0.0
      %2566 = vmatprep.subr.mxu0 0.0
      %2567 = vmatpush1.msra.mxu0 0.0
      %2568 = vmatprep.subr.mxu0 0.0
      %2569 = vmatpush1.msra.mxu0 0.0
      %2570 = vmatprep.subr.mxu0 0.0
      %2571 = vmatpush1.msra.mxu0 0.0
      %2572 = vmatprep.subr.mxu0 0.0
      %2573 = vmatpush1.msra.mxu0 0.0
      %2574 = vmatprep.subr.mxu0 0.0
      %2575 = vmatpush1.msra.mxu0 0.0
      %2576 = vmatprep.subr.mxu0 0.0
      %2577 = vmatpush1.msra.mxu0 0.0
      %2578 = vmatprep.subr.mxu0 0.0
      %2579 = vmatpush1.msra.mxu0 0.0
      %2580 = vmatprep.subr.mxu0 0.0
      %2581 = vmatpush1.msra.mxu0 0.0
      %2582 = vmatprep.subr.mxu0 0.0
      %2583 = vmatpush1.msra.mxu0 0.0
      %2584 = vmatprep.subr.mxu0 0.0
      %2585 = vmatpush1.msra.mxu0 0.0
      %2586 = vmatprep.subr.mxu0 0.0
      %2587 = vmatpush1.msra.mxu0 0.0
      %2588 = vmatprep.subr.mxu0 0.0
      %2589 = vmatpush1.msra.mxu0 0.0
      %2590 = vmatprep.mubr.f32.mxu0 0.0
      %2591 = vmatmul.mubr.f32.gmra.mrb[0].mxu0 %v2521
      %v2592 = vpop.f32.mrb[0].mxu0
      %v2593 = vadd.f32 0.0, %v2592
      %v2594 = vpop.f32.mrb[0].mxu0
      %2595 = vmatprep.mubr.f32.mxu0 0.0
      %2596 = vmatmul.mubr.f32.gmra.mrb[0].mxu0 %v2524
      %v2597 = vpop.f32.mrb[0].mxu0
      %v2598 = vadd.f32 0.0, %v2597
      %v2599 = vpop.f32.mrb[0].mxu0
      %2600 = vdwg.mxu0
      %2603 = vrot.lane.b32.xlu0 %v2593, 32
      %v2604 = vpop.permute.xlu0 %2603
      %2605 = vrot.lane.b32.xlu0 %v2598, 32
      %v2606 = vpop.permute.xlu0 %2605
      %vm2609 = vcmask 261120
      %v2610 = vsel %vm2609, %v2509, %v2604
      %v2611 = vsel %vm2609, %v2514, %v2606
      %v2612 = vmax.f32 %v2610, 0.0
      %v2613 = vmax.f32 %v2611, 0.0
      %v2614 = vmin.f32 %v2612, 6.0
      %v2615 = vmin.f32 %v2613, 6.0
      %v2616 = vld [vmem:[%s6] sm:$0xff]
      %v2617 = vld [vmem:[%s6 + $0x8] sm:$0xff]
      %v2618 = vld [vmem:[%s6 + $0x10] sm:$0xff]
      %v2619 = vld [vmem:[%s6 + $0x18] sm:$0xff]
      %v2620 = vld [vmem:[%s6 + $0x20] sm:$0xff]
      %v2621 = vld [vmem:[%s6 + $0x28] sm:$0xff]
      %v2622 = vld [vmem:[%s6 + $0x30] sm:$0xff]
      %v2623 = vld [vmem:[%s6 + $0x38] sm:$0xff]
      %v2624 = vld [vmem:[%s7] sm:$0x1]
      %v2626 = vlaneseq
      %v2627 = vshrl.u32 %v2626, 7
      %v2628 = vsub.s32 0, %v2627
      %v2629 = vrot.slane %v2624, %v2628
      %vm2631 = vcmask 523264
      %v2633 = vsel %vm2631, %v2614, 0
      %v2636 = vsel %vm2631, %v2615, 0
      %2638 = vmatprep.subr.mxu0 0.0
      %2639 = vmatpush1.msra.mxu0 %v2616
      %2640 = vmatprep.subr.mxu0 0.0
      %2641 = vmatpush1.msra.mxu0 %v2617
      %2642 = vmatprep.subr.mxu0 0.0
      %2643 = vmatpush1.msra.mxu0 %v2618
      %2644 = vmatprep.subr.mxu0 0.0
      %2645 = vmatpush1.msra.mxu0 %v2619
      %2646 = vmatprep.subr.mxu0 0.0
      %2647 = vmatpush1.msra.mxu0 %v2620
      %2648 = vmatprep.subr.mxu0 0.0
      %2649 = vmatpush1.msra.mxu0 %v2621
      %2650 = vmatprep.subr.mxu0 0.0
      %2651 = vmatpush1.msra.mxu0 %v2622
      %2652 = vmatprep.subr.mxu0 0.0
      %2653 = vmatpush1.msra.mxu0 %v2623
      %2654 = vmatprep.subr.mxu0 0.0
      %2655 = vmatpush1.msra.mxu0 0.0
      %2656 = vmatprep.subr.mxu0 0.0
      %2657 = vmatpush1.msra.mxu0 0.0
      %2658 = vmatprep.subr.mxu0 0.0
      %2659 = vmatpush1.msra.mxu0 0.0
      %2660 = vmatprep.subr.mxu0 0.0
      %2661 = vmatpush1.msra.mxu0 0.0
      %2662 = vmatprep.subr.mxu0 0.0
      %2663 = vmatpush1.msra.mxu0 0.0
      %2664 = vmatprep.subr.mxu0 0.0
      %2665 = vmatpush1.msra.mxu0 0.0
      %2666 = vmatprep.subr.mxu0 0.0
      %2667 = vmatpush1.msra.mxu0 0.0
      %2668 = vmatprep.subr.mxu0 0.0
      %2669 = vmatpush1.msra.mxu0 0.0
      %2670 = vmatprep.subr.mxu0 0.0
      %2671 = vmatpush1.msra.mxu0 0.0
      %2672 = vmatprep.subr.mxu0 0.0
      %2673 = vmatpush1.msra.mxu0 0.0
      %2674 = vmatprep.subr.mxu0 0.0
      %2675 = vmatpush1.msra.mxu0 0.0
      %2676 = vmatprep.subr.mxu0 0.0
      %2677 = vmatpush1.msra.mxu0 0.0
      %2678 = vmatprep.subr.mxu0 0.0
      %2679 = vmatpush1.msra.mxu0 0.0
      %2680 = vmatprep.subr.mxu0 0.0
      %2681 = vmatpush1.msra.mxu0 0.0
      %2682 = vmatprep.subr.mxu0 0.0
      %2683 = vmatpush1.msra.mxu0 0.0
      %2684 = vmatprep.subr.mxu0 0.0
      %2685 = vmatpush1.msra.mxu0 0.0
      %2686 = vmatprep.subr.mxu0 0.0
      %2687 = vmatpush1.msra.mxu0 0.0
      %2688 = vmatprep.subr.mxu0 0.0
      %2689 = vmatpush1.msra.mxu0 0.0
      %2690 = vmatprep.subr.mxu0 0.0
      %2691 = vmatpush1.msra.mxu0 0.0
      %2692 = vmatprep.subr.mxu0 0.0
      %2693 = vmatpush1.msra.mxu0 0.0
      %2694 = vmatprep.subr.mxu0 0.0
      %2695 = vmatpush1.msra.mxu0 0.0
      %2696 = vmatprep.subr.mxu0 0.0
      %2697 = vmatpush1.msra.mxu0 0.0
      %2698 = vmatprep.subr.mxu0 0.0
      %2699 = vmatpush1.msra.mxu0 0.0
      %2700 = vmatprep.subr.mxu0 0.0
      %2701 = vmatpush1.msra.mxu0 0.0
      %2702 = vmatprep.mubr.f32.mxu0 0.0
      %2703 = vmatmul.mubr.f32.gmra.mrb[0].mxu0 %v2633
      %v2704 = vpop.f32.mrb[0].mxu0
      %v2705 = vadd.f32 %v2629, %v2704
      %v2706 = vpop.f32.mrb[0].mxu0
      %2707 = vmatprep.mubr.f32.mxu0 0.0
      %2708 = vmatmul.mubr.f32.gmra.mrb[0].mxu0 %v2636
      %v2709 = vpop.f32.mrb[0].mxu0
      %v2710 = vadd.f32 %v2629, %v2709
      %v2711 = vpop.f32.mrb[0].mxu0
      %2712 = vdwg.mxu0
      %v2713 = vmax.f32 %v2705, 0.0
      %v2714 = vmax.f32 %v2710, 0.0
      %v2715 = vmin.f32 %v2713, 6.0
      %v2716 = vmin.f32 %v2714, 6.0
      %v2717 = vld [vmem:[%s8] sm:$0xff]
      %v2718 = vld [vmem:[%s8 + $0x8] sm:$0xff]
      %v2719 = vld [vmem:[%s8 + $0x10] sm:$0xff]
      %v2720 = vld [vmem:[%s8 + $0x18] sm:$0xff]
      %v2721 = vld [vmem:[%s9] sm:$0x1]
      %v2723 = vlaneseq
      %v2724 = vshrl.u32 %v2723, 7
      %v2725 = vsub.s32 0, %v2724
      %v2726 = vrot.slane %v2721, %v2725
      %v2729 = vsel %vm2609, %v2715, 0
      %v2732 = vsel %vm2609, %v2716, 0
      %2734 = vmatprep.subr.mxu0 0.0
      %2735 = vmatpush1.msra.mxu0 %v2717
      %2736 = vmatprep.subr.mxu0 0.0
      %2737 = vmatpush1.msra.mxu0 %v2718
      %2738 = vmatprep.subr.mxu0 0.0
      %2739 = vmatpush1.msra.mxu0 %v2719
      %2740 = vmatprep.subr.mxu0 0.0
      %2741 = vmatpush1.msra.mxu0 %v2720
      %2742 = vmatprep.subr.mxu0 0.0
      %2743 = vmatpush1.msra.mxu0 0.0
      %2744 = vmatprep.subr.mxu0 0.0
      %2745 = vmatpush1.msra.mxu0 0.0
      %2746 = vmatprep.subr.mxu0 0.0
      %2747 = vmatpush1.msra.mxu0 0.0
      %2748 = vmatprep.subr.mxu0 0.0
      %2749 = vmatpush1.msra.mxu0 0.0
      %2750 = vmatprep.subr.mxu0 0.0
      %2751 = vmatpush1.msra.mxu0 0.0
      %2752 = vmatprep.subr.mxu0 0.0
      %2753 = vmatpush1.msra.mxu0 0.0
      %2754 = vmatprep.subr.mxu0 0.0
      %2755 = vmatpush1.msra.mxu0 0.0
      %2756 = vmatprep.subr.mxu0 0.0
      %2757 = vmatpush1.msra.mxu0 0.0
      %2758 = vmatprep.subr.mxu0 0.0
      %2759 = vmatpush1.msra.mxu0 0.0
      %2760 = vmatprep.subr.mxu0 0.0
      %2761 = vmatpush1.msra.mxu0 0.0
      %2762 = vmatprep.subr.mxu0 0.0
      %2763 = vmatpush1.msra.mxu0 0.0
      %2764 = vmatprep.subr.mxu0 0.0
      %2765 = vmatpush1.msra.mxu0 0.0
      %2766 = vmatprep.subr.mxu0 0.0
      %2767 = vmatpush1.msra.mxu0 0.0
      %2768 = vmatprep.subr.mxu0 0.0
      %2769 = vmatpush1.msra.mxu0 0.0
      %2770 = vmatprep.subr.mxu0 0.0
      %2771 = vmatpush1.msra.mxu0 0.0
      %2772 = vmatprep.subr.mxu0 0.0
      %2773 = vmatpush1.msra.mxu0 0.0
      %2774 = vmatprep.subr.mxu0 0.0
      %2775 = vmatpush1.msra.mxu0 0.0
      %2776 = vmatprep.subr.mxu0 0.0
      %2777 = vmatpush1.msra.mxu0 0.0
      %2778 = vmatprep.subr.mxu0 0.0
      %2779 = vmatpush1.msra.mxu0 0.0
      %2780 = vmatprep.subr.mxu0 0.0
      %2781 = vmatpush1.msra.mxu0 0.0
      %2782 = vmatprep.subr.mxu0 0.0
      %2783 = vmatpush1.msra.mxu0 0.0
      %2784 = vmatprep.subr.mxu0 0.0
      %2785 = vmatpush1.msra.mxu0 0.0
      %2786 = vmatprep.subr.mxu0 0.0
      %2787 = vmatpush1.msra.mxu0 0.0
      %2788 = vmatprep.subr.mxu0 0.0
      %2789 = vmatpush1.msra.mxu0 0.0
      %2790 = vmatprep.subr.mxu0 0.0
      %2791 = vmatpush1.msra.mxu0 0.0
      %2792 = vmatprep.subr.mxu0 0.0
      %2793 = vmatpush1.msra.mxu0 0.0
      %2794 = vmatprep.subr.mxu0 0.0
      %2795 = vmatpush1.msra.mxu0 0.0
      %2796 = vmatprep.subr.mxu0 0.0
      %2797 = vmatpush1.msra.mxu0 0.0
      %2798 = vmatprep.mubr.f32.mxu0 0.0
      %2799 = vmatmul.mubr.f32.gmra.mrb[0].mxu0 %v2729
      %v2800 = vpop.f32.mrb[0].mxu0
      %v2801 = vadd.f32 %v2726, %v2800
      %v2802 = vpop.f32.mrb[0].mxu0
      %2803 = vmatprep.mubr.f32.mxu0 0.0
      %2804 = vmatmul.mubr.f32.gmra.mrb[0].mxu0 %v2732
      %v2805 = vpop.f32.mrb[0].mxu0
      %v2806 = vadd.f32 %v2726, %v2805
      %v2807 = vpop.f32.mrb[0].mxu0
      %2808 = vdwg.mxu0
      %v2809 = vlaneseq
      %v2810 = vand.u32 %v2809, 127
      %vm2811 = vcmp.lt.s32.totalorder %v2810, 6
      %vm2812 = vcmp.gt.f32.partialorder %v2801, 0.0
      %vm2813 = vcmp.gt.f32.partialorder %v2806, 0.0
      %v2814 = vmin.f32 %v2801, 0.0
      %v2815 = vmin.f32 %v2806, 0.0
      %v2816 = vmul.f32 %v2814, 1.442695
      %v2817 = vpow.pop %v2816
      %v2818 = vmul.f32 %v2815, 1.442695
      %v2819 = vpow.pop %v2818
      %v2820 = vsub.f32 %v2817, 1.0
      %v2821 = vsub.f32 %v2819, 1.0
      %v2822 = vmul.f32 %v2820, 1.6732632
      %v2823 = vmul.f32 %v2821, 1.6732632
      %v2824 = vsel %vm2812, %v2801, %v2822
      %v2825 = vsel %vm2813, %v2806, %v2823
      %v2826 = vmul.f32 %v2824, 1.050701
      %v2827 = vmul.f32 %v2825, 1.050701
      %v2828 = vld [vmem:[%s10] sm:$0x1]
      %v2830 = vlaneseq
      %v2831 = vshrl.u32 %v2830, 7
      %v2832 = vsub.s32 0, %v2831
      %v2833 = vrot.slane %v2828, %v2832
      %v2835 = vadd.f32 %v2826, %v2833
      %v2836 = vadd.f32 %v2827, %v2833
      %v2837 = vmul.f32 %v2801, 0.001
      %v2838 = vmul.f32 %v2806, 0.001
      %v2839 = vsel %vm2811, %v2835, %v2837
      %v2840 = vsel %vm2811, %v2836, %v2838
      %2841 = vst [vmem:[%s386] sm:$0xff] %v2839
      %2842 = vst [vmem:[%s386 + $0x8] sm:$0xff] %v2840
      %s2843 = smul.u32 2, %s22
      %p2844 = scmp.lt.s32.totalorder %s2843, 3
      %s2845 = scalar_select %p2844, %s2843, 3
      %s2846 = smul.addr %s2845, 8
      %s2847 = scalar_lea.vmem %s11, %s2846
      // Predicated region
      $region65: #{deep_conv_dp_forward.1} parent=63 // pred_check
        %p2848 = pneg %p276
      $region66: #{deep_conv_dp_forward.1} parent=63 // pred_check_branch
        %2850 = sbr.rel (%p2848) target = $region68
      $region67: #{deep_conv_dp_forward.1} parent=63 // pred_region
        %s2851 = smul.u32 2, %s22
      $region68: #{deep_conv_dp_forward.1} parent=63 // pred_fallthru
        _
    $region64: #{deep_conv_dp_forward.1} parent=5 // pred_fallthru
      _
    %p2852 = scmp.le.s32.totalorder 2, %s17
    // Predicated region
    $region69: #{deep_conv_dp_forward.1} parent=5 // pred_check
      %p2853 = pneg %p2852
    $region70: #{deep_conv_dp_forward.1} parent=5 // pred_check_branch
      %2855 = sbr.rel (%p2853) target = $region72
    $region71: #{deep_conv_dp_forward.1} parent=5 // pred_region
      %s2856 = ssub.s32 %s17, 2
      // Predicated region
      $region73: #{deep_conv_dp_forward.1} parent=71 // pred_check
        %p2857 = pneg %p282
      $region74: #{deep_conv_dp_forward.1} parent=71 // pred_check_branch
        %2859 = sbr.rel (%p2857) target = $region76
      $region75: #{deep_conv_dp_forward.1} parent=71 // pred_region
        %s2860 = smul.u32 2, %s23
        %p2861 = scmp.lt.s32.totalorder %s2860, 3
        %s2862 = scalar_select %p2861, %s2860, 3
        %s2863 = smul.addr %s2862, 8
        %s2864 = scalar_lea.vmem %s11, %s2863
      $region76: #{deep_conv_dp_forward.1} parent=71 // pred_fallthru
        _
    $region72: #{deep_conv_dp_forward.1} parent=5 // pred_fallthru
      _
  $region6: #{deep_conv_dp_forward.1} parent=0 // loop_footer
    %s21 = sadd.s32 1, %s17
  $region7: #{deep_conv_dp_forward.1} parent=0 // loop_footer_branch
    %16 = sbr.rel target = $region3
  $region8: #{deep_conv_dp_forward.1} parent=0 // loop_exit
    _

</llo_original>
